<compile_context>
chip_gen: v7x
topology: tpu7x:2x2x1
jax: 0.10.0
libtpu: 0.0.40
codegen_flags: <defaults>
</compile_context>

<pallas_src>
import functools

import jax
import jax.numpy as jnp
from jax.experimental import pallas as pl
from jax.experimental.pallas import tpu as pltpu

EPS = 1e-5           # nn.LayerNorm default
_BF16 = jnp.bfloat16


def _layernorm(x, w, b):
    mu = jnp.mean(x, axis=-1, keepdims=True)
    var = jnp.mean(jnp.square(x - mu), axis=-1, keepdims=True)
    return (x - mu) * jax.lax.rsqrt(var + EPS) * w + b


def transformer_block_kernel(num_heads, seq_block, approx_gelu, exp_dtype,
                             x_ref,
                             ln1_w_ref, ln1_b_ref,
                             w_q_ref, b_q_ref, w_kv_ref, b_kv_ref,
                             wo_ref, bo_ref,
                             ln2_w_ref, ln2_b_ref,
                             w1_ref, b1_ref, w2_ref, b2_ref,
                             out_ref,
                             k_scr, v_scr):
    """Grid = (batch, q-tile).  x_ref holds the full (S, E) sequence of one batch
    element (DMA'd once per batch, reused across q tiles); weights are grid-invariant
    single-buffered blocks; K/V live in head-major bf16 VMEM scratch."""
    qi = pl.program_id(1)
    S, E = x_ref.shape[1], x_ref.shape[2]
    nh = num_heads
    hd = E // nh
    tq = seq_block
    scale = 1.0 / (hd ** 0.5)

    # ---- prime head-major K / V scratch for this batch element (first q tile) ----
    @pl.when(qi == 0)
    def _():
        h_full = _layernorm(x_ref[0], ln1_w_ref[0], ln1_b_ref[0])               # (S, E) f32
        kv = jnp.dot(h_full.astype(_BF16), w_kv_ref[...],
                     preferred_element_type=jnp.float32) + b_kv_ref[0]           # (S, 2E) f32
        k_scr[...] = kv[:, :E].reshape(S, nh, hd).transpose(1, 0, 2).astype(_BF16)
        v_scr[...] = kv[:, E:].reshape(S, nh, hd).transpose(1, 0, 2).astype(_BF16)

    # ---- ResidualAttentionBlock on this q tile ----
    row0 = pl.multiple_of(qi * tq, tq)
    x_q = x_ref[0, pl.ds(row0, tq), :]                                           # (tq, E) f32
    h_q = _layernorm(x_q, ln1_w_ref[0], ln1_b_ref[0])
    q = jnp.dot(h_q.astype(_BF16), w_q_ref[...],
                preferred_element_type=jnp.float32) + b_q_ref[0]                 # (tq, E) f32
    # Head split: one reshape + major-dim transpose (no per-head slice/stack loop).
    q3 = q.reshape(tq, nh, hd).transpose(1, 0, 2).astype(_BF16)                  # (nh, tq, hd)

    s = jnp.einsum('nqd,nkd->nqk', q3, k_scr[...],
                   preferred_element_type=jnp.float32) * scale                   # (nh, tq, S) f32
    s = s - jnp.max(s, axis=-1, keepdims=True)
    p = jnp.exp(s.astype(exp_dtype))               # bf16 exp on v6e/v7x EUP; f32 on v5e
    l = jnp.sum(p, axis=-1, keepdims=True, dtype=jnp.float32)                    # (nh, tq, 1)
    o = jnp.einsum('nqk,nkd->nqd', p.astype(_BF16), v_scr[...],
                   preferred_element_type=jnp.float32)                           # (nh, tq, hd)
    # Deferred softmax normalization on the small PV result via the (idle) EUP.
    o = o * pl.reciprocal(l, approx=True)

    # Output projection collapsed to a single MXU matmul: concat heads (one (tq, E)
    # bf16 relayout), then (tq, E) @ (E, E).  No (nh, tq, E) f32 intermediate.
    o_flat = o.astype(_BF16).transpose(1, 0, 2).reshape(tq, E)
    attn = jnp.dot(o_flat, wo_ref[...],
                   preferred_element_type=jnp.float32) + bo_ref[0]               # (tq, E) f32

    x1 = attn + x_q                                 # StaticSkip (learnable_skip=False)

    # ---- ResidualMLPBlock (dropout == identity in eval) ----
    h2 = _layernorm(x1, ln2_w_ref[0], ln2_b_ref[0])
    h2 = jnp.dot(h2.astype(_BF16), w1_ref[...],
                 preferred_element_type=jnp.float32)                             # (tq, H) f32
    # Fused bias + GELU, immediately cast to bf16 so only the bf16 copy stays live
    # for the fc2 matmul (halves the largest MLP intermediate).
    h2 = jax.nn.gelu(h2 + b1_ref[0], approximate=approx_gelu).astype(_BF16)
    y = jnp.dot(h2, w2_ref[...], preferred_element_type=jnp.float32) + b2_ref[0]

    out_ref[0] = y + x1                             # StaticSkip


def _vmem_limit_bytes():
    # Per-generation VMEM budget: ~75% of physical per-core VMEM, capped at 112 MiB.
    # v5e/v6e (128 MiB) -> 96 MiB; v7x (64 MiB) -> 48 MiB.  Conservative fallback if
    # the hardware query is unavailable.
    try:
        cap = int(pltpu.get_tpu_info().vmem_capacity_bytes)
    except Exception:
        return 48 * 1024 * 1024
    return int(min((cap * 3) // 4, 112 * 1024 * 1024))


def init_params(key, embed_dim, num_heads, fcn_dim_factor):
    hidden_dim = int(embed_dim * fcn_dim_factor)
    k = jax.random.split(key, 6)

    def linear(k_, out_f, in_f):
        kw, kb = jax.random.split(k_)
        bound = 1.0 / (in_f ** 0.5)
        w = jax.random.uniform(kw, (out_f, in_f), jnp.float32, -bound, bound)
        b = jax.random.uniform(kb, (out_f,), jnp.float32, -bound, bound)
        return w, b

    in_proj_w, in_proj_b = linear(k[0], 3 * embed_dim, embed_dim)
    out_w, out_b = linear(k[1], embed_dim, embed_dim)
    w1, b1 = linear(k[2], hidden_dim, embed_dim)
    w2, b2 = linear(k[3], embed_dim, hidden_dim)
    ln1_w = 1.0 + 0.1 * jax.random.normal(k[4], (embed_dim,), jnp.float32)
    ln1_b = 0.1 * jax.random.normal(jax.random.fold_in(k[4], 1), (embed_dim,), jnp.float32)
    ln2_w = 1.0 + 0.1 * jax.random.normal(k[5], (embed_dim,), jnp.float32)
    ln2_b = 0.1 * jax.random.normal(jax.random.fold_in(k[5], 1), (embed_dim,), jnp.float32)

    return dict(in_proj_w=in_proj_w, in_proj_b=in_proj_b,
                out_w=out_w, out_b=out_b,
                w1=w1, b1=b1, w2=w2, b2=b2,
                ln1_w=ln1_w, ln1_b=ln1_b, ln2_w=ln2_w, ln2_b=ln2_b)


def transformer_block_pallas(x, params, num_heads, *, seq_block=256,
                             approx_gelu=True, bf16_softmax_exp=True):
    """approx_gelu=True  -> tanh GELU (routes to EUP); set False to match nn.GELU() erf.
    bf16_softmax_exp=True -> bf16 exp (v6e/v7x bf16 EUP); set False on v5e (f32 EUP)."""
    B, S, E = x.shape
    nh = num_heads
    assert E % nh == 0, "embed_dim must be divisible by num_heads"
    hd = E // nh

    tq = seq_block
    if tq >= S or S % tq != 0:
        tq = S                     # TODO(synk): pad / pl.BoundedSlice for ragged S
    nq = S // tq

    def r2(v):  # 1-D f32 params -> (1, N) rows for clean VMEM layout
        return v.reshape(1, -1).astype(jnp.float32)

    # Weight prep (once, outside the kernel): Q projection split from the fused K/V
    # projection (K/V are computed once per batch element, Q per tile); matmul weights
    # pre-transposed to (in, out) and cast to bf16; biases / LN params stay f32.
    # TODO(synk): on v7x, optionally ship the 4 large matmul weights as fp8 with
    # per-output-channel f32 scales (needs a numerics validation pass).
    weight_args = [
        r2(params["ln1_w"]), r2(params["ln1_b"]),
        params["in_proj_w"][:E].T.astype(_BF16),           # W_q   (E, E)
        r2(params["in_proj_b"][:E]),                       # b_q   (1, E)
        params["in_proj_w"][E:].T.astype(_BF16),           # W_kv  (E, 2E)
        r2(params["in_proj_b"][E:]),                       # b_kv  (1, 2E)
        params["out_w"].T.astype(_BF16),                   # W_o   (E, E)
        r2(params["out_b"]),
        r2(params["ln2_w"]), r2(params["ln2_b"]),
        params["w1"].T.astype(_BF16),                      # (E, H)
        r2(params["b1"]),
        params["w2"].T.astype(_BF16),                      # (H, E)
        r2(params["b2"]),
    ]

    exp_dtype = _BF16 if bf16_softmax_exp else jnp.float32
    kernel = functools.partial(transformer_block_kernel, nh, tq, approx_gelu, exp_dtype)

    # x: full sequence per batch element, re-DMA'd only when the batch index changes.
    x_spec = pl.BlockSpec((1, S, E), lambda b, q: (b, 0, 0))
    # Output: one lane-dense (tq, E) tile per grid step.
    out_spec = pl.BlockSpec((1, tq, E), lambda b, q: (b, q, 0))

    def build(weight_mode):
        def w_spec(a):
            nd = a.ndim
            return pl.BlockSpec(a.shape, lambda b, q: (0,) * nd,
                                pipeline_mode=weight_mode)

        return pl.pallas_call(
            kernel,
            out_shape=jax.ShapeDtypeStruct((B, S, E), jnp.float32),
            grid_spec=pltpu.PrefetchScalarGridSpec(
                num_scalar_prefetch=0,
                grid=(B, nq),
                in_specs=[x_spec] + [w_spec(a) for a in weight_args],
                out_specs=out_spec,
                scratch_shapes=[pltpu.VMEM((nh, S, hd), _BF16),   # K, head-major
                                pltpu.VMEM((nh, S, hd), _BF16)],  # V, head-major
            ),
            # Batch axis "parallel" (megacore); the q-tile axis stays "arbitrary"
            # because K/V scratch is primed on the first q tile of each batch element.
            # TODO(synk): for B=1 on v7x, recompute K/V per tile (or 2-pass) so the q
            # axis can also be "parallel" and keep both TensorCores busy.
            compiler_params=pltpu.CompilerParams(
                dimension_semantics=("parallel", "arbitrary"),
                vmem_limit_bytes=_vmem_limit_bytes(),
            ),
        )

    try:
        # Grid-invariant weights -> single-buffer (halves weight VMEM; key on v7x 64 MiB).
        return build(pl.Buffered(1))(x, *weight_args)
    except Exception:
        # TODO(synk): drop fallback once pl.Buffered(1) is guaranteed by the minimum
        # supported jax version; identical kernel, just default double-buffered weights.
        return build(None)(x, *weight_args)


def transformer_block_ref(x, params, num_heads, matmul_dtype=jnp.float32,
                          approx_gelu=False):
    """Pure-JAX reference.  matmul_dtype=bf16 + approx_gelu=True mirrors the kernel's
    mixed precision; matmul_dtype=f32 + approx_gelu=False is PyTorch semantics."""
    B, S, E = x.shape
    hd = E // num_heads
    md = matmul_dtype

    def ln(z, w, b):
        mu = z.mean(-1, keepdims=True)
        var = ((z - mu) ** 2).mean(-1, keepdims=True)
        return (z - mu) / jnp.sqrt(var + EPS) * w + b

    def mm(a, bmat):
        return jnp.dot(a.astype(md), bmat.astype(md),
                       preferred_element_type=jnp.float32)

    h = ln(x, params["ln1_w"], params["ln1_b"])
    qkv = mm(h, params["in_proj_w"].T) + params["in_proj_b"]
    q, k, v = jnp.split(qkv, 3, axis=-1)
    q = q.reshape(B, S, num_heads, hd).transpose(0, 2, 1, 3).astype(md)
    k = k.reshape(B, S, num_heads, hd).transpose(0, 2, 1, 3).astype(md)
    v = v.reshape(B, S, num_heads, hd).transpose(0, 2, 1, 3).astype(md)
    s = jnp.einsum('bnqd,bnkd->bnqk', q, k,
                   preferred_element_type=jnp.float32) * (1.0 / (hd ** 0.5))
    p = jax.nn.softmax(s, axis=-1)
    o = jnp.einsum('bnqk,bnkd->bnqd', p.astype(md), v,
                   preferred_element_type=jnp.float32)
    o = o.transpose(0, 2, 1, 3).reshape(B, S, E)
    o = mm(o, params["out_w"].T) + params["out_b"]
    x1 = o + x

    h2 = ln(x1, params["ln2_w"], params["ln2_b"])
    h2 = mm(h2, params["w1"].T) + params["b1"]
    h2 = jax.nn.gelu(h2, approximate=approx_gelu)
    h2 = mm(h2, params["w2"].T) + params["b2"]
    return h2 + x1


if __name__ == "__main__":
    # Small correctness shapes (NOT for benchmarking: production E/H should be
    # multiples of 128 and hd >= 128 to be lane-dense / MXU-friendly).
    # S=16 with seq_block=8 exercises the (batch, q-tile) grid and the K/V scratch
    # priming path (2 q tiles per batch element).
    B, S, E = 2, 16, 32
    num_heads = 4
    fcn_dim_factor = 4.0

    key = jax.random.PRNGKey(0)
    kx, kp = jax.random.split(key)
    x = jax.random.normal(kx, (B, S, E), jnp.float32)
    params = init_params(kp, E, num_heads, fcn_dim_factor)

    out = jax.block_until_ready(
        transformer_block_pallas(x, params, num_heads, seq_block=8))
    assert out.shape == (B, S, E)

    # Tight check against a reference with matching mixed precision (bf16 operands,
    # f32 accumulation, tanh GELU); slack covers bf16 exp + approx-reciprocal softmax.
    ref_mixed = jax.block_until_ready(
        transformer_block_ref(x, params, num_heads,
                              matmul_dtype=jnp.bfloat16, approx_gelu=True))
    assert bool(jnp.allclose(out, ref_mixed, atol=3e-2, rtol=3e-2)), \
        "mismatch vs mixed-precision reference"

    # Loose check against the full-f32, exact-GELU (PyTorch-semantics) reference; the
    # slack is the expected bf16 operand-quantization + tanh-GELU error.
    ref_f32 = jax.block_until_ready(
        transformer_block_ref(x, params, num_heads,
                              matmul_dtype=jnp.float32, approx_gelu=False))
    assert bool(jnp.allclose(out, ref_f32, atol=1e-1, rtol=1e-1)), \
        "mismatch vs f32 reference"

    print("KERNEL_OK")
</pallas_src>

<mosaic_0001>
module attributes {stable_mosaic.version = 11 : i64} {
  func.func @transformer_block_kernel(%arg0: i32, %arg1: i32, %arg2: memref<1x16x32xf32, #tpu.memory_space<vmem>>, %arg3: memref<1x32xf32, #tpu.memory_space<vmem>>, %arg4: memref<1x32xf32, #tpu.memory_space<vmem>>, %arg5: memref<32x32xbf16, #tpu.memory_space<vmem>>, %arg6: memref<1x32xf32, #tpu.memory_space<vmem>>, %arg7: memref<32x64xbf16, #tpu.memory_space<vmem>>, %arg8: memref<1x64xf32, #tpu.memory_space<vmem>>, %arg9: memref<32x32xbf16, #tpu.memory_space<vmem>>, %arg10: memref<1x32xf32, #tpu.memory_space<vmem>>, %arg11: memref<1x32xf32, #tpu.memory_space<vmem>>, %arg12: memref<1x32xf32, #tpu.memory_space<vmem>>, %arg13: memref<32x128xbf16, #tpu.memory_space<vmem>>, %arg14: memref<1x128xf32, #tpu.memory_space<vmem>>, %arg15: memref<128x32xbf16, #tpu.memory_space<vmem>>, %arg16: memref<1x32xf32, #tpu.memory_space<vmem>>, %arg17: memref<1x8x32xf32, #tpu.memory_space<vmem>>, %arg18: memref<4x16x8xbf16, #tpu.memory_space<vmem>>, %arg19: memref<4x16x8xbf16, #tpu.memory_space<vmem>>) attributes {dimension_semantics = [#tpu.dimension_semantics<parallel>, #tpu.dimension_semantics<arbitrary>], iteration_bounds = array<i64: 2, 2>, scalar_prefetch = 0 : i64, scratch_operands = 2 : i64, tpu.core_type = #tpu.core_type<tc>, window_params = [{transform_indices = @transform_0, window_bounds = array<i64: 1, 16, 32>}, {pipeline_mode = #tpu.pipeline_mode<synchronous>, transform_indices = @transform_1, window_bounds = array<i64: 1, 32>}, {pipeline_mode = #tpu.pipeline_mode<synchronous>, transform_indices = @transform_2, window_bounds = array<i64: 1, 32>}, {pipeline_mode = #tpu.pipeline_mode<synchronous>, transform_indices = @transform_3, window_bounds = array<i64: 32, 32>}, {pipeline_mode = #tpu.pipeline_mode<synchronous>, transform_indices = @transform_4, window_bounds = array<i64: 1, 32>}, {pipeline_mode = #tpu.pipeline_mode<synchronous>, transform_indices = @transform_5, window_bounds = array<i64: 32, 64>}, {pipeline_mode = #tpu.pipeline_mode<synchronous>, transform_indices = @transform_6, window_bounds = array<i64: 1, 64>}, {pipeline_mode = #tpu.pipeline_mode<synchronous>, transform_indices = @transform_7, window_bounds = array<i64: 32, 32>}, {pipeline_mode = #tpu.pipeline_mode<synchronous>, transform_indices = @transform_8, window_bounds = array<i64: 1, 32>}, {pipeline_mode = #tpu.pipeline_mode<synchronous>, transform_indices = @transform_9, window_bounds = array<i64: 1, 32>}, {pipeline_mode = #tpu.pipeline_mode<synchronous>, transform_indices = @transform_10, window_bounds = array<i64: 1, 32>}, {pipeline_mode = #tpu.pipeline_mode<synchronous>, transform_indices = @transform_11, window_bounds = array<i64: 32, 128>}, {pipeline_mode = #tpu.pipeline_mode<synchronous>, transform_indices = @transform_12, window_bounds = array<i64: 1, 128>}, {pipeline_mode = #tpu.pipeline_mode<synchronous>, transform_indices = @transform_13, window_bounds = array<i64: 128, 32>}, {pipeline_mode = #tpu.pipeline_mode<synchronous>, transform_indices = @transform_14, window_bounds = array<i64: 1, 32>}, {transform_indices = @transform_15, window_bounds = array<i64: 1, 8, 32>}]} {
    %c0_i32 = arith.constant 0 : i32
    %0 = arith.cmpi eq, %arg1, %c0_i32 : i32
    %1 = arith.extui %0 : i1 to i32
    %c0_i32_0 = arith.constant 0 : i32
    %2 = arith.cmpi ne, %1, %c0_i32_0 : i32
    scf.if %2 {
      %c0_57 = arith.constant 0 : index
      %c0_58 = arith.constant 0 : index
      %c0_59 = arith.constant 0 : index
      %137 = vector.load %arg2[%c0_57, %c0_58, %c0_59] : memref<1x16x32xf32, #tpu.memory_space<vmem>>, vector<1x16x32xf32>
      %138 = vector.shape_cast %137 : vector<1x16x32xf32> to vector<16x32xf32>
      %c0_60 = arith.constant 0 : index
      %c0_61 = arith.constant 0 : index
      %139 = vector.load %arg3[%c0_60, %c0_61] : memref<1x32xf32, #tpu.memory_space<vmem>>, vector<1x32xf32>
      %140 = vector.shape_cast %139 : vector<1x32xf32> to vector<32xf32>
      %c0_62 = arith.constant 0 : index
      %c0_63 = arith.constant 0 : index
      %141 = vector.load %arg4[%c0_62, %c0_63] : memref<1x32xf32, #tpu.memory_space<vmem>>, vector<1x32xf32>
      %142 = vector.shape_cast %141 : vector<1x32xf32> to vector<32xf32>
      %cst_64 = arith.constant dense<0.000000e+00> : vector<16xf32>
      %143 = vector.multi_reduction <add>, %138, %cst_64 [1] : vector<16x32xf32> to vector<16xf32>
      %144 = vector.shape_cast %143 : vector<16xf32> to vector<16x1xf32>
      %cst_65 = arith.constant 3.200000e+01 : f32
      %145 = vector.broadcast %cst_65 : f32 to vector<16x1xf32>
      %146 = arith.divf %144, %145 : vector<16x1xf32>
      %147 = vector.broadcast %146 : vector<16x1xf32> to vector<16x32xf32>
      %148 = arith.subf %138, %147 : vector<16x32xf32>
      %149 = arith.mulf %148, %148 : vector<16x32xf32>
      %cst_66 = arith.constant dense<0.000000e+00> : vector<16xf32>
      %150 = vector.multi_reduction <add>, %149, %cst_66 [1] : vector<16x32xf32> to vector<16xf32>
      %151 = vector.shape_cast %150 : vector<16xf32> to vector<16x1xf32>
      %cst_67 = arith.constant 3.200000e+01 : f32
      %152 = vector.broadcast %cst_67 : f32 to vector<16x1xf32>
      %153 = arith.divf %151, %152 : vector<16x1xf32>
      %154 = vector.broadcast %146 : vector<16x1xf32> to vector<16x32xf32>
      %155 = arith.subf %138, %154 : vector<16x32xf32>
      %cst_68 = arith.constant 9.99999974E-6 : f32
      %156 = vector.broadcast %cst_68 : f32 to vector<16x1xf32>
      %157 = arith.addf %153, %156 : vector<16x1xf32>
      %158 = math.rsqrt %157 : vector<16x1xf32>
      %159 = vector.broadcast %158 : vector<16x1xf32> to vector<16x32xf32>
      %160 = arith.mulf %155, %159 : vector<16x32xf32>
      %161 = vector.shape_cast %140 : vector<32xf32> to vector<1x32xf32>
      %162 = vector.broadcast %161 : vector<1x32xf32> to vector<16x32xf32>
      %163 = arith.mulf %160, %162 : vector<16x32xf32>
      %164 = vector.shape_cast %142 : vector<32xf32> to vector<1x32xf32>
      %165 = vector.broadcast %164 : vector<1x32xf32> to vector<16x32xf32>
      %166 = arith.addf %163, %165 : vector<16x32xf32>
      %167 = arith.truncf %166 : vector<16x32xf32> to vector<16x32xbf16>
      %c0_69 = arith.constant 0 : index
      %c0_70 = arith.constant 0 : index
      %168 = vector.load %arg7[%c0_69, %c0_70] : memref<32x64xbf16, #tpu.memory_space<vmem>>, vector<32x64xbf16>
      %cst_71 = arith.constant dense<0.000000e+00> : vector<16x64xf32>
      %169 = tpu.matmul %167, %168, %cst_71 {dimension_numbers = #tpu.dot_dimension_numbers<[1], [0], [0], [1], [0, 0, 1, 1], [], []>} : vector<16x32xbf16>, vector<32x64xbf16>, vector<16x64xf32> -> vector<16x64xf32>
      %c0_72 = arith.constant 0 : index
      %c0_73 = arith.constant 0 : index
      %170 = vector.load %arg8[%c0_72, %c0_73] : memref<1x64xf32, #tpu.memory_space<vmem>>, vector<1x64xf32>
      %171 = vector.shape_cast %170 : vector<1x64xf32> to vector<64xf32>
      %172 = vector.shape_cast %171 : vector<64xf32> to vector<1x64xf32>
      %173 = vector.broadcast %172 : vector<1x64xf32> to vector<16x64xf32>
      %174 = arith.addf %169, %173 : vector<16x64xf32>
      %175 = vector.extract_strided_slice %174 {offsets = [0, 0], sizes = [16, 32], strides = [1, 1]} : vector<16x64xf32> to vector<16x32xf32>
      %176 = vector.shape_cast %175 : vector<16x32xf32> to vector<16x4x8xf32>
      %177 = tpu.transpose %176, [1, 0, 2] : vector<16x4x8xf32> -> vector<4x16x8xf32>
      %178 = arith.truncf %177 : vector<4x16x8xf32> to vector<4x16x8xbf16>
      %c0_74 = arith.constant 0 : index
      %c0_75 = arith.constant 0 : index
      %c0_76 = arith.constant 0 : index
      %179 = vector.load %arg18[%c0_74, %c0_75, %c0_76] : memref<4x16x8xbf16, #tpu.memory_space<vmem>>, vector<4x16x8xbf16>
      tpu.vector_store %arg18[%c0_74, %c0_75, %c0_76], %178 {strides = array<i32>} : memref<4x16x8xbf16, #tpu.memory_space<vmem>>, vector<4x16x8xbf16>,
      %180 = vector.extract_strided_slice %174 {offsets = [0, 32], sizes = [16, 32], strides = [1, 1]} : vector<16x64xf32> to vector<16x32xf32>
      %181 = vector.shape_cast %180 : vector<16x32xf32> to vector<16x4x8xf32>
      %182 = tpu.transpose %181, [1, 0, 2] : vector<16x4x8xf32> -> vector<4x16x8xf32>
      %183 = arith.truncf %182 : vector<4x16x8xf32> to vector<4x16x8xbf16>
      %c0_77 = arith.constant 0 : index
      %c0_78 = arith.constant 0 : index
      %c0_79 = arith.constant 0 : index
      %184 = vector.load %arg19[%c0_77, %c0_78, %c0_79] : memref<4x16x8xbf16, #tpu.memory_space<vmem>>, vector<4x16x8xbf16>
      tpu.vector_store %arg19[%c0_77, %c0_78, %c0_79], %183 {strides = array<i32>} : memref<4x16x8xbf16, #tpu.memory_space<vmem>>, vector<4x16x8xbf16>,
    } else {
    }
    %c8_i32 = arith.constant 8 : i32
    %3 = arith.muli %arg1, %c8_i32 : i32
    %4 = tpu.assume_multiple %3, 8 : i32
    %c0 = arith.constant 0 : index
    %5 = arith.index_cast %4 : i32 to index
    %c0_1 = arith.constant 0 : index
    %6 = vector.load %arg2[%c0, %5, %c0_1] : memref<1x16x32xf32, #tpu.memory_space<vmem>>, vector<1x8x32xf32>
    %7 = vector.shape_cast %6 : vector<1x8x32xf32> to vector<8x32xf32>
    %c0_2 = arith.constant 0 : index
    %c0_3 = arith.constant 0 : index
    %8 = vector.load %arg3[%c0_2, %c0_3] : memref<1x32xf32, #tpu.memory_space<vmem>>, vector<1x32xf32>
    %9 = vector.shape_cast %8 : vector<1x32xf32> to vector<32xf32>
    %c0_4 = arith.constant 0 : index
    %c0_5 = arith.constant 0 : index
    %10 = vector.load %arg4[%c0_4, %c0_5] : memref<1x32xf32, #tpu.memory_space<vmem>>, vector<1x32xf32>
    %11 = vector.shape_cast %10 : vector<1x32xf32> to vector<32xf32>
    %cst = arith.constant dense<0.000000e+00> : vector<8xf32>
    %12 = vector.multi_reduction <add>, %7, %cst [1] : vector<8x32xf32> to vector<8xf32>
    %13 = vector.shape_cast %12 : vector<8xf32> to vector<8x1xf32>
    %cst_6 = arith.constant 3.200000e+01 : f32
    %14 = vector.broadcast %cst_6 : f32 to vector<8x1xf32>
    %15 = arith.divf %13, %14 : vector<8x1xf32>
    %16 = vector.broadcast %15 : vector<8x1xf32> to vector<8x32xf32>
    %17 = arith.subf %7, %16 : vector<8x32xf32>
    %18 = arith.mulf %17, %17 : vector<8x32xf32>
    %cst_7 = arith.constant dense<0.000000e+00> : vector<8xf32>
    %19 = vector.multi_reduction <add>, %18, %cst_7 [1] : vector<8x32xf32> to vector<8xf32>
    %20 = vector.shape_cast %19 : vector<8xf32> to vector<8x1xf32>
    %cst_8 = arith.constant 3.200000e+01 : f32
    %21 = vector.broadcast %cst_8 : f32 to vector<8x1xf32>
    %22 = arith.divf %20, %21 : vector<8x1xf32>
    %23 = vector.broadcast %15 : vector<8x1xf32> to vector<8x32xf32>
    %24 = arith.subf %7, %23 : vector<8x32xf32>
    %cst_9 = arith.constant 9.99999974E-6 : f32
    %25 = vector.broadcast %cst_9 : f32 to vector<8x1xf32>
    %26 = arith.addf %22, %25 : vector<8x1xf32>
    %27 = math.rsqrt %26 : vector<8x1xf32>
    %28 = vector.broadcast %27 : vector<8x1xf32> to vector<8x32xf32>
    %29 = arith.mulf %24, %28 : vector<8x32xf32>
    %30 = vector.shape_cast %9 : vector<32xf32> to vector<1x32xf32>
    %31 = vector.broadcast %30 : vector<1x32xf32> to vector<8x32xf32>
    %32 = arith.mulf %29, %31 : vector<8x32xf32>
    %33 = vector.shape_cast %11 : vector<32xf32> to vector<1x32xf32>
    %34 = vector.broadcast %33 : vector<1x32xf32> to vector<8x32xf32>
    %35 = arith.addf %32, %34 : vector<8x32xf32>
    %36 = arith.truncf %35 : vector<8x32xf32> to vector<8x32xbf16>
    %c0_10 = arith.constant 0 : index
    %c0_11 = arith.constant 0 : index
    %37 = vector.load %arg5[%c0_10, %c0_11] : memref<32x32xbf16, #tpu.memory_space<vmem>>, vector<32x32xbf16>
    %cst_12 = arith.constant dense<0.000000e+00> : vector<8x32xf32>
    %38 = tpu.matmul %36, %37, %cst_12 {dimension_numbers = #tpu.dot_dimension_numbers<[1], [0], [0], [1], [0, 0, 1, 1], [], []>} : vector<8x32xbf16>, vector<32x32xbf16>, vector<8x32xf32> -> vector<8x32xf32>
    %c0_13 = arith.constant 0 : index
    %c0_14 = arith.constant 0 : index
    %39 = vector.load %arg6[%c0_13, %c0_14] : memref<1x32xf32, #tpu.memory_space<vmem>>, vector<1x32xf32>
    %40 = vector.shape_cast %39 : vector<1x32xf32> to vector<32xf32>
    %41 = vector.shape_cast %40 : vector<32xf32> to vector<1x32xf32>
    %42 = vector.broadcast %41 : vector<1x32xf32> to vector<8x32xf32>
    %43 = arith.addf %38, %42 : vector<8x32xf32>
    %44 = vector.shape_cast %43 : vector<8x32xf32> to vector<8x4x8xf32>
    %45 = tpu.transpose %44, [1, 0, 2] : vector<8x4x8xf32> -> vector<4x8x8xf32>
    %46 = arith.truncf %45 : vector<4x8x8xf32> to vector<4x8x8xbf16>
    %c0_15 = arith.constant 0 : index
    %c0_16 = arith.constant 0 : index
    %c0_17 = arith.constant 0 : index
    %47 = vector.load %arg18[%c0_15, %c0_16, %c0_17] : memref<4x16x8xbf16, #tpu.memory_space<vmem>>, vector<4x16x8xbf16>
    "tpu.trace_start"() <{level = 10 : i32, message = "nqd,nkd->nqk"}> : () -> ()
    %cst_18 = arith.constant dense<0.000000e+00> : vector<4x8x16xf32>
    %48 = tpu.matmul %46, %47, %cst_18 {dimension_numbers = #tpu.dot_dimension_numbers<[2], [2], [1], [1], [0, 0, 0, 1, 1, 1], [0], [0]>} : vector<4x8x8xbf16>, vector<4x16x8xbf16>, vector<4x8x16xf32> -> vector<4x8x16xf32>
    "tpu.trace_stop"() : () -> ()
    %cst_19 = arith.constant 0.353553385 : f32
    %49 = vector.broadcast %cst_19 : f32 to vector<4x8x16xf32>
    %50 = arith.mulf %48, %49 : vector<4x8x16xf32>
    %cst_20 = arith.constant dense<0xFF800000> : vector<4x8xf32>
    %51 = vector.multi_reduction <maximumf>, %50, %cst_20 [2] : vector<4x8x16xf32> to vector<4x8xf32>
    %52 = vector.shape_cast %51 : vector<4x8xf32> to vector<4x8x1xf32>
    %53 = vector.broadcast %52 : vector<4x8x1xf32> to vector<4x8x16xf32>
    %54 = arith.subf %50, %53 : vector<4x8x16xf32>
    %55 = arith.truncf %54 : vector<4x8x16xf32> to vector<4x8x16xbf16>
    %56 = math.exp %55 : vector<4x8x16xbf16>
    %57 = arith.extf %56 : vector<4x8x16xbf16> to vector<4x8x16xf32>
    %cst_21 = arith.constant dense<0.000000e+00> : vector<4x8xf32>
    %58 = vector.multi_reduction <add>, %57, %cst_21 [2] : vector<4x8x16xf32> to vector<4x8xf32>
    %59 = vector.shape_cast %58 : vector<4x8xf32> to vector<4x8x1xf32>
    %c0_22 = arith.constant 0 : index
    %c0_23 = arith.constant 0 : index
    %c0_24 = arith.constant 0 : index
    %60 = vector.load %arg19[%c0_22, %c0_23, %c0_24] : memref<4x16x8xbf16, #tpu.memory_space<vmem>>, vector<4x16x8xbf16>
    "tpu.trace_start"() <{level = 10 : i32, message = "nqk,nkd->nqd"}> : () -> ()
    %cst_25 = arith.constant dense<0.000000e+00> : vector<4x8x8xf32>
    %61 = tpu.matmul %56, %60, %cst_25 {dimension_numbers = #tpu.dot_dimension_numbers<[2], [1], [1], [2], [0, 0, 0, 1, 1, 2], [0], [0]>} : vector<4x8x16xbf16>, vector<4x16x8xbf16>, vector<4x8x8xf32> -> vector<4x8x8xf32>
    "tpu.trace_stop"() : () -> ()
    %62 = tpu.reciprocal %59 {approx = true} : vector<4x8x1xf32> -> vector<4x8x1xf32>
    %63 = vector.broadcast %62 : vector<4x8x1xf32> to vector<4x8x8xf32>
    %64 = arith.mulf %61, %63 : vector<4x8x8xf32>
    %65 = arith.truncf %64 : vector<4x8x8xf32> to vector<4x8x8xbf16>
    %66 = tpu.transpose %65, [1, 0, 2] : vector<4x8x8xbf16> -> vector<8x4x8xbf16>
    %67 = vector.shape_cast %66 : vector<8x4x8xbf16> to vector<8x32xbf16>
    %c0_26 = arith.constant 0 : index
    %c0_27 = arith.constant 0 : index
    %68 = vector.load %arg9[%c0_26, %c0_27] : memref<32x32xbf16, #tpu.memory_space<vmem>>, vector<32x32xbf16>
    %cst_28 = arith.constant dense<0.000000e+00> : vector<8x32xf32>
    %69 = tpu.matmul %67, %68, %cst_28 {dimension_numbers = #tpu.dot_dimension_numbers<[1], [0], [0], [1], [0, 0, 1, 1], [], []>} : vector<8x32xbf16>, vector<32x32xbf16>, vector<8x32xf32> -> vector<8x32xf32>
    %c0_29 = arith.constant 0 : index
    %c0_30 = arith.constant 0 : index
    %70 = vector.load %arg10[%c0_29, %c0_30] : memref<1x32xf32, #tpu.memory_space<vmem>>, vector<1x32xf32>
    %71 = vector.shape_cast %70 : vector<1x32xf32> to vector<32xf32>
    %72 = vector.shape_cast %71 : vector<32xf32> to vector<1x32xf32>
    %73 = vector.broadcast %72 : vector<1x32xf32> to vector<8x32xf32>
    %74 = arith.addf %69, %73 : vector<8x32xf32>
    %75 = arith.addf %74, %7 : vector<8x32xf32>
    %c0_31 = arith.constant 0 : index
    %c0_32 = arith.constant 0 : index
    %76 = vector.load %arg11[%c0_31, %c0_32] : memref<1x32xf32, #tpu.memory_space<vmem>>, vector<1x32xf32>
    %77 = vector.shape_cast %76 : vector<1x32xf32> to vector<32xf32>
    %c0_33 = arith.constant 0 : index
    %c0_34 = arith.constant 0 : index
    %78 = vector.load %arg12[%c0_33, %c0_34] : memref<1x32xf32, #tpu.memory_space<vmem>>, vector<1x32xf32>
    %79 = vector.shape_cast %78 : vector<1x32xf32> to vector<32xf32>
    %cst_35 = arith.constant dense<0.000000e+00> : vector<8xf32>
    %80 = vector.multi_reduction <add>, %75, %cst_35 [1] : vector<8x32xf32> to vector<8xf32>
    %81 = vector.shape_cast %80 : vector<8xf32> to vector<8x1xf32>
    %cst_36 = arith.constant 3.200000e+01 : f32
    %82 = vector.broadcast %cst_36 : f32 to vector<8x1xf32>
    %83 = arith.divf %81, %82 : vector<8x1xf32>
    %84 = vector.broadcast %83 : vector<8x1xf32> to vector<8x32xf32>
    %85 = arith.subf %75, %84 : vector<8x32xf32>
    %86 = arith.mulf %85, %85 : vector<8x32xf32>
    %cst_37 = arith.constant dense<0.000000e+00> : vector<8xf32>
    %87 = vector.multi_reduction <add>, %86, %cst_37 [1] : vector<8x32xf32> to vector<8xf32>
    %88 = vector.shape_cast %87 : vector<8xf32> to vector<8x1xf32>
    %cst_38 = arith.constant 3.200000e+01 : f32
    %89 = vector.broadcast %cst_38 : f32 to vector<8x1xf32>
    %90 = arith.divf %88, %89 : vector<8x1xf32>
    %91 = vector.broadcast %83 : vector<8x1xf32> to vector<8x32xf32>
    %92 = arith.subf %75, %91 : vector<8x32xf32>
    %cst_39 = arith.constant 9.99999974E-6 : f32
    %93 = vector.broadcast %cst_39 : f32 to vector<8x1xf32>
    %94 = arith.addf %90, %93 : vector<8x1xf32>
    %95 = math.rsqrt %94 : vector<8x1xf32>
    %96 = vector.broadcast %95 : vector<8x1xf32> to vector<8x32xf32>
    %97 = arith.mulf %92, %96 : vector<8x32xf32>
    %98 = vector.shape_cast %77 : vector<32xf32> to vector<1x32xf32>
    %99 = vector.broadcast %98 : vector<1x32xf32> to vector<8x32xf32>
    %100 = arith.mulf %97, %99 : vector<8x32xf32>
    %101 = vector.shape_cast %79 : vector<32xf32> to vector<1x32xf32>
    %102 = vector.broadcast %101 : vector<1x32xf32> to vector<8x32xf32>
    %103 = arith.addf %100, %102 : vector<8x32xf32>
    %104 = arith.truncf %103 : vector<8x32xf32> to vector<8x32xbf16>
    %c0_40 = arith.constant 0 : index
    %c0_41 = arith.constant 0 : index
    %105 = vector.load %arg13[%c0_40, %c0_41] : memref<32x128xbf16, #tpu.memory_space<vmem>>, vector<32x128xbf16>
    %cst_42 = arith.constant dense<0.000000e+00> : vector<8x128xf32>
    %106 = tpu.matmul %104, %105, %cst_42 {dimension_numbers = #tpu.dot_dimension_numbers<[1], [0], [0], [1], [0, 0, 1, 1], [], []>} : vector<8x32xbf16>, vector<32x128xbf16>, vector<8x128xf32> -> vector<8x128xf32>
    %c0_43 = arith.constant 0 : index
    %c0_44 = arith.constant 0 : index
    %107 = vector.load %arg14[%c0_43, %c0_44] : memref<1x128xf32, #tpu.memory_space<vmem>>, vector<1x128xf32>
    %108 = vector.shape_cast %107 : vector<1x128xf32> to vector<128xf32>
    %109 = vector.shape_cast %108 : vector<128xf32> to vector<1x128xf32>
    %110 = vector.broadcast %109 : vector<1x128xf32> to vector<8x128xf32>
    %111 = arith.addf %106, %110 : vector<8x128xf32>
    %112 = arith.mulf %111, %111 : vector<8x128xf32>
    %113 = arith.mulf %111, %112 : vector<8x128xf32>
    %cst_45 = arith.constant 4.471500e-02 : f32
    %114 = vector.broadcast %cst_45 : f32 to vector<8x128xf32>
    %115 = arith.mulf %114, %113 : vector<8x128xf32>
    %116 = arith.addf %111, %115 : vector<8x128xf32>
    %cst_46 = arith.constant 0.797884583 : f32
    %117 = vector.broadcast %cst_46 : f32 to vector<8x128xf32>
    %118 = arith.mulf %117, %116 : vector<8x128xf32>
    %119 = math.tanh %118 : vector<8x128xf32>
    %cst_47 = arith.constant 1.000000e+00 : f32
    %120 = vector.broadcast %cst_47 : f32 to vector<8x128xf32>
    %121 = arith.addf %120, %119 : vector<8x128xf32>
    %cst_48 = arith.constant 5.000000e-01 : f32
    %122 = vector.broadcast %cst_48 : f32 to vector<8x128xf32>
    %123 = arith.mulf %122, %121 : vector<8x128xf32>
    %124 = arith.mulf %111, %123 : vector<8x128xf32>
    %125 = arith.truncf %124 : vector<8x128xf32> to vector<8x128xbf16>
    %c0_49 = arith.constant 0 : index
    %c0_50 = arith.constant 0 : index
    %126 = vector.load %arg15[%c0_49, %c0_50] : memref<128x32xbf16, #tpu.memory_space<vmem>>, vector<128x32xbf16>
    %cst_51 = arith.constant dense<0.000000e+00> : vector<8x32xf32>
    %127 = tpu.matmul %125, %126, %cst_51 {dimension_numbers = #tpu.dot_dimension_numbers<[1], [0], [0], [1], [0, 0, 1, 1], [], []>} : vector<8x128xbf16>, vector<128x32xbf16>, vector<8x32xf32> -> vector<8x32xf32>
    %c0_52 = arith.constant 0 : index
    %c0_53 = arith.constant 0 : index
    %128 = vector.load %arg16[%c0_52, %c0_53] : memref<1x32xf32, #tpu.memory_space<vmem>>, vector<1x32xf32>
    %129 = vector.shape_cast %128 : vector<1x32xf32> to vector<32xf32>
    %130 = vector.shape_cast %129 : vector<32xf32> to vector<1x32xf32>
    %131 = vector.broadcast %130 : vector<1x32xf32> to vector<8x32xf32>
    %132 = arith.addf %127, %131 : vector<8x32xf32>
    %133 = arith.addf %132, %75 : vector<8x32xf32>
    %c0_54 = arith.constant 0 : index
    %c0_55 = arith.constant 0 : index
    %c0_56 = arith.constant 0 : index
    %134 = vector.load %arg17[%c0_54, %c0_55, %c0_56] : memref<1x8x32xf32, #tpu.memory_space<vmem>>, vector<1x8x32xf32>
    %135 = vector.shape_cast %134 : vector<1x8x32xf32> to vector<8x32xf32>
    %136 = vector.shape_cast %133 : vector<8x32xf32> to vector<1x8x32xf32>
    tpu.vector_store %arg17[%c0_54, %c0_55, %c0_56], %136 {strides = array<i32>} : memref<1x8x32xf32, #tpu.memory_space<vmem>>, vector<1x8x32xf32>,
    return
  }
  func.func @transform_0(%arg0: i32, %arg1: i32) -> (i32, i32, i32) {
    %c0_i32 = arith.constant 0 : i32
    %c0_i32_0 = arith.constant 0 : i32
    %c0_i32_1 = arith.constant 0 : i32
    return %arg0, %c0_i32, %c0_i32_0 : i32, i32, i32
  }
  func.func @transform_1(%arg0: i32, %arg1: i32) -> (i32, i32) {
    %c0_i32 = arith.constant 0 : i32
    %c0_i32_0 = arith.constant 0 : i32
    %c0_i32_1 = arith.constant 0 : i32
    return %c0_i32, %c0_i32_0 : i32, i32
  }
  func.func @transform_2(%arg0: i32, %arg1: i32) -> (i32, i32) {
    %c0_i32 = arith.constant 0 : i32
    %c0_i32_0 = arith.constant 0 : i32
    %c0_i32_1 = arith.constant 0 : i32
    return %c0_i32, %c0_i32_0 : i32, i32
  }
  func.func @transform_3(%arg0: i32, %arg1: i32) -> (i32, i32) {
    %c0_i32 = arith.constant 0 : i32
    %c0_i32_0 = arith.constant 0 : i32
    %c0_i32_1 = arith.constant 0 : i32
    return %c0_i32, %c0_i32_0 : i32, i32
  }
  func.func @transform_4(%arg0: i32, %arg1: i32) -> (i32, i32) {
    %c0_i32 = arith.constant 0 : i32
    %c0_i32_0 = arith.constant 0 : i32
    %c0_i32_1 = arith.constant 0 : i32
    return %c0_i32, %c0_i32_0 : i32, i32
  }
  func.func @transform_5(%arg0: i32, %arg1: i32) -> (i32, i32) {
    %c0_i32 = arith.constant 0 : i32
    %c0_i32_0 = arith.constant 0 : i32
    %c0_i32_1 = arith.constant 0 : i32
    return %c0_i32, %c0_i32_0 : i32, i32
  }
  func.func @transform_6(%arg0: i32, %arg1: i32) -> (i32, i32) {
    %c0_i32 = arith.constant 0 : i32
    %c0_i32_0 = arith.constant 0 : i32
    %c0_i32_1 = arith.constant 0 : i32
    return %c0_i32, %c0_i32_0 : i32, i32
  }
  func.func @transform_7(%arg0: i32, %arg1: i32) -> (i32, i32) {
    %c0_i32 = arith.constant 0 : i32
    %c0_i32_0 = arith.constant 0 : i32
    %c0_i32_1 = arith.constant 0 : i32
    return %c0_i32, %c0_i32_0 : i32, i32
  }
  func.func @transform_8(%arg0: i32, %arg1: i32) -> (i32, i32) {
    %c0_i32 = arith.constant 0 : i32
    %c0_i32_0 = arith.constant 0 : i32
    %c0_i32_1 = arith.constant 0 : i32
    return %c0_i32, %c0_i32_0 : i32, i32
  }
  func.func @transform_9(%arg0: i32, %arg1: i32) -> (i32, i32) {
    %c0_i32 = arith.constant 0 : i32
    %c0_i32_0 = arith.constant 0 : i32
    %c0_i32_1 = arith.constant 0 : i32
    return %c0_i32, %c0_i32_0 : i32, i32
  }
  func.func @transform_10(%arg0: i32, %arg1: i32) -> (i32, i32) {
    %c0_i32 = arith.constant 0 : i32
    %c0_i32_0 = arith.constant 0 : i32
    %c0_i32_1 = arith.constant 0 : i32
    return %c0_i32, %c0_i32_0 : i32, i32
  }
  func.func @transform_11(%arg0: i32, %arg1: i32) -> (i32, i32) {
    %c0_i32 = arith.constant 0 : i32
    %c0_i32_0 = arith.constant 0 : i32
    %c0_i32_1 = arith.constant 0 : i32
    return %c0_i32, %c0_i32_0 : i32, i32
  }
  func.func @transform_12(%arg0: i32, %arg1: i32) -> (i32, i32) {
    %c0_i32 = arith.constant 0 : i32
    %c0_i32_0 = arith.constant 0 : i32
    %c0_i32_1 = arith.constant 0 : i32
    return %c0_i32, %c0_i32_0 : i32, i32
  }
  func.func @transform_13(%arg0: i32, %arg1: i32) -> (i32, i32) {
    %c0_i32 = arith.constant 0 : i32
    %c0_i32_0 = arith.constant 0 : i32
    %c0_i32_1 = arith.constant 0 : i32
    return %c0_i32, %c0_i32_0 : i32, i32
  }
  func.func @transform_14(%arg0: i32, %arg1: i32) -> (i32, i32) {
    %c0_i32 = arith.constant 0 : i32
    %c0_i32_0 = arith.constant 0 : i32
    %c0_i32_1 = arith.constant 0 : i32
    return %c0_i32, %c0_i32_0 : i32, i32
  }
  func.func @transform_15(%arg0: i32, %arg1: i32) -> (i32, i32, i32) {
    %c0_i32 = arith.constant 0 : i32
    %c0_i32_0 = arith.constant 0 : i32
    return %arg0, %arg1, %c0_i32 : i32, i32, i32
  }
}

module attributes {stable_mosaic.version = 11 : i64} {
  func.func @transformer_block_kernel(%arg0: i32, %arg1: i32, %arg2: memref<1x16x32xf32, #tpu.memory_space<vmem>>, %arg3: memref<1x32xf32, #tpu.memory_space<vmem>>, %arg4: memref<1x32xf32, #tpu.memory_space<vmem>>, %arg5: memref<32x32xbf16, #tpu.memory_space<vmem>>, %arg6: memref<1x32xf32, #tpu.memory_space<vmem>>, %arg7: memref<32x64xbf16, #tpu.memory_space<vmem>>, %arg8: memref<1x64xf32, #tpu.memory_space<vmem>>, %arg9: memref<32x32xbf16, #tpu.memory_space<vmem>>, %arg10: memref<1x32xf32, #tpu.memory_space<vmem>>, %arg11: memref<1x32xf32, #tpu.memory_space<vmem>>, %arg12: memref<1x32xf32, #tpu.memory_space<vmem>>, %arg13: memref<32x128xbf16, #tpu.memory_space<vmem>>, %arg14: memref<1x128xf32, #tpu.memory_space<vmem>>, %arg15: memref<128x32xbf16, #tpu.memory_space<vmem>>, %arg16: memref<1x32xf32, #tpu.memory_space<vmem>>, %arg17: memref<1x8x32xf32, #tpu.memory_space<vmem>>, %arg18: memref<4x16x8xbf16, #tpu.memory_space<vmem>>, %arg19: memref<4x16x8xbf16, #tpu.memory_space<vmem>>) attributes {dimension_semantics = [#tpu.dimension_semantics<parallel>, #tpu.dimension_semantics<arbitrary>], iteration_bounds = array<i64: 2, 2>, scalar_prefetch = 0 : i64, scratch_operands = 2 : i64, tpu.core_type = #tpu.core_type<tc>, window_params = [{transform_indices = @transform_0, window_bounds = array<i64: 1, 16, 32>}, {pipeline_mode = #tpu.pipeline_mode<synchronous>, transform_indices = @transform_1, window_bounds = array<i64: 1, 32>}, {pipeline_mode = #tpu.pipeline_mode<synchronous>, transform_indices = @transform_2, window_bounds = array<i64: 1, 32>}, {pipeline_mode = #tpu.pipeline_mode<synchronous>, transform_indices = @transform_3, window_bounds = array<i64: 32, 32>}, {pipeline_mode = #tpu.pipeline_mode<synchronous>, transform_indices = @transform_4, window_bounds = array<i64: 1, 32>}, {pipeline_mode = #tpu.pipeline_mode<synchronous>, transform_indices = @transform_5, window_bounds = array<i64: 32, 64>}, {pipeline_mode = #tpu.pipeline_mode<synchronous>, transform_indices = @transform_6, window_bounds = array<i64: 1, 64>}, {pipeline_mode = #tpu.pipeline_mode<synchronous>, transform_indices = @transform_7, window_bounds = array<i64: 32, 32>}, {pipeline_mode = #tpu.pipeline_mode<synchronous>, transform_indices = @transform_8, window_bounds = array<i64: 1, 32>}, {pipeline_mode = #tpu.pipeline_mode<synchronous>, transform_indices = @transform_9, window_bounds = array<i64: 1, 32>}, {pipeline_mode = #tpu.pipeline_mode<synchronous>, transform_indices = @transform_10, window_bounds = array<i64: 1, 32>}, {pipeline_mode = #tpu.pipeline_mode<synchronous>, transform_indices = @transform_11, window_bounds = array<i64: 32, 128>}, {pipeline_mode = #tpu.pipeline_mode<synchronous>, transform_indices = @transform_12, window_bounds = array<i64: 1, 128>}, {pipeline_mode = #tpu.pipeline_mode<synchronous>, transform_indices = @transform_13, window_bounds = array<i64: 128, 32>}, {pipeline_mode = #tpu.pipeline_mode<synchronous>, transform_indices = @transform_14, window_bounds = array<i64: 1, 32>}, {transform_indices = @transform_15, window_bounds = array<i64: 1, 8, 32>}]} {
    %c0_i32 = arith.constant 0 : i32
    %0 = arith.cmpi eq, %arg1, %c0_i32 : i32
    %1 = arith.extui %0 : i1 to i32
    %c0_i32_0 = arith.constant 0 : i32
    %2 = arith.cmpi ne, %1, %c0_i32_0 : i32
    scf.if %2 {
      %c0_57 = arith.constant 0 : index
      %c0_58 = arith.constant 0 : index
      %c0_59 = arith.constant 0 : index
      %137 = vector.load %arg2[%c0_57, %c0_58, %c0_59] : memref<1x16x32xf32, #tpu.memory_space<vmem>>, vector<1x16x32xf32>
      %138 = vector.shape_cast %137 : vector<1x16x32xf32> to vector<16x32xf32>
      %c0_60 = arith.constant 0 : index
      %c0_61 = arith.constant 0 : index
      %139 = vector.load %arg3[%c0_60, %c0_61] : memref<1x32xf32, #tpu.memory_space<vmem>>, vector<1x32xf32>
      %140 = vector.shape_cast %139 : vector<1x32xf32> to vector<32xf32>
      %c0_62 = arith.constant 0 : index
      %c0_63 = arith.constant 0 : index
      %141 = vector.load %arg4[%c0_62, %c0_63] : memref<1x32xf32, #tpu.memory_space<vmem>>, vector<1x32xf32>
      %142 = vector.shape_cast %141 : vector<1x32xf32> to vector<32xf32>
      %cst_64 = arith.constant dense<0.000000e+00> : vector<16xf32>
      %143 = vector.multi_reduction <add>, %138, %cst_64 [1] : vector<16x32xf32> to vector<16xf32>
      %144 = vector.shape_cast %143 : vector<16xf32> to vector<16x1xf32>
      %cst_65 = arith.constant 3.200000e+01 : f32
      %145 = vector.broadcast %cst_65 : f32 to vector<16x1xf32>
      %146 = arith.divf %144, %145 : vector<16x1xf32>
      %147 = vector.broadcast %146 : vector<16x1xf32> to vector<16x32xf32>
      %148 = arith.subf %138, %147 : vector<16x32xf32>
      %149 = arith.mulf %148, %148 : vector<16x32xf32>
      %cst_66 = arith.constant dense<0.000000e+00> : vector<16xf32>
      %150 = vector.multi_reduction <add>, %149, %cst_66 [1] : vector<16x32xf32> to vector<16xf32>
      %151 = vector.shape_cast %150 : vector<16xf32> to vector<16x1xf32>
      %cst_67 = arith.constant 3.200000e+01 : f32
      %152 = vector.broadcast %cst_67 : f32 to vector<16x1xf32>
      %153 = arith.divf %151, %152 : vector<16x1xf32>
      %154 = vector.broadcast %146 : vector<16x1xf32> to vector<16x32xf32>
      %155 = arith.subf %138, %154 : vector<16x32xf32>
      %cst_68 = arith.constant 9.99999974E-6 : f32
      %156 = vector.broadcast %cst_68 : f32 to vector<16x1xf32>
      %157 = arith.addf %153, %156 : vector<16x1xf32>
      %158 = math.rsqrt %157 : vector<16x1xf32>
      %159 = vector.broadcast %158 : vector<16x1xf32> to vector<16x32xf32>
      %160 = arith.mulf %155, %159 : vector<16x32xf32>
      %161 = vector.shape_cast %140 : vector<32xf32> to vector<1x32xf32>
      %162 = vector.broadcast %161 : vector<1x32xf32> to vector<16x32xf32>
      %163 = arith.mulf %160, %162 : vector<16x32xf32>
      %164 = vector.shape_cast %142 : vector<32xf32> to vector<1x32xf32>
      %165 = vector.broadcast %164 : vector<1x32xf32> to vector<16x32xf32>
      %166 = arith.addf %163, %165 : vector<16x32xf32>
      %167 = arith.truncf %166 : vector<16x32xf32> to vector<16x32xbf16>
      %c0_69 = arith.constant 0 : index
      %c0_70 = arith.constant 0 : index
      %168 = vector.load %arg7[%c0_69, %c0_70] : memref<32x64xbf16, #tpu.memory_space<vmem>>, vector<32x64xbf16>
      %cst_71 = arith.constant dense<0.000000e+00> : vector<16x64xf32>
      %169 = tpu.matmul %167, %168, %cst_71 {dimension_numbers = #tpu.dot_dimension_numbers<[1], [0], [0], [1], [0, 0, 1, 1], [], []>} : vector<16x32xbf16>, vector<32x64xbf16>, vector<16x64xf32> -> vector<16x64xf32>
      %c0_72 = arith.constant 0 : index
      %c0_73 = arith.constant 0 : index
      %170 = vector.load %arg8[%c0_72, %c0_73] : memref<1x64xf32, #tpu.memory_space<vmem>>, vector<1x64xf32>
      %171 = vector.shape_cast %170 : vector<1x64xf32> to vector<64xf32>
      %172 = vector.shape_cast %171 : vector<64xf32> to vector<1x64xf32>
      %173 = vector.broadcast %172 : vector<1x64xf32> to vector<16x64xf32>
      %174 = arith.addf %169, %173 : vector<16x64xf32>
      %175 = vector.extract_strided_slice %174 {offsets = [0, 0], sizes = [16, 32], strides = [1, 1]} : vector<16x64xf32> to vector<16x32xf32>
      %176 = vector.shape_cast %175 : vector<16x32xf32> to vector<16x4x8xf32>
      %177 = tpu.transpose %176, [1, 0, 2] : vector<16x4x8xf32> -> vector<4x16x8xf32>
      %178 = arith.truncf %177 : vector<4x16x8xf32> to vector<4x16x8xbf16>
      %c0_74 = arith.constant 0 : index
      %c0_75 = arith.constant 0 : index
      %c0_76 = arith.constant 0 : index
      %179 = vector.load %arg18[%c0_74, %c0_75, %c0_76] : memref<4x16x8xbf16, #tpu.memory_space<vmem>>, vector<4x16x8xbf16>
      tpu.vector_store %arg18[%c0_74, %c0_75, %c0_76], %178 {strides = array<i32>} : memref<4x16x8xbf16, #tpu.memory_space<vmem>>, vector<4x16x8xbf16>,
      %180 = vector.extract_strided_slice %174 {offsets = [0, 32], sizes = [16, 32], strides = [1, 1]} : vector<16x64xf32> to vector<16x32xf32>
      %181 = vector.shape_cast %180 : vector<16x32xf32> to vector<16x4x8xf32>
      %182 = tpu.transpose %181, [1, 0, 2] : vector<16x4x8xf32> -> vector<4x16x8xf32>
      %183 = arith.truncf %182 : vector<4x16x8xf32> to vector<4x16x8xbf16>
      %c0_77 = arith.constant 0 : index
      %c0_78 = arith.constant 0 : index
      %c0_79 = arith.constant 0 : index
      %184 = vector.load %arg19[%c0_77, %c0_78, %c0_79] : memref<4x16x8xbf16, #tpu.memory_space<vmem>>, vector<4x16x8xbf16>
      tpu.vector_store %arg19[%c0_77, %c0_78, %c0_79], %183 {strides = array<i32>} : memref<4x16x8xbf16, #tpu.memory_space<vmem>>, vector<4x16x8xbf16>,
    } else {
    }
    %c8_i32 = arith.constant 8 : i32
    %3 = arith.muli %arg1, %c8_i32 : i32
    %4 = tpu.assume_multiple %3, 8 : i32
    %c0 = arith.constant 0 : index
    %5 = arith.index_cast %4 : i32 to index
    %c0_1 = arith.constant 0 : index
    %6 = vector.load %arg2[%c0, %5, %c0_1] : memref<1x16x32xf32, #tpu.memory_space<vmem>>, vector<1x8x32xf32>
    %7 = vector.shape_cast %6 : vector<1x8x32xf32> to vector<8x32xf32>
    %c0_2 = arith.constant 0 : index
    %c0_3 = arith.constant 0 : index
    %8 = vector.load %arg3[%c0_2, %c0_3] : memref<1x32xf32, #tpu.memory_space<vmem>>, vector<1x32xf32>
    %9 = vector.shape_cast %8 : vector<1x32xf32> to vector<32xf32>
    %c0_4 = arith.constant 0 : index
    %c0_5 = arith.constant 0 : index
    %10 = vector.load %arg4[%c0_4, %c0_5] : memref<1x32xf32, #tpu.memory_space<vmem>>, vector<1x32xf32>
    %11 = vector.shape_cast %10 : vector<1x32xf32> to vector<32xf32>
    %cst = arith.constant dense<0.000000e+00> : vector<8xf32>
    %12 = vector.multi_reduction <add>, %7, %cst [1] : vector<8x32xf32> to vector<8xf32>
    %13 = vector.shape_cast %12 : vector<8xf32> to vector<8x1xf32>
    %cst_6 = arith.constant 3.200000e+01 : f32
    %14 = vector.broadcast %cst_6 : f32 to vector<8x1xf32>
    %15 = arith.divf %13, %14 : vector<8x1xf32>
    %16 = vector.broadcast %15 : vector<8x1xf32> to vector<8x32xf32>
    %17 = arith.subf %7, %16 : vector<8x32xf32>
    %18 = arith.mulf %17, %17 : vector<8x32xf32>
    %cst_7 = arith.constant dense<0.000000e+00> : vector<8xf32>
    %19 = vector.multi_reduction <add>, %18, %cst_7 [1] : vector<8x32xf32> to vector<8xf32>
    %20 = vector.shape_cast %19 : vector<8xf32> to vector<8x1xf32>
    %cst_8 = arith.constant 3.200000e+01 : f32
    %21 = vector.broadcast %cst_8 : f32 to vector<8x1xf32>
    %22 = arith.divf %20, %21 : vector<8x1xf32>
    %23 = vector.broadcast %15 : vector<8x1xf32> to vector<8x32xf32>
    %24 = arith.subf %7, %23 : vector<8x32xf32>
    %cst_9 = arith.constant 9.99999974E-6 : f32
    %25 = vector.broadcast %cst_9 : f32 to vector<8x1xf32>
    %26 = arith.addf %22, %25 : vector<8x1xf32>
    %27 = math.rsqrt %26 : vector<8x1xf32>
    %28 = vector.broadcast %27 : vector<8x1xf32> to vector<8x32xf32>
    %29 = arith.mulf %24, %28 : vector<8x32xf32>
    %30 = vector.shape_cast %9 : vector<32xf32> to vector<1x32xf32>
    %31 = vector.broadcast %30 : vector<1x32xf32> to vector<8x32xf32>
    %32 = arith.mulf %29, %31 : vector<8x32xf32>
    %33 = vector.shape_cast %11 : vector<32xf32> to vector<1x32xf32>
    %34 = vector.broadcast %33 : vector<1x32xf32> to vector<8x32xf32>
    %35 = arith.addf %32, %34 : vector<8x32xf32>
    %36 = arith.truncf %35 : vector<8x32xf32> to vector<8x32xbf16>
    %c0_10 = arith.constant 0 : index
    %c0_11 = arith.constant 0 : index
    %37 = vector.load %arg5[%c0_10, %c0_11] : memref<32x32xbf16, #tpu.memory_space<vmem>>, vector<32x32xbf16>
    %cst_12 = arith.constant dense<0.000000e+00> : vector<8x32xf32>
    %38 = tpu.matmul %36, %37, %cst_12 {dimension_numbers = #tpu.dot_dimension_numbers<[1], [0], [0], [1], [0, 0, 1, 1], [], []>} : vector<8x32xbf16>, vector<32x32xbf16>, vector<8x32xf32> -> vector<8x32xf32>
    %c0_13 = arith.constant 0 : index
    %c0_14 = arith.constant 0 : index
    %39 = vector.load %arg6[%c0_13, %c0_14] : memref<1x32xf32, #tpu.memory_space<vmem>>, vector<1x32xf32>
    %40 = vector.shape_cast %39 : vector<1x32xf32> to vector<32xf32>
    %41 = vector.shape_cast %40 : vector<32xf32> to vector<1x32xf32>
    %42 = vector.broadcast %41 : vector<1x32xf32> to vector<8x32xf32>
    %43 = arith.addf %38, %42 : vector<8x32xf32>
    %44 = vector.shape_cast %43 : vector<8x32xf32> to vector<8x4x8xf32>
    %45 = tpu.transpose %44, [1, 0, 2] : vector<8x4x8xf32> -> vector<4x8x8xf32>
    %46 = arith.truncf %45 : vector<4x8x8xf32> to vector<4x8x8xbf16>
    %c0_15 = arith.constant 0 : index
    %c0_16 = arith.constant 0 : index
    %c0_17 = arith.constant 0 : index
    %47 = vector.load %arg18[%c0_15, %c0_16, %c0_17] : memref<4x16x8xbf16, #tpu.memory_space<vmem>>, vector<4x16x8xbf16>
    "tpu.trace_start"() <{level = 10 : i32, message = "nqd,nkd->nqk"}> : () -> ()
    %cst_18 = arith.constant dense<0.000000e+00> : vector<4x8x16xf32>
    %48 = tpu.matmul %46, %47, %cst_18 {dimension_numbers = #tpu.dot_dimension_numbers<[2], [2], [1], [1], [0, 0, 0, 1, 1, 1], [0], [0]>} : vector<4x8x8xbf16>, vector<4x16x8xbf16>, vector<4x8x16xf32> -> vector<4x8x16xf32>
    "tpu.trace_stop"() : () -> ()
    %cst_19 = arith.constant 0.353553385 : f32
    %49 = vector.broadcast %cst_19 : f32 to vector<4x8x16xf32>
    %50 = arith.mulf %48, %49 : vector<4x8x16xf32>
    %cst_20 = arith.constant dense<0xFF800000> : vector<4x8xf32>
    %51 = vector.multi_reduction <maximumf>, %50, %cst_20 [2] : vector<4x8x16xf32> to vector<4x8xf32>
    %52 = vector.shape_cast %51 : vector<4x8xf32> to vector<4x8x1xf32>
    %53 = vector.broadcast %52 : vector<4x8x1xf32> to vector<4x8x16xf32>
    %54 = arith.subf %50, %53 : vector<4x8x16xf32>
    %55 = arith.truncf %54 : vector<4x8x16xf32> to vector<4x8x16xbf16>
    %56 = math.exp %55 : vector<4x8x16xbf16>
    %57 = arith.extf %56 : vector<4x8x16xbf16> to vector<4x8x16xf32>
    %cst_21 = arith.constant dense<0.000000e+00> : vector<4x8xf32>
    %58 = vector.multi_reduction <add>, %57, %cst_21 [2] : vector<4x8x16xf32> to vector<4x8xf32>
    %59 = vector.shape_cast %58 : vector<4x8xf32> to vector<4x8x1xf32>
    %c0_22 = arith.constant 0 : index
    %c0_23 = arith.constant 0 : index
    %c0_24 = arith.constant 0 : index
    %60 = vector.load %arg19[%c0_22, %c0_23, %c0_24] : memref<4x16x8xbf16, #tpu.memory_space<vmem>>, vector<4x16x8xbf16>
    "tpu.trace_start"() <{level = 10 : i32, message = "nqk,nkd->nqd"}> : () -> ()
    %cst_25 = arith.constant dense<0.000000e+00> : vector<4x8x8xf32>
    %61 = tpu.matmul %56, %60, %cst_25 {dimension_numbers = #tpu.dot_dimension_numbers<[2], [1], [1], [2], [0, 0, 0, 1, 1, 2], [0], [0]>} : vector<4x8x16xbf16>, vector<4x16x8xbf16>, vector<4x8x8xf32> -> vector<4x8x8xf32>
    "tpu.trace_stop"() : () -> ()
    %62 = tpu.reciprocal %59 {approx = true} : vector<4x8x1xf32> -> vector<4x8x1xf32>
    %63 = vector.broadcast %62 : vector<4x8x1xf32> to vector<4x8x8xf32>
    %64 = arith.mulf %61, %63 : vector<4x8x8xf32>
    %65 = arith.truncf %64 : vector<4x8x8xf32> to vector<4x8x8xbf16>
    %66 = tpu.transpose %65, [1, 0, 2] : vector<4x8x8xbf16> -> vector<8x4x8xbf16>
    %67 = vector.shape_cast %66 : vector<8x4x8xbf16> to vector<8x32xbf16>
    %c0_26 = arith.constant 0 : index
    %c0_27 = arith.constant 0 : index
    %68 = vector.load %arg9[%c0_26, %c0_27] : memref<32x32xbf16, #tpu.memory_space<vmem>>, vector<32x32xbf16>
    %cst_28 = arith.constant dense<0.000000e+00> : vector<8x32xf32>
    %69 = tpu.matmul %67, %68, %cst_28 {dimension_numbers = #tpu.dot_dimension_numbers<[1], [0], [0], [1], [0, 0, 1, 1], [], []>} : vector<8x32xbf16>, vector<32x32xbf16>, vector<8x32xf32> -> vector<8x32xf32>
    %c0_29 = arith.constant 0 : index
    %c0_30 = arith.constant 0 : index
    %70 = vector.load %arg10[%c0_29, %c0_30] : memref<1x32xf32, #tpu.memory_space<vmem>>, vector<1x32xf32>
    %71 = vector.shape_cast %70 : vector<1x32xf32> to vector<32xf32>
    %72 = vector.shape_cast %71 : vector<32xf32> to vector<1x32xf32>
    %73 = vector.broadcast %72 : vector<1x32xf32> to vector<8x32xf32>
    %74 = arith.addf %69, %73 : vector<8x32xf32>
    %75 = arith.addf %74, %7 : vector<8x32xf32>
    %c0_31 = arith.constant 0 : index
    %c0_32 = arith.constant 0 : index
    %76 = vector.load %arg11[%c0_31, %c0_32] : memref<1x32xf32, #tpu.memory_space<vmem>>, vector<1x32xf32>
    %77 = vector.shape_cast %76 : vector<1x32xf32> to vector<32xf32>
    %c0_33 = arith.constant 0 : index
    %c0_34 = arith.constant 0 : index
    %78 = vector.load %arg12[%c0_33, %c0_34] : memref<1x32xf32, #tpu.memory_space<vmem>>, vector<1x32xf32>
    %79 = vector.shape_cast %78 : vector<1x32xf32> to vector<32xf32>
    %cst_35 = arith.constant dense<0.000000e+00> : vector<8xf32>
    %80 = vector.multi_reduction <add>, %75, %cst_35 [1] : vector<8x32xf32> to vector<8xf32>
    %81 = vector.shape_cast %80 : vector<8xf32> to vector<8x1xf32>
    %cst_36 = arith.constant 3.200000e+01 : f32
    %82 = vector.broadcast %cst_36 : f32 to vector<8x1xf32>
    %83 = arith.divf %81, %82 : vector<8x1xf32>
    %84 = vector.broadcast %83 : vector<8x1xf32> to vector<8x32xf32>
    %85 = arith.subf %75, %84 : vector<8x32xf32>
    %86 = arith.mulf %85, %85 : vector<8x32xf32>
    %cst_37 = arith.constant dense<0.000000e+00> : vector<8xf32>
    %87 = vector.multi_reduction <add>, %86, %cst_37 [1] : vector<8x32xf32> to vector<8xf32>
    %88 = vector.shape_cast %87 : vector<8xf32> to vector<8x1xf32>
    %cst_38 = arith.constant 3.200000e+01 : f32
    %89 = vector.broadcast %cst_38 : f32 to vector<8x1xf32>
    %90 = arith.divf %88, %89 : vector<8x1xf32>
    %91 = vector.broadcast %83 : vector<8x1xf32> to vector<8x32xf32>
    %92 = arith.subf %75, %91 : vector<8x32xf32>
    %cst_39 = arith.constant 9.99999974E-6 : f32
    %93 = vector.broadcast %cst_39 : f32 to vector<8x1xf32>
    %94 = arith.addf %90, %93 : vector<8x1xf32>
    %95 = math.rsqrt %94 : vector<8x1xf32>
    %96 = vector.broadcast %95 : vector<8x1xf32> to vector<8x32xf32>
    %97 = arith.mulf %92, %96 : vector<8x32xf32>
    %98 = vector.shape_cast %77 : vector<32xf32> to vector<1x32xf32>
    %99 = vector.broadcast %98 : vector<1x32xf32> to vector<8x32xf32>
    %100 = arith.mulf %97, %99 : vector<8x32xf32>
    %101 = vector.shape_cast %79 : vector<32xf32> to vector<1x32xf32>
    %102 = vector.broadcast %101 : vector<1x32xf32> to vector<8x32xf32>
    %103 = arith.addf %100, %102 : vector<8x32xf32>
    %104 = arith.truncf %103 : vector<8x32xf32> to vector<8x32xbf16>
    %c0_40 = arith.constant 0 : index
    %c0_41 = arith.constant 0 : index
    %105 = vector.load %arg13[%c0_40, %c0_41] : memref<32x128xbf16, #tpu.memory_space<vmem>>, vector<32x128xbf16>
    %cst_42 = arith.constant dense<0.000000e+00> : vector<8x128xf32>
    %106 = tpu.matmul %104, %105, %cst_42 {dimension_numbers = #tpu.dot_dimension_numbers<[1], [0], [0], [1], [0, 0, 1, 1], [], []>} : vector<8x32xbf16>, vector<32x128xbf16>, vector<8x128xf32> -> vector<8x128xf32>
    %c0_43 = arith.constant 0 : index
    %c0_44 = arith.constant 0 : index
    %107 = vector.load %arg14[%c0_43, %c0_44] : memref<1x128xf32, #tpu.memory_space<vmem>>, vector<1x128xf32>
    %108 = vector.shape_cast %107 : vector<1x128xf32> to vector<128xf32>
    %109 = vector.shape_cast %108 : vector<128xf32> to vector<1x128xf32>
    %110 = vector.broadcast %109 : vector<1x128xf32> to vector<8x128xf32>
    %111 = arith.addf %106, %110 : vector<8x128xf32>
    %112 = arith.mulf %111, %111 : vector<8x128xf32>
    %113 = arith.mulf %111, %112 : vector<8x128xf32>
    %cst_45 = arith.constant 4.471500e-02 : f32
    %114 = vector.broadcast %cst_45 : f32 to vector<8x128xf32>
    %115 = arith.mulf %114, %113 : vector<8x128xf32>
    %116 = arith.addf %111, %115 : vector<8x128xf32>
    %cst_46 = arith.constant 0.797884583 : f32
    %117 = vector.broadcast %cst_46 : f32 to vector<8x128xf32>
    %118 = arith.mulf %117, %116 : vector<8x128xf32>
    %119 = math.tanh %118 : vector<8x128xf32>
    %cst_47 = arith.constant 1.000000e+00 : f32
    %120 = vector.broadcast %cst_47 : f32 to vector<8x128xf32>
    %121 = arith.addf %120, %119 : vector<8x128xf32>
    %cst_48 = arith.constant 5.000000e-01 : f32
    %122 = vector.broadcast %cst_48 : f32 to vector<8x128xf32>
    %123 = arith.mulf %122, %121 : vector<8x128xf32>
    %124 = arith.mulf %111, %123 : vector<8x128xf32>
    %125 = arith.truncf %124 : vector<8x128xf32> to vector<8x128xbf16>
    %c0_49 = arith.constant 0 : index
    %c0_50 = arith.constant 0 : index
    %126 = vector.load %arg15[%c0_49, %c0_50] : memref<128x32xbf16, #tpu.memory_space<vmem>>, vector<128x32xbf16>
    %cst_51 = arith.constant dense<0.000000e+00> : vector<8x32xf32>
    %127 = tpu.matmul %125, %126, %cst_51 {dimension_numbers = #tpu.dot_dimension_numbers<[1], [0], [0], [1], [0, 0, 1, 1], [], []>} : vector<8x128xbf16>, vector<128x32xbf16>, vector<8x32xf32> -> vector<8x32xf32>
    %c0_52 = arith.constant 0 : index
    %c0_53 = arith.constant 0 : index
    %128 = vector.load %arg16[%c0_52, %c0_53] : memref<1x32xf32, #tpu.memory_space<vmem>>, vector<1x32xf32>
    %129 = vector.shape_cast %128 : vector<1x32xf32> to vector<32xf32>
    %130 = vector.shape_cast %129 : vector<32xf32> to vector<1x32xf32>
    %131 = vector.broadcast %130 : vector<1x32xf32> to vector<8x32xf32>
    %132 = arith.addf %127, %131 : vector<8x32xf32>
    %133 = arith.addf %132, %75 : vector<8x32xf32>
    %c0_54 = arith.constant 0 : index
    %c0_55 = arith.constant 0 : index
    %c0_56 = arith.constant 0 : index
    %134 = vector.load %arg17[%c0_54, %c0_55, %c0_56] : memref<1x8x32xf32, #tpu.memory_space<vmem>>, vector<1x8x32xf32>
    %135 = vector.shape_cast %134 : vector<1x8x32xf32> to vector<8x32xf32>
    %136 = vector.shape_cast %133 : vector<8x32xf32> to vector<1x8x32xf32>
    tpu.vector_store %arg17[%c0_54, %c0_55, %c0_56], %136 {strides = array<i32>} : memref<1x8x32xf32, #tpu.memory_space<vmem>>, vector<1x8x32xf32>,
    return
  }
  func.func @transform_0(%arg0: i32, %arg1: i32) -> (i32, i32, i32) {
    %c0_i32 = arith.constant 0 : i32
    %c0_i32_0 = arith.constant 0 : i32
    %c0_i32_1 = arith.constant 0 : i32
    return %arg0, %c0_i32, %c0_i32_0 : i32, i32, i32
  }
  func.func @transform_1(%arg0: i32, %arg1: i32) -> (i32, i32) {
    %c0_i32 = arith.constant 0 : i32
    %c0_i32_0 = arith.constant 0 : i32
    %c0_i32_1 = arith.constant 0 : i32
    return %c0_i32, %c0_i32_0 : i32, i32
  }
  func.func @transform_2(%arg0: i32, %arg1: i32) -> (i32, i32) {
    %c0_i32 = arith.constant 0 : i32
    %c0_i32_0 = arith.constant 0 : i32
    %c0_i32_1 = arith.constant 0 : i32
    return %c0_i32, %c0_i32_0 : i32, i32
  }
  func.func @transform_3(%arg0: i32, %arg1: i32) -> (i32, i32) {
    %c0_i32 = arith.constant 0 : i32
    %c0_i32_0 = arith.constant 0 : i32
    %c0_i32_1 = arith.constant 0 : i32
    return %c0_i32, %c0_i32_0 : i32, i32
  }
  func.func @transform_4(%arg0: i32, %arg1: i32) -> (i32, i32) {
    %c0_i32 = arith.constant 0 : i32
    %c0_i32_0 = arith.constant 0 : i32
    %c0_i32_1 = arith.constant 0 : i32
    return %c0_i32, %c0_i32_0 : i32, i32
  }
  func.func @transform_5(%arg0: i32, %arg1: i32) -> (i32, i32) {
    %c0_i32 = arith.constant 0 : i32
    %c0_i32_0 = arith.constant 0 : i32
    %c0_i32_1 = arith.constant 0 : i32
    return %c0_i32, %c0_i32_0 : i32, i32
  }
  func.func @transform_6(%arg0: i32, %arg1: i32) -> (i32, i32) {
    %c0_i32 = arith.constant 0 : i32
    %c0_i32_0 = arith.constant 0 : i32
    %c0_i32_1 = arith.constant 0 : i32
    return %c0_i32, %c0_i32_0 : i32, i32
  }
  func.func @transform_7(%arg0: i32, %arg1: i32) -> (i32, i32) {
    %c0_i32 = arith.constant 0 : i32
    %c0_i32_0 = arith.constant 0 : i32
    %c0_i32_1 = arith.constant 0 : i32
    return %c0_i32, %c0_i32_0 : i32, i32
  }
  func.func @transform_8(%arg0: i32, %arg1: i32) -> (i32, i32) {
    %c0_i32 = arith.constant 0 : i32
    %c0_i32_0 = arith.constant 0 : i32
    %c0_i32_1 = arith.constant 0 : i32
    return %c0_i32, %c0_i32_0 : i32, i32
  }
  func.func @transform_9(%arg0: i32, %arg1: i32) -> (i32, i32) {
    %c0_i32 = arith.constant 0 : i32
    %c0_i32_0 = arith.constant 0 : i32
    %c0_i32_1 = arith.constant 0 : i32
    return %c0_i32, %c0_i32_0 : i32, i32
  }
  func.func @transform_10(%arg0: i32, %arg1: i32) -> (i32, i32) {
    %c0_i32 = arith.constant 0 : i32
    %c0_i32_0 = arith.constant 0 : i32
    %c0_i32_1 = arith.constant 0 : i32
    return %c0_i32, %c0_i32_0 : i32, i32
  }
  func.func @transform_11(%arg0: i32, %arg1: i32) -> (i32, i32) {
    %c0_i32 = arith.constant 0 : i32
    %c0_i32_0 = arith.constant 0 : i32
    %c0_i32_1 = arith.constant 0 : i32
    return %c0_i32, %c0_i32_0 : i32, i32
  }
  func.func @transform_12(%arg0: i32, %arg1: i32) -> (i32, i32) {
    %c0_i32 = arith.constant 0 : i32
    %c0_i32_0 = arith.constant 0 : i32
    %c0_i32_1 = arith.constant 0 : i32
    return %c0_i32, %c0_i32_0 : i32, i32
  }
  func.func @transform_13(%arg0: i32, %arg1: i32) -> (i32, i32) {
    %c0_i32 = arith.constant 0 : i32
    %c0_i32_0 = arith.constant 0 : i32
    %c0_i32_1 = arith.constant 0 : i32
    return %c0_i32, %c0_i32_0 : i32, i32
  }
  func.func @transform_14(%arg0: i32, %arg1: i32) -> (i32, i32) {
    %c0_i32 = arith.constant 0 : i32
    %c0_i32_0 = arith.constant 0 : i32
    %c0_i32_1 = arith.constant 0 : i32
    return %c0_i32, %c0_i32_0 : i32, i32
  }
  func.func @transform_15(%arg0: i32, %arg1: i32) -> (i32, i32, i32) {
    %c0_i32 = arith.constant 0 : i32
    %c0_i32_0 = arith.constant 0 : i32
    return %arg0, %arg1, %c0_i32 : i32, i32, i32
  }
}

</mosaic_0001>

<llo_original>
// kernel: tpu_custom_call.1
$region0: #{tpu_custom_call.1}
  #allocation0 [shape = 'u32[]', space=smem, size = 0x4, offset = 0x4, fixed_abs, tag = 'smem constant byte address 0x4 - core index']
  #allocation1 [shape = 'u32[144,128]{1,0:T(1,128)}', space=vmem, size = 0x12000, scoped, tag = 'internal scratch']
  #allocation2 [shape = 'bf16[4,16,8]{2,1,0:T(16,128)(2,1)}', space=vmem, size = 0x4000, scoped, tag = 'scratch operand']
  #allocation3 [shape = 'bf16[4,16,8]{2,1,0:T(16,128)(2,1)}', space=vmem, size = 0x4000, scoped, tag = 'scratch operand']
  %s0 = inlined_call_operand.vmem [shape: f32[2,16,32], index: 0, kind: input, shape index: {}]
  %s1 = inlined_call_operand.vmem [shape: f32[1,32], index: 1, kind: input, shape index: {}]
  %s2 = inlined_call_operand.vmem [shape: f32[1,32], index: 2, kind: input, shape index: {}]
  %s3 = inlined_call_operand.vmem [shape: bf16[32,32], index: 3, kind: input, shape index: {}]
  %s4 = inlined_call_operand.hbm [shape: f32[1,32], index: 4, kind: input, shape index: {}]
  %s5 = inlined_call_operand.vmem [shape: bf16[32,64], index: 5, kind: input, shape index: {}]
  %s6 = inlined_call_operand.hbm [shape: f32[1,64], index: 6, kind: input, shape index: {}]
  %s7 = inlined_call_operand.vmem [shape: bf16[32,32], index: 7, kind: input, shape index: {}]
  %s8 = inlined_call_operand.hbm [shape: f32[1,32], index: 8, kind: input, shape index: {}]
  %s9 = inlined_call_operand.hbm [shape: f32[1,32], index: 9, kind: input, shape index: {}]
  %s10 = inlined_call_operand.vmem [shape: f32[1,32], index: 10, kind: input, shape index: {}]
  %s11 = inlined_call_operand.vmem [shape: bf16[32,128], index: 11, kind: input, shape index: {}]
  %s12 = inlined_call_operand.vmem [shape: f32[1,128], index: 12, kind: input, shape index: {}]
  %s13 = inlined_call_operand.vmem [shape: bf16[128,32], index: 13, kind: input, shape index: {}]
  %s14 = inlined_call_operand.vmem [shape: f32[1,32], index: 14, kind: input, shape index: {}]
  %s15 = inlined_call_operand.hbm [shape: f32[2,16,32], index: 15, kind: output, shape index: {}]
  %s16 = sld [smem:[#allocation0]]
  $region113: #{tpu_custom_call.1} parent=0
    _
  %s18 = ssub.s32 1, %s16
  %s19 = scalar_select 0, %s18, %s16
  $region1: #{tpu_custom_call.1} parent=0
    #allocation4 [shape = 'u8[512]{0}', space=vmem, size = 0x400, scoped, tag = 'input window, operand 4, single buffered']
    #allocation5 [shape = 's32[2]{0}', space=sflag, size = 0x8, scoped, tag = 'scoped memory for tpu_custom_call.1']
    #allocation6 [shape = 's32[2]{0}', space=sflag, size = 0x8, scoped, tag = 'scoped memory for tpu_custom_call.1']
    #allocation7 [shape = 'u8[512]{0}', space=vmem, size = 0x400, scoped, tag = 'input window, operand 6, single buffered']
    #allocation8 [shape = 's32[1]{0}', space=sflag, size = 0x4, scoped, tag = 'scoped memory for tpu_custom_call.1']
    #allocation9 [shape = 'u8[512]{0}', space=vmem, size = 0x400, scoped, tag = 'input window, operand 8, single buffered']
    #allocation10 [shape = 'u8[512]{0}', space=vmem, size = 0x400, scoped, tag = 'input window, operand 9, single buffered']
    #allocation11 [shape = 's32[1]{0}', space=sflag, size = 0x4, scoped, tag = 'scoped memory for tpu_custom_call.1']
    #allocation12 [shape = 'u8[8192]{0}', space=vmem, size = 0x2000, scoped, tag = 'output window, operand 0']
    %20 = vsyncpa [#allocation5], 0
    %21 = vsyncpa [#allocation8], 0
    %22 = vsyncpa [#allocation11], 0
    %23 = vsyncpa [#allocation6], 0
    %s24 = scalar_lea.sflag [#allocation6], 1
    %25 = vsyncpa %s24, 0
    loop: start=0, step=1, limit=6
    $region2: #{tpu_custom_call.1} parent=1 // loop_pre_header
      _
    $region3: #{tpu_custom_call.1} parent=1 // loop_header
      %s27 = sphi 0, %s31
      %p28 = scmp.ge.s32.totalorder %s27, 6
      %s34 = sphi 0, %s46
      %s35 = sphi 0, %s42
      %s36 = sphi 0, %s34
      %s37 = sphi 0, %s35
      %s38 = sphi 0, %s36
      %s39 = sphi 0, %s37
      %s49 = sphi 0, %s51
      %s52 = sphi 0, %s49
      %s53 = sphi 0, %s52
      %s69 = sphi 0, %s53
      %s73 = sphi 0, %s73
      %s75 = sphi 0, %s73
      %s76 = sphi 0, %s75
      %s90 = sphi 0, %s76
      %s94 = sphi 0, %s94
      %s96 = sphi 0, %s94
      %s97 = sphi 0, %s96
      %s111 = sphi 0, %s97
      %s115 = sphi 0, %s115
      %s117 = sphi 0, %s115
      %s118 = sphi 0, %s117
      %s132 = sphi 0, %s118
      %s136 = sphi 0, %s136
      %s138 = sphi 0, %s136
      %s139 = sphi 0, %s138
      %s153 = sphi 0, %s139
      %s157 = sphi 0, %s157
      %s159 = sphi 0, %s157
      %s160 = sphi 0, %s159
      %s174 = sphi 0, %s160
      %s178 = sphi 0, %s178
      %s180 = sphi 0, %s178
      %s181 = sphi 0, %s180
      %s195 = sphi 0, %s181
      %s199 = sphi 0, %s199
      %s201 = sphi 0, %s199
      %s202 = sphi 0, %s201
      %s216 = sphi 0, %s202
      %s220 = sphi 0, %s220
      %s222 = sphi 0, %s220
      %s223 = sphi 0, %s222
      %s237 = sphi 0, %s223
      %s241 = sphi 0, %s241
      %s243 = sphi 0, %s241
      %s244 = sphi 0, %s243
      %s258 = sphi 0, %s244
      %s262 = sphi 0, %s262
      %s264 = sphi 0, %s262
      %s265 = sphi 0, %s264
      %s279 = sphi 0, %s265
      %s283 = sphi 0, %s283
      %s285 = sphi 0, %s283
      %s286 = sphi 0, %s285
      %s300 = sphi 0, %s286
      %s304 = sphi 0, %s304
      %s306 = sphi 0, %s304
      %s307 = sphi 0, %s306
      %s321 = sphi 0, %s307
      %s325 = sphi 0, %s325
      %s327 = sphi 0, %s325
      %s328 = sphi 0, %s327
      %s342 = sphi 0, %s328
      %s346 = sphi 0, %s346
      %s348 = sphi 0, %s346
      %s349 = sphi 0, %s348
      %s363 = sphi 0, %s349
      %s371 = sphi 0, %s373
      %s374 = sphi 0, %s371
      %s375 = sphi 0, %s374
      %s391 = sphi 0, %s375
    $region4: #{tpu_custom_call.1} parent=1 // loop_header_branch
      %30 = sbr.rel (%p28) target = $region8
    $region5: #{tpu_custom_call.1} parent=1 // loop_body
      %s32 = ssub.s32 %s27, 1
      %s33 = ssub.s32 %s27, 2
      %s40 = sadd.s32 1, %s35
      %p41 = scmp.ge.s32.totalorder %s40, 2
      %s42 = scalar_select %p41, 0, %s40
      %s43 = sadd.s32 1, %s34
      %s44 = scalar_select %p41, %s43, %s34
      %p45 = scmp.ge.s32.totalorder %s44, 2
      %s46 = scalar_select %p45, 0, %s44
      %s47 = ssub.s32 %s34, %s46
      %p48 = scmp.eq.s32.totalorder %s47, 0
      %s50 = sadd.s32 %s49, 1
      %s51 = scalar_select %p48, %s49, %s50
      %p54 = pneg %p48
      %p55 = scmp.eq.s32.totalorder %s27, 3
      %p56 = por %p54, %p55
      %p57 = scmp.ne.s32.totalorder %s49, %s52
      %p58 = scmp.eq.s32.totalorder %s27, 0
      %p59 = por %p57, %p58
      %p60 = scmp.ne.s32.totalorder %s49, %s52
      %p61 = scmp.eq.s32.totalorder %s32, 3
      %p62 = por %p60, %p61
      %p63 = scmp.ne.s32.totalorder %s52, %s53
      %p64 = scmp.eq.s32.totalorder %s32, 0
      %p65 = por %p63, %p64
      %p66 = scmp.ne.s32.totalorder %s52, %s53
      %p67 = scmp.eq.s32.totalorder %s33, 3
      %p68 = por %p66, %p67
      %p70 = scmp.ne.s32.totalorder %s53, %s69
      %p71 = scmp.eq.s32.totalorder %s33, 0
      %p72 = por %p70, %p71
      %s74 = sadd.s32 %s73, 1
      %p77 = scmp.eq.s32.totalorder %s27, 3
      %p78 = scmp.ne.s32.totalorder %s73, %s75
      %p79 = scmp.eq.s32.totalorder %s27, 0
      %p80 = por %p78, %p79
      %p81 = scmp.ne.s32.totalorder %s73, %s75
      %p82 = scmp.eq.s32.totalorder %s32, 3
      %p83 = por %p81, %p82
      %p84 = scmp.ne.s32.totalorder %s75, %s76
      %p85 = scmp.eq.s32.totalorder %s32, 0
      %p86 = por %p84, %p85
      %p87 = scmp.ne.s32.totalorder %s75, %s76
      %p88 = scmp.eq.s32.totalorder %s33, 3
      %p89 = por %p87, %p88
      %p91 = scmp.ne.s32.totalorder %s76, %s90
      %p92 = scmp.eq.s32.totalorder %s33, 0
      %p93 = por %p91, %p92
      %s95 = sadd.s32 %s94, 1
      %p98 = scmp.eq.s32.totalorder %s27, 3
      %p99 = scmp.ne.s32.totalorder %s94, %s96
      %p100 = scmp.eq.s32.totalorder %s27, 0
      %p101 = por %p99, %p100
      %p102 = scmp.ne.s32.totalorder %s94, %s96
      %p103 = scmp.eq.s32.totalorder %s32, 3
      %p104 = por %p102, %p103
      %p105 = scmp.ne.s32.totalorder %s96, %s97
      %p106 = scmp.eq.s32.totalorder %s32, 0
      %p107 = por %p105, %p106
      %p108 = scmp.ne.s32.totalorder %s96, %s97
      %p109 = scmp.eq.s32.totalorder %s33, 3
      %p110 = por %p108, %p109
      %p112 = scmp.ne.s32.totalorder %s97, %s111
      %p113 = scmp.eq.s32.totalorder %s33, 0
      %p114 = por %p112, %p113
      %s116 = sadd.s32 %s115, 1
      %p119 = scmp.eq.s32.totalorder %s27, 3
      %p120 = scmp.ne.s32.totalorder %s115, %s117
      %p121 = scmp.eq.s32.totalorder %s27, 0
      %p122 = por %p120, %p121
      %p123 = scmp.ne.s32.totalorder %s115, %s117
      %p124 = scmp.eq.s32.totalorder %s32, 3
      %p125 = por %p123, %p124
      %p126 = scmp.ne.s32.totalorder %s117, %s118
      %p127 = scmp.eq.s32.totalorder %s32, 0
      %p128 = por %p126, %p127
      %p129 = scmp.ne.s32.totalorder %s117, %s118
      %p130 = scmp.eq.s32.totalorder %s33, 3
      %p131 = por %p129, %p130
      %p133 = scmp.ne.s32.totalorder %s118, %s132
      %p134 = scmp.eq.s32.totalorder %s33, 0
      %p135 = por %p133, %p134
      %s137 = sadd.s32 %s136, 1
      %p140 = scmp.eq.s32.totalorder %s27, 3
      %p141 = scmp.ne.s32.totalorder %s136, %s138
      %p142 = scmp.eq.s32.totalorder %s27, 0
      %p143 = por %p141, %p142
      %p144 = scmp.ne.s32.totalorder %s136, %s138
      %p145 = scmp.eq.s32.totalorder %s32, 3
      %p146 = por %p144, %p145
      %p147 = scmp.ne.s32.totalorder %s138, %s139
      %p148 = scmp.eq.s32.totalorder %s32, 0
      %p149 = por %p147, %p148
      %p150 = scmp.ne.s32.totalorder %s138, %s139
      %p151 = scmp.eq.s32.totalorder %s33, 3
      %p152 = por %p150, %p151
      %p154 = scmp.ne.s32.totalorder %s139, %s153
      %p155 = scmp.eq.s32.totalorder %s33, 0
      %p156 = por %p154, %p155
      %s158 = sadd.s32 %s157, 1
      %p161 = scmp.eq.s32.totalorder %s27, 3
      %p162 = scmp.ne.s32.totalorder %s157, %s159
      %p163 = scmp.eq.s32.totalorder %s27, 0
      %p164 = por %p162, %p163
      %p165 = scmp.ne.s32.totalorder %s157, %s159
      %p166 = scmp.eq.s32.totalorder %s32, 3
      %p167 = por %p165, %p166
      %p168 = scmp.ne.s32.totalorder %s159, %s160
      %p169 = scmp.eq.s32.totalorder %s32, 0
      %p170 = por %p168, %p169
      %p171 = scmp.ne.s32.totalorder %s159, %s160
      %p172 = scmp.eq.s32.totalorder %s33, 3
      %p173 = por %p171, %p172
      %p175 = scmp.ne.s32.totalorder %s160, %s174
      %p176 = scmp.eq.s32.totalorder %s33, 0
      %p177 = por %p175, %p176
      %s179 = sadd.s32 %s178, 1
      %p182 = scmp.eq.s32.totalorder %s27, 3
      %p183 = scmp.ne.s32.totalorder %s178, %s180
      %p184 = scmp.eq.s32.totalorder %s27, 0
      %p185 = por %p183, %p184
      %p186 = scmp.ne.s32.totalorder %s178, %s180
      %p187 = scmp.eq.s32.totalorder %s32, 3
      %p188 = por %p186, %p187
      %p189 = scmp.ne.s32.totalorder %s180, %s181
      %p190 = scmp.eq.s32.totalorder %s32, 0
      %p191 = por %p189, %p190
      %p192 = scmp.ne.s32.totalorder %s180, %s181
      %p193 = scmp.eq.s32.totalorder %s33, 3
      %p194 = por %p192, %p193
      %p196 = scmp.ne.s32.totalorder %s181, %s195
      %p197 = scmp.eq.s32.totalorder %s33, 0
      %p198 = por %p196, %p197
      %s200 = sadd.s32 %s199, 1
      %p203 = scmp.eq.s32.totalorder %s27, 3
      %p204 = scmp.ne.s32.totalorder %s199, %s201
      %p205 = scmp.eq.s32.totalorder %s27, 0
      %p206 = por %p204, %p205
      %p207 = scmp.ne.s32.totalorder %s199, %s201
      %p208 = scmp.eq.s32.totalorder %s32, 3
      %p209 = por %p207, %p208
      %p210 = scmp.ne.s32.totalorder %s201, %s202
      %p211 = scmp.eq.s32.totalorder %s32, 0
      %p212 = por %p210, %p211
      %p213 = scmp.ne.s32.totalorder %s201, %s202
      %p214 = scmp.eq.s32.totalorder %s33, 3
      %p215 = por %p213, %p214
      %p217 = scmp.ne.s32.totalorder %s202, %s216
      %p218 = scmp.eq.s32.totalorder %s33, 0
      %p219 = por %p217, %p218
      %s221 = sadd.s32 %s220, 1
      %p224 = scmp.eq.s32.totalorder %s27, 3
      %p225 = scmp.ne.s32.totalorder %s220, %s222
      %p226 = scmp.eq.s32.totalorder %s27, 0
      %p227 = por %p225, %p226
      %p228 = scmp.ne.s32.totalorder %s220, %s222
      %p229 = scmp.eq.s32.totalorder %s32, 3
      %p230 = por %p228, %p229
      %p231 = scmp.ne.s32.totalorder %s222, %s223
      %p232 = scmp.eq.s32.totalorder %s32, 0
      %p233 = por %p231, %p232
      %p234 = scmp.ne.s32.totalorder %s222, %s223
      %p235 = scmp.eq.s32.totalorder %s33, 3
      %p236 = por %p234, %p235
      %p238 = scmp.ne.s32.totalorder %s223, %s237
      %p239 = scmp.eq.s32.totalorder %s33, 0
      %p240 = por %p238, %p239
      %s242 = sadd.s32 %s241, 1
      %p245 = scmp.eq.s32.totalorder %s27, 3
      %p246 = scmp.ne.s32.totalorder %s241, %s243
      %p247 = scmp.eq.s32.totalorder %s27, 0
      %p248 = por %p246, %p247
      %p249 = scmp.ne.s32.totalorder %s241, %s243
      %p250 = scmp.eq.s32.totalorder %s32, 3
      %p251 = por %p249, %p250
      %p252 = scmp.ne.s32.totalorder %s243, %s244
      %p253 = scmp.eq.s32.totalorder %s32, 0
      %p254 = por %p252, %p253
      %p255 = scmp.ne.s32.totalorder %s243, %s244
      %p256 = scmp.eq.s32.totalorder %s33, 3
      %p257 = por %p255, %p256
      %p259 = scmp.ne.s32.totalorder %s244, %s258
      %p260 = scmp.eq.s32.totalorder %s33, 0
      %p261 = por %p259, %p260
      %s263 = sadd.s32 %s262, 1
      %p266 = scmp.eq.s32.totalorder %s27, 3
      %p267 = scmp.ne.s32.totalorder %s262, %s264
      %p268 = scmp.eq.s32.totalorder %s27, 0
      %p269 = por %p267, %p268
      %p270 = scmp.ne.s32.totalorder %s262, %s264
      %p271 = scmp.eq.s32.totalorder %s32, 3
      %p272 = por %p270, %p271
      %p273 = scmp.ne.s32.totalorder %s264, %s265
      %p274 = scmp.eq.s32.totalorder %s32, 0
      %p275 = por %p273, %p274
      %p276 = scmp.ne.s32.totalorder %s264, %s265
      %p277 = scmp.eq.s32.totalorder %s33, 3
      %p278 = por %p276, %p277
      %p280 = scmp.ne.s32.totalorder %s265, %s279
      %p281 = scmp.eq.s32.totalorder %s33, 0
      %p282 = por %p280, %p281
      %s284 = sadd.s32 %s283, 1
      %p287 = scmp.eq.s32.totalorder %s27, 3
      %p288 = scmp.ne.s32.totalorder %s283, %s285
      %p289 = scmp.eq.s32.totalorder %s27, 0
      %p290 = por %p288, %p289
      %p291 = scmp.ne.s32.totalorder %s283, %s285
      %p292 = scmp.eq.s32.totalorder %s32, 3
      %p293 = por %p291, %p292
      %p294 = scmp.ne.s32.totalorder %s285, %s286
      %p295 = scmp.eq.s32.totalorder %s32, 0
      %p296 = por %p294, %p295
      %p297 = scmp.ne.s32.totalorder %s285, %s286
      %p298 = scmp.eq.s32.totalorder %s33, 3
      %p299 = por %p297, %p298
      %p301 = scmp.ne.s32.totalorder %s286, %s300
      %p302 = scmp.eq.s32.totalorder %s33, 0
      %p303 = por %p301, %p302
      %s305 = sadd.s32 %s304, 1
      %p308 = scmp.eq.s32.totalorder %s27, 3
      %p309 = scmp.ne.s32.totalorder %s304, %s306
      %p310 = scmp.eq.s32.totalorder %s27, 0
      %p311 = por %p309, %p310
      %p312 = scmp.ne.s32.totalorder %s304, %s306
      %p313 = scmp.eq.s32.totalorder %s32, 3
      %p314 = por %p312, %p313
      %p315 = scmp.ne.s32.totalorder %s306, %s307
      %p316 = scmp.eq.s32.totalorder %s32, 0
      %p317 = por %p315, %p316
      %p318 = scmp.ne.s32.totalorder %s306, %s307
      %p319 = scmp.eq.s32.totalorder %s33, 3
      %p320 = por %p318, %p319
      %p322 = scmp.ne.s32.totalorder %s307, %s321
      %p323 = scmp.eq.s32.totalorder %s33, 0
      %p324 = por %p322, %p323
      %s326 = sadd.s32 %s325, 1
      %p329 = scmp.eq.s32.totalorder %s27, 3
      %p330 = scmp.ne.s32.totalorder %s325, %s327
      %p331 = scmp.eq.s32.totalorder %s27, 0
      %p332 = por %p330, %p331
      %p333 = scmp.ne.s32.totalorder %s325, %s327
      %p334 = scmp.eq.s32.totalorder %s32, 3
      %p335 = por %p333, %p334
      %p336 = scmp.ne.s32.totalorder %s327, %s328
      %p337 = scmp.eq.s32.totalorder %s32, 0
      %p338 = por %p336, %p337
      %p339 = scmp.ne.s32.totalorder %s327, %s328
      %p340 = scmp.eq.s32.totalorder %s33, 3
      %p341 = por %p339, %p340
      %p343 = scmp.ne.s32.totalorder %s328, %s342
      %p344 = scmp.eq.s32.totalorder %s33, 0
      %p345 = por %p343, %p344
      %s347 = sadd.s32 %s346, 1
      %p350 = scmp.eq.s32.totalorder %s27, 3
      %p351 = scmp.ne.s32.totalorder %s346, %s348
      %p352 = scmp.eq.s32.totalorder %s27, 0
      %p353 = por %p351, %p352
      %p354 = scmp.ne.s32.totalorder %s346, %s348
      %p355 = scmp.eq.s32.totalorder %s32, 3
      %p356 = por %p354, %p355
      %p357 = scmp.ne.s32.totalorder %s348, %s349
      %p358 = scmp.eq.s32.totalorder %s32, 0
      %p359 = por %p357, %p358
      %p360 = scmp.ne.s32.totalorder %s348, %s349
      %p361 = scmp.eq.s32.totalorder %s33, 3
      %p362 = por %p360, %p361
      %p364 = scmp.ne.s32.totalorder %s349, %s363
      %p365 = scmp.eq.s32.totalorder %s33, 0
      %p366 = por %p364, %p365
      %s367 = ssub.s32 %s34, %s46
      %s368 = ssub.s32 %s35, %s42
      %s369 = sor.u32 %s367, %s368
      %p370 = scmp.eq.s32.totalorder %s369, 0
      %s372 = sadd.s32 %s371, 1
      %s373 = scalar_select %p370, %s371, %s372
      %p376 = pneg %p370
      %p377 = scmp.eq.s32.totalorder %s27, 3
      %p378 = por %p376, %p377
      %p379 = scmp.ne.s32.totalorder %s371, %s374
      %p380 = scmp.eq.s32.totalorder %s27, 0
      %p381 = por %p379, %p380
      %p382 = scmp.ne.s32.totalorder %s371, %s374
      %p383 = scmp.eq.s32.totalorder %s32, 3
      %p384 = por %p382, %p383
      %p385 = scmp.ne.s32.totalorder %s374, %s375
      %p386 = scmp.eq.s32.totalorder %s32, 0
      %p387 = por %p385, %p386
      %p388 = scmp.ne.s32.totalorder %s374, %s375
      %p389 = scmp.eq.s32.totalorder %s33, 3
      %p390 = por %p388, %p389
      %p392 = scmp.ne.s32.totalorder %s375, %s391
      %p393 = scmp.eq.s32.totalorder %s33, 0
      %p394 = por %p392, %p393
      %p395 = scmp.le.s32.totalorder 1, %s27
      %p396 = scmp.lt.s32.totalorder %s27, 5
      %p397 = pnand %p395, %p396
      %p398 = pneg %p397
      // Predicated region
      $region9: #{tpu_custom_call.1} parent=5 // pred_check
        _
      $region10: #{tpu_custom_call.1} parent=5 // pred_check_branch
        %400 = sbr.rel (%p397) target = $region12
      $region11: #{tpu_custom_call.1} parent=5 // pred_region
        %s401 = ssub.s32 %s27, 1
        // Predicated region
        $region13: #{tpu_custom_call.1} parent=11 // pred_check
          %p402 = pneg %p86
        $region14: #{tpu_custom_call.1} parent=11 // pred_check_branch
          %404 = sbr.rel (%p402) target = $region16
        $region15: #{tpu_custom_call.1} parent=11 // pred_region
          _
        $region16: #{tpu_custom_call.1} parent=11 // pred_fallthru
          _
        // Predicated region
        $region17: #{tpu_custom_call.1} parent=11 // pred_check
          %p405 = pneg %p107
        $region18: #{tpu_custom_call.1} parent=11 // pred_check_branch
          %407 = sbr.rel (%p405) target = $region20
        $region19: #{tpu_custom_call.1} parent=11 // pred_region
          _
        $region20: #{tpu_custom_call.1} parent=11 // pred_fallthru
          _
        // Predicated region
        $region21: #{tpu_custom_call.1} parent=11 // pred_check
          %p408 = pneg %p128
        $region22: #{tpu_custom_call.1} parent=11 // pred_check_branch
          %410 = sbr.rel (%p408) target = $region24
        $region23: #{tpu_custom_call.1} parent=11 // pred_region
          _
        $region24: #{tpu_custom_call.1} parent=11 // pred_fallthru
          _
        // Predicated region
        $region25: #{tpu_custom_call.1} parent=11 // pred_check
          %p411 = pneg %p149
        $region26: #{tpu_custom_call.1} parent=11 // pred_check_branch
          %413 = sbr.rel (%p411) target = $region28
        $region27: #{tpu_custom_call.1} parent=11 // pred_region
          %s415 = ssub.s32 16, 16
          %416 = vsyncadd [#allocation5], %s415
          %s418 = sshll.u32 [#allocation4], 4
          %s419 = int_to_ptr.vmem [resolvable:$true] %s418
          %421 = dma.hbm_to_vmem [thread:$0]  %s4, 16, %s419, [#allocation5]
        $region28: #{tpu_custom_call.1} parent=11 // pred_fallthru
          _
        // Predicated region
        $region29: #{tpu_custom_call.1} parent=11 // pred_check
          %p422 = pneg %p170
        $region30: #{tpu_custom_call.1} parent=11 // pred_check_branch
          %424 = sbr.rel (%p422) target = $region32
        $region31: #{tpu_custom_call.1} parent=11 // pred_region
          _
        $region32: #{tpu_custom_call.1} parent=11 // pred_fallthru
          _
        // Predicated region
        $region33: #{tpu_custom_call.1} parent=11 // pred_check
          %p425 = pneg %p191
        $region34: #{tpu_custom_call.1} parent=11 // pred_check_branch
          %427 = sbr.rel (%p425) target = $region36
        $region35: #{tpu_custom_call.1} parent=11 // pred_region
          %s429 = ssub.s32 16, 16
          %430 = vsyncadd [#allocation8], %s429
          %s432 = sshll.u32 [#allocation7], 4
          %s433 = int_to_ptr.vmem [resolvable:$true] %s432
          %435 = dma.hbm_to_vmem [thread:$0]  %s6, 16, %s433, [#allocation8]
        $region36: #{tpu_custom_call.1} parent=11 // pred_fallthru
          _
        // Predicated region
        $region37: #{tpu_custom_call.1} parent=11 // pred_check
          %p436 = pneg %p212
        $region38: #{tpu_custom_call.1} parent=11 // pred_check_branch
          %438 = sbr.rel (%p436) target = $region40
        $region39: #{tpu_custom_call.1} parent=11 // pred_region
          _
        $region40: #{tpu_custom_call.1} parent=11 // pred_fallthru
          _
        // Predicated region
        $region41: #{tpu_custom_call.1} parent=11 // pred_check
          %p439 = pneg %p233
        $region42: #{tpu_custom_call.1} parent=11 // pred_check_branch
          %441 = sbr.rel (%p439) target = $region44
        $region43: #{tpu_custom_call.1} parent=11 // pred_region
          %s443 = ssub.s32 16, 16
          %444 = vsyncadd [#allocation8], %s443
          %s446 = sshll.u32 [#allocation9], 4
          %s447 = int_to_ptr.vmem [resolvable:$true] %s446
          %449 = dma.hbm_to_vmem [thread:$0]  %s8, 16, %s447, [#allocation8]
        $region44: #{tpu_custom_call.1} parent=11 // pred_fallthru
          _
        // Predicated region
        $region45: #{tpu_custom_call.1} parent=11 // pred_check
          %p450 = pneg %p254
        $region46: #{tpu_custom_call.1} parent=11 // pred_check_branch
          %452 = sbr.rel (%p450) target = $region48
        $region47: #{tpu_custom_call.1} parent=11 // pred_region
          %s454 = ssub.s32 16, 16
          %455 = vsyncadd [#allocation11], %s454
          %s457 = sshll.u32 [#allocation10], 4
          %s458 = int_to_ptr.vmem [resolvable:$true] %s457
          %460 = dma.hbm_to_vmem [thread:$0]  %s9, 16, %s458, [#allocation11]
        $region48: #{tpu_custom_call.1} parent=11 // pred_fallthru
          _
        // Predicated region
        $region49: #{tpu_custom_call.1} parent=11 // pred_check
          %p461 = pneg %p275
        $region50: #{tpu_custom_call.1} parent=11 // pred_check_branch
          %463 = sbr.rel (%p461) target = $region52
        $region51: #{tpu_custom_call.1} parent=11 // pred_region
          _
        $region52: #{tpu_custom_call.1} parent=11 // pred_fallthru
          _
        // Predicated region
        $region53: #{tpu_custom_call.1} parent=11 // pred_check
          %p464 = pneg %p296
        $region54: #{tpu_custom_call.1} parent=11 // pred_check_branch
          %466 = sbr.rel (%p464) target = $region56
        $region55: #{tpu_custom_call.1} parent=11 // pred_region
          _
        $region56: #{tpu_custom_call.1} parent=11 // pred_fallthru
          _
        // Predicated region
        $region57: #{tpu_custom_call.1} parent=11 // pred_check
          %p467 = pneg %p317
        $region58: #{tpu_custom_call.1} parent=11 // pred_check_branch
          %469 = sbr.rel (%p467) target = $region60
        $region59: #{tpu_custom_call.1} parent=11 // pred_region
          _
        $region60: #{tpu_custom_call.1} parent=11 // pred_fallthru
          _
        // Predicated region
        $region61: #{tpu_custom_call.1} parent=11 // pred_check
          %p470 = pneg %p338
        $region62: #{tpu_custom_call.1} parent=11 // pred_check_branch
          %472 = sbr.rel (%p470) target = $region64
        $region63: #{tpu_custom_call.1} parent=11 // pred_region
          _
        $region64: #{tpu_custom_call.1} parent=11 // pred_fallthru
          _
        // Predicated region
        $region65: #{tpu_custom_call.1} parent=11 // pred_check
          %p473 = pneg %p359
        $region66: #{tpu_custom_call.1} parent=11 // pred_check_branch
          %475 = sbr.rel (%p473) target = $region68
        $region67: #{tpu_custom_call.1} parent=11 // pred_region
          _
        $region68: #{tpu_custom_call.1} parent=11 // pred_fallthru
          _
      $region12: #{tpu_custom_call.1} parent=5 // pred_fallthru
        _
      %p476 = scmp.lt.s32.totalorder %s27, 4
      // Predicated region
      $region69: #{tpu_custom_call.1} parent=5 // pred_check
        %p477 = pneg %p476
      $region70: #{tpu_custom_call.1} parent=5 // pred_check_branch
        %479 = sbr.rel (%p477) target = $region72
      $region71: #{tpu_custom_call.1} parent=5 // pred_region
        // Predicated region
        $region73: #{tpu_custom_call.1} parent=71 // pred_check
          %p480 = pneg %p59
        $region74: #{tpu_custom_call.1} parent=71 // pred_check_branch
          %482 = sbr.rel (%p480) target = $region76
        $region75: #{tpu_custom_call.1} parent=71 // pred_region
          %p483 = scmp.lt.s32.totalorder %s34, 1
          %s484 = scalar_select %p483, %s34, 1
          %s485 = smul.addr %s484, 2
          %s486 = smul.addr %s485, 8
          %s487 = scalar_lea.vmem %s0, %s486
        $region76: #{tpu_custom_call.1} parent=71 // pred_fallthru
          _
      $region72: #{tpu_custom_call.1} parent=5 // pred_fallthru
        _
      %p488 = scmp.le.s32.totalorder 1, %s27
      %p489 = scmp.lt.s32.totalorder %s27, 5
      %p490 = pnand %p488, %p489
      %p491 = pneg %p490
      // Predicated region
      $region77: #{tpu_custom_call.1} parent=5 // pred_check
        _
      $region78: #{tpu_custom_call.1} parent=5 // pred_check_branch
        %493 = sbr.rel (%p490) target = $region80
      $region79: #{tpu_custom_call.1} parent=5 // pred_region
        %s494 = ssub.s32 %s27, 1
        // Predicated region
        $region81: #{tpu_custom_call.1} parent=79 // pred_check
          %p495 = pneg %p149
        $region82: #{tpu_custom_call.1} parent=79 // pred_check_branch
          %497 = sbr.rel (%p495) target = $region84
        $region83: #{tpu_custom_call.1} parent=79 // pred_region
          %498 = dma.done [#allocation5], 16
        $region84: #{tpu_custom_call.1} parent=79 // pred_fallthru
          _
        // Predicated region
        $region85: #{tpu_custom_call.1} parent=79 // pred_check
          %p499 = pneg %p191
        $region86: #{tpu_custom_call.1} parent=79 // pred_check_branch
          %501 = sbr.rel (%p499) target = $region88
        $region87: #{tpu_custom_call.1} parent=79 // pred_region
          %502 = dma.done [#allocation8], 16
        $region88: #{tpu_custom_call.1} parent=79 // pred_fallthru
          _
        // Predicated region
        $region89: #{tpu_custom_call.1} parent=79 // pred_check
          %p503 = pneg %p233
        $region90: #{tpu_custom_call.1} parent=79 // pred_check_branch
          %505 = sbr.rel (%p503) target = $region92
        $region91: #{tpu_custom_call.1} parent=79 // pred_region
          %506 = dma.done [#allocation8], 16
        $region92: #{tpu_custom_call.1} parent=79 // pred_fallthru
          _
        // Predicated region
        $region93: #{tpu_custom_call.1} parent=79 // pred_check
          %p507 = pneg %p254
        $region94: #{tpu_custom_call.1} parent=79 // pred_check_branch
          %509 = sbr.rel (%p507) target = $region96
        $region95: #{tpu_custom_call.1} parent=79 // pred_region
          %510 = dma.done [#allocation11], 16
        $region96: #{tpu_custom_call.1} parent=79 // pred_fallthru
          _
        %p511 = scmp.lt.s32.totalorder %s36, 1
        %s512 = scalar_select %p511, %s36, 1
        %s513 = smul.addr %s512, 2
        %s514 = smul.addr %s513, 8
        %s515 = scalar_lea.vmem %s0, %s514
        %p516 = pneg %p65
        %p517 = pneg %p62
        %p518 = pneg %p86
        %p519 = pneg %p83
        %p520 = pneg %p107
        %p521 = pneg %p104
        %p522 = pneg %p128
        %p523 = pneg %p125
        %p524 = pneg %p149
        %p525 = pneg %p146
        %p526 = pneg %p170
        %p527 = pneg %p167
        %p528 = pneg %p191
        %p529 = pneg %p188
        %p530 = pneg %p212
        %p531 = pneg %p209
        %p532 = pneg %p233
        %p533 = pneg %p230
        %p534 = pneg %p254
        %p535 = pneg %p251
        %p536 = pneg %p275
        %p537 = pneg %p272
        %p538 = pneg %p296
        %p539 = pneg %p293
        %p540 = pneg %p317
        %p541 = pneg %p314
        %p542 = pneg %p338
        %p543 = pneg %p335
        %p544 = pneg %p359
        %p545 = pneg %p356
        %p546 = pneg %p387
        %p547 = pneg %p384
        %s548 = sand.u32 %s374, 1
        %s549 = scalar_lea.sflag [#allocation6], %s548
        %s550 = sand.u32 %s374, 1
        %s551 = smul.addr %s550, 8
        %s552 = scalar_lea.vmem [#allocation12], %s551
        %p553 = scmp.lt.s32.totalorder %s36, 1
        %s554 = scalar_select %p553, %s36, 1
        %s555 = smul.addr %s554, 2
        %s556 = smul.addr %s555, 8
        %s557 = scalar_lea.vmem %s0, %s556
        %p559 = scmp.eq.s32.totalorder %s37, 0
        // Predicated region
        $region97: #{tpu_custom_call.1} parent=79 // pred_check
          %p560 = pneg %p559
        $region98: #{tpu_custom_call.1} parent=79 // pred_check_branch
          %562 = sbr.rel (%p560) target = $region100
        $region99: #{tpu_custom_call.1} parent=79 // pred_region
          %v563 = vld [vmem:[%s557] sm:$0xff]
          %v564 = vld [vmem:[%s557 + $0x8] sm:$0xff]
          %v565 = vld [vmem:[%s1] sm:$0x1]
          %v566 = vld [vmem:[%s2] sm:$0x1]
          %vm567 = vcmask 261120
          %v568 = vsel %vm567, %v563, 0.0
          %569 = vadd.xlane.f32.xlu0 %v568
          %v570 = vpop.xlane.xlu0 %569
          %v571 = vsel %vm567, %v564, 0.0
          %572 = vadd.xlane.f32.xlu0 %v571
          %v573 = vpop.xlane.xlu0 %572
          %v574 = vrcp.pop 32.0
          %v575 = vmul.f32 %v570, %v574
          %v576 = vmul.f32 %v573, %v574
          %v577 = vsub.f32 %v563, %v575
          %v578 = vsub.f32 %v564, %v576
          %v579 = vmul.f32 %v577, %v577
          %v580 = vmul.f32 %v578, %v578
          %v581 = vsel %vm567, %v579, 0.0
          %582 = vadd.xlane.f32.xlu0 %v581
          %v583 = vpop.xlane.xlu0 %582
          %v584 = vsel %vm567, %v580, 0.0
          %585 = vadd.xlane.f32.xlu0 %v584
          %v586 = vpop.xlane.xlu0 %585
          %v587 = vmul.f32 %v583, %v574
          %v588 = vmul.f32 %v586, %v574
          %v589 = vadd.f32 %v587, 1e-05
          %v590 = vadd.f32 %v588, 1e-05
          %v591 = vrsqrt.pop %v589
          %v592 = vrsqrt.pop %v590
          %v593 = vmul.f32 %v577, %v591
          %v594 = vmul.f32 %v578, %v592
          %v596 = vlaneseq
          %v597 = vshrl.u32 %v596, 7
          %v598 = vsub.s32 0, %v597
          %v599 = vrot.slane %v565, %v598
          %v601 = vmul.f32 %v593, %v599
          %v602 = vmul.f32 %v594, %v599
          %v604 = vlaneseq
          %v605 = vshrl.u32 %v604, 7
          %v606 = vsub.s32 0, %v605
          %v607 = vrot.slane %v566, %v606
          %v609 = vadd.f32 %v601, %v607
          %v610 = vadd.f32 %v602, %v607
          %v611 = vpack.c.bf16 %v610, %v609
          %v612 = vld [vmem:[%s5] sm:$0xf]
          %v613 = vld [vmem:[%s5 + $0x4] sm:$0xf]
          %v614 = vld [vmem:[%s5 + $0x8] sm:$0xf]
          %v615 = vld [vmem:[%s5 + $0xc] sm:$0xf]
          %v616 = vld [vmem:[#allocation7] sm:$0x1]
          %v618 = vlaneseq
          %v619 = vshrl.u32 %v618, 7
          %v620 = vsub.s32 0, %v619
          %v621 = vrot.slane %v616, %v620
          %v627 = vunpack.c.l.b16 %v612
          %v628 = vunpack.c.l.b16 %v613
          %v629 = vunpack.c.l.b16 %v614
          %v630 = vunpack.c.l.b16 %v615
          %v631 = vpack.c.b16 %v628, %v627
          %v632 = vpack.c.b16 %v630, %v629
          %v636 = vsel %vm567, %v611, 0
          %638 = vmatprep.subr.bf16.mxu0 0
          %639 = vmatpush1.bf16.msra.mxu0 %v631
          %640 = vmatprep.subr.bf16.mxu0 0
          %641 = vmatpush1.bf16.msra.mxu0 %v632
          %642 = vmatprep.subr.bf16.mxu0 0
          %643 = vmatpush1.bf16.msra.mxu0 0
          %644 = vmatprep.subr.bf16.mxu0 0
          %645 = vmatpush1.bf16.msra.mxu0 0
          %646 = vmatprep.subr.bf16.mxu0 0
          %647 = vmatpush1.bf16.msra.mxu0 0
          %648 = vmatprep.subr.bf16.mxu0 0
          %649 = vmatpush1.bf16.msra.mxu0 0
          %650 = vmatprep.subr.bf16.mxu0 0
          %651 = vmatpush1.bf16.msra.mxu0 0
          %652 = vmatprep.subr.bf16.mxu0 0
          %653 = vmatpush1.bf16.msra.mxu0 0
          %654 = vmatprep.subr.bf16.mxu0 0
          %655 = vmatpush1.bf16.msra.mxu0 0
          %656 = vmatprep.subr.bf16.mxu0 0
          %657 = vmatpush1.bf16.msra.mxu0 0
          %658 = vmatprep.subr.bf16.mxu0 0
          %659 = vmatpush1.bf16.msra.mxu0 0
          %660 = vmatprep.subr.bf16.mxu0 0
          %661 = vmatpush1.bf16.msra.mxu0 0
          %662 = vmatprep.subr.bf16.mxu0 0
          %663 = vmatpush1.bf16.msra.mxu0 0
          %664 = vmatprep.subr.bf16.mxu0 0
          %665 = vmatpush1.bf16.msra.mxu0 0
          %666 = vmatprep.subr.bf16.mxu0 0
          %667 = vmatpush1.bf16.msra.mxu0 0
          %668 = vmatprep.subr.bf16.mxu0 0
          %669 = vmatpush1.bf16.msra.mxu0 0
          %670 = vmatprep.mubr.bf16.mxu0 0
          %671 = vmatmul.mubr.bf16.gmra.mrb[0].mxu0 %v636
          %v672 = vpop.f32.mrb[0].mxu0
          %v673 = vadd.f32 %v621, %v672
          %v674 = vpop.f32.mrb[0].mxu0
          %v675 = vpop.f32.mrb[0].mxu0
          %v676 = vadd.f32 %v621, %v675
          %v677 = vpop.f32.mrb[0].mxu0
          %678 = vdwg.mxu0
          %681 = vrot.lane.b32.xlu0 %v673, 120
          %v682 = vpop.permute.xlu0 %681
          %683 = vrot.lane.b32.xlu0 %v676, 120
          %v684 = vpop.permute.xlu0 %683
          %687 = vrot.lane.b32.xlu0 %v673, 112
          %v688 = vpop.permute.xlu0 %687
          %689 = vrot.lane.b32.xlu0 %v676, 112
          %v690 = vpop.permute.xlu0 %689
          %693 = vrot.lane.b32.xlu0 %v673, 104
          %v694 = vpop.permute.xlu0 %693
          %695 = vrot.lane.b32.xlu0 %v676, 104
          %v696 = vpop.permute.xlu0 %695
          %v699 = vcombine.low %v673, %v688
          %v700 = vcombine.high %v673, %v688
          %v702 = vunpack.c.l.s4 1983009808
          %v703 = vunpack.c.0.s8 %v702
          %v704 = vlaneseq
          %v705 = vshrl.u32 %v704, 7
          %v706 = vsub.s32 %v703, %v705
          %v707 = vrot.slane %v699, %v706
          %v709 = vunpack.c.l.s4 1983009808
          %v710 = vunpack.c.0.s8 %v709
          %v711 = vlaneseq
          %v712 = vshrl.u32 %v711, 7
          %v713 = vsub.s32 %v710, %v712
          %v714 = vrot.slane %v700, %v713
          %v715 = vcombine.low %v682, %v694
          %v716 = vcombine.high %v682, %v694
          %v718 = vunpack.c.l.s4 1983009808
          %v719 = vunpack.c.0.s8 %v718
          %v720 = vlaneseq
          %v721 = vshrl.u32 %v720, 7
          %v722 = vsub.s32 %v719, %v721
          %v723 = vrot.slane %v715, %v722
          %v725 = vunpack.c.l.s4 1983009808
          %v726 = vunpack.c.0.s8 %v725
          %v727 = vlaneseq
          %v728 = vshrl.u32 %v727, 7
          %v729 = vsub.s32 %v726, %v728
          %v730 = vrot.slane %v716, %v729
          %v731 = vcombine.low %v707, %v723
          %v732 = vcombine.high %v707, %v723
          %v734 = vunpack.c.l.s4 1934713408
          %v735 = vunpack.c.0.s8 %v734
          %v736 = vlaneseq
          %v737 = vshrl.u32 %v736, 7
          %v738 = vsub.s32 %v735, %v737
          %v739 = vrot.slane %v731, %v738
          %v741 = vunpack.c.l.s4 1934713408
          %v742 = vunpack.c.0.s8 %v741
          %v743 = vlaneseq
          %v744 = vshrl.u32 %v743, 7
          %v745 = vsub.s32 %v742, %v744
          %v746 = vrot.slane %v732, %v745
          %v747 = vcombine.low %v714, %v730
          %v748 = vcombine.high %v714, %v730
          %v750 = vunpack.c.l.s4 1934713408
          %v751 = vunpack.c.0.s8 %v750
          %v752 = vlaneseq
          %v753 = vshrl.u32 %v752, 7
          %v754 = vsub.s32 %v751, %v753
          %v755 = vrot.slane %v747, %v754
          %v757 = vunpack.c.l.s4 1934713408
          %v758 = vunpack.c.0.s8 %v757
          %v759 = vlaneseq
          %v760 = vshrl.u32 %v759, 7
          %v761 = vsub.s32 %v758, %v760
          %v762 = vrot.slane %v748, %v761
          %v763 = vcombine.high %v739, 0.0
          %v764 = vcombine.high %v746, 0.0
          %v765 = vcombine.high %v755, 0.0
          %v766 = vcombine.high %v762, 0.0
          %v767 = vcombine.low %v676, %v690
          %v768 = vcombine.high %v676, %v690
          %v770 = vunpack.c.l.s4 1983009808
          %v771 = vunpack.c.0.s8 %v770
          %v772 = vlaneseq
          %v773 = vshrl.u32 %v772, 7
          %v774 = vsub.s32 %v771, %v773
          %v775 = vrot.slane %v767, %v774
          %v777 = vunpack.c.l.s4 1983009808
          %v778 = vunpack.c.0.s8 %v777
          %v779 = vlaneseq
          %v780 = vshrl.u32 %v779, 7
          %v781 = vsub.s32 %v778, %v780
          %v782 = vrot.slane %v768, %v781
          %v783 = vcombine.low %v684, %v696
          %v784 = vcombine.high %v684, %v696
          %v786 = vunpack.c.l.s4 1983009808
          %v787 = vunpack.c.0.s8 %v786
          %v788 = vlaneseq
          %v789 = vshrl.u32 %v788, 7
          %v790 = vsub.s32 %v787, %v789
          %v791 = vrot.slane %v783, %v790
          %v793 = vunpack.c.l.s4 1983009808
          %v794 = vunpack.c.0.s8 %v793
          %v795 = vlaneseq
          %v796 = vshrl.u32 %v795, 7
          %v797 = vsub.s32 %v794, %v796
          %v798 = vrot.slane %v784, %v797
          %v799 = vcombine.low %v775, %v791
          %v800 = vcombine.high %v775, %v791
          %v802 = vunpack.c.l.s4 1934713408
          %v803 = vunpack.c.0.s8 %v802
          %v804 = vlaneseq
          %v805 = vshrl.u32 %v804, 7
          %v806 = vsub.s32 %v803, %v805
          %v807 = vrot.slane %v799, %v806
          %v809 = vunpack.c.l.s4 1934713408
          %v810 = vunpack.c.0.s8 %v809
          %v811 = vlaneseq
          %v812 = vshrl.u32 %v811, 7
          %v813 = vsub.s32 %v810, %v812
          %v814 = vrot.slane %v800, %v813
          %v815 = vcombine.low %v782, %v798
          %v816 = vcombine.high %v782, %v798
          %v818 = vunpack.c.l.s4 1934713408
          %v819 = vunpack.c.0.s8 %v818
          %v820 = vlaneseq
          %v821 = vshrl.u32 %v820, 7
          %v822 = vsub.s32 %v819, %v821
          %v823 = vrot.slane %v815, %v822
          %v825 = vunpack.c.l.s4 1934713408
          %v826 = vunpack.c.0.s8 %v825
          %v827 = vlaneseq
          %v828 = vshrl.u32 %v827, 7
          %v829 = vsub.s32 %v826, %v828
          %v830 = vrot.slane %v816, %v829
          %v831 = vcombine.high %v807, 0.0
          %v832 = vcombine.high %v814, 0.0
          %v833 = vcombine.high %v823, 0.0
          %v834 = vcombine.high %v830, 0.0
          %v835 = vcombine.low %v739, %v746
          %v837 = vunpack.c.l.s4 1983009808
          %v838 = vunpack.c.0.s8 %v837
          %v839 = vlaneseq
          %v840 = vshrl.u32 %v839, 7
          %v841 = vsub.s32 %v838, %v840
          %v842 = vrot.slane %v835, %v841
          %v843 = vcombine.low %v763, %v764
          %v845 = vunpack.c.l.s4 1983009808
          %v846 = vunpack.c.0.s8 %v845
          %v847 = vlaneseq
          %v848 = vshrl.u32 %v847, 7
          %v849 = vsub.s32 %v846, %v848
          %v850 = vrot.slane %v843, %v849
          %v851 = vcombine.low %v755, %v762
          %v853 = vunpack.c.l.s4 1983009808
          %v854 = vunpack.c.0.s8 %v853
          %v855 = vlaneseq
          %v856 = vshrl.u32 %v855, 7
          %v857 = vsub.s32 %v854, %v856
          %v858 = vrot.slane %v851, %v857
          %v859 = vcombine.low %v765, %v766
          %v861 = vunpack.c.l.s4 1983009808
          %v862 = vunpack.c.0.s8 %v861
          %v863 = vlaneseq
          %v864 = vshrl.u32 %v863, 7
          %v865 = vsub.s32 %v862, %v864
          %v866 = vrot.slane %v859, %v865
          %v867 = vcombine.low %v842, %v850
          %v868 = vcombine.high %v842, %v850
          %v870 = vunpack.c.l.s4 1934713408
          %v871 = vunpack.c.0.s8 %v870
          %v872 = vlaneseq
          %v873 = vshrl.u32 %v872, 7
          %v874 = vsub.s32 %v871, %v873
          %v875 = vrot.slane %v867, %v874
          %v877 = vunpack.c.l.s4 1934713408
          %v878 = vunpack.c.0.s8 %v877
          %v879 = vlaneseq
          %v880 = vshrl.u32 %v879, 7
          %v881 = vsub.s32 %v878, %v880
          %v882 = vrot.slane %v868, %v881
          %v883 = vcombine.low %v858, %v866
          %v884 = vcombine.high %v858, %v866
          %v886 = vunpack.c.l.s4 1934713408
          %v887 = vunpack.c.0.s8 %v886
          %v888 = vlaneseq
          %v889 = vshrl.u32 %v888, 7
          %v890 = vsub.s32 %v887, %v889
          %v891 = vrot.slane %v883, %v890
          %v893 = vunpack.c.l.s4 1934713408
          %v894 = vunpack.c.0.s8 %v893
          %v895 = vlaneseq
          %v896 = vshrl.u32 %v895, 7
          %v897 = vsub.s32 %v894, %v896
          %v898 = vrot.slane %v884, %v897
          %v899 = vcombine.low %v875, %v891
          %v900 = vcombine.high %v875, %v891
          %v901 = vcombine.low %v882, %v898
          %v902 = vcombine.high %v882, %v898
          %v903 = vcombine.low %v807, %v814
          %v905 = vunpack.c.l.s4 1983009808
          %v906 = vunpack.c.0.s8 %v905
          %v907 = vlaneseq
          %v908 = vshrl.u32 %v907, 7
          %v909 = vsub.s32 %v906, %v908
          %v910 = vrot.slane %v903, %v909
          %v911 = vcombine.low %v831, %v832
          %v913 = vunpack.c.l.s4 1983009808
          %v914 = vunpack.c.0.s8 %v913
          %v915 = vlaneseq
          %v916 = vshrl.u32 %v915, 7
          %v917 = vsub.s32 %v914, %v916
          %v918 = vrot.slane %v911, %v917
          %v919 = vcombine.low %v823, %v830
          %v921 = vunpack.c.l.s4 1983009808
          %v922 = vunpack.c.0.s8 %v921
          %v923 = vlaneseq
          %v924 = vshrl.u32 %v923, 7
          %v925 = vsub.s32 %v922, %v924
          %v926 = vrot.slane %v919, %v925
          %v927 = vcombine.low %v833, %v834
          %v929 = vunpack.c.l.s4 1983009808
          %v930 = vunpack.c.0.s8 %v929
          %v931 = vlaneseq
          %v932 = vshrl.u32 %v931, 7
          %v933 = vsub.s32 %v930, %v932
          %v934 = vrot.slane %v927, %v933
          %v935 = vcombine.low %v910, %v918
          %v936 = vcombine.high %v910, %v918
          %v938 = vunpack.c.l.s4 1934713408
          %v939 = vunpack.c.0.s8 %v938
          %v940 = vlaneseq
          %v941 = vshrl.u32 %v940, 7
          %v942 = vsub.s32 %v939, %v941
          %v943 = vrot.slane %v935, %v942
          %v945 = vunpack.c.l.s4 1934713408
          %v946 = vunpack.c.0.s8 %v945
          %v947 = vlaneseq
          %v948 = vshrl.u32 %v947, 7
          %v949 = vsub.s32 %v946, %v948
          %v950 = vrot.slane %v936, %v949
          %v951 = vcombine.low %v926, %v934
          %v952 = vcombine.high %v926, %v934
          %v954 = vunpack.c.l.s4 1934713408
          %v955 = vunpack.c.0.s8 %v954
          %v956 = vlaneseq
          %v957 = vshrl.u32 %v956, 7
          %v958 = vsub.s32 %v955, %v957
          %v959 = vrot.slane %v951, %v958
          %v961 = vunpack.c.l.s4 1934713408
          %v962 = vunpack.c.0.s8 %v961
          %v963 = vlaneseq
          %v964 = vshrl.u32 %v963, 7
          %v965 = vsub.s32 %v962, %v964
          %v966 = vrot.slane %v952, %v965
          %v967 = vcombine.low %v943, %v959
          %v968 = vcombine.high %v943, %v959
          %v969 = vcombine.low %v950, %v966
          %v970 = vcombine.high %v950, %v966
          %v971 = vpack.c.bf16 %v967, %v899
          %v972 = vpack.c.bf16 %v968, %v900
          %v973 = vpack.c.bf16 %v969, %v901
          %v974 = vpack.c.bf16 %v970, %v902
          %vm975 = vcmask 64512
          %976 = vst.msk [vmem:[#allocation2] sm:$0xff] %vm975, %v971
          %977 = vst.msk [vmem:[#allocation2 + $0x8] sm:$0xff] %vm975, %v972
          %978 = vst.msk [vmem:[#allocation2 + $0x10] sm:$0xff] %vm975, %v973
          %979 = vst.msk [vmem:[#allocation2 + $0x18] sm:$0xff] %vm975, %v974
          %980 = vrot.lane.b32.xlu0 %v673, 96
          %v981 = vpop.permute.xlu0 %980
          %982 = vrot.lane.b32.xlu0 %v676, 96
          %v983 = vpop.permute.xlu0 %982
          %984 = vrot.lane.b32.xlu0 %v682, 96
          %v985 = vpop.permute.xlu0 %984
          %986 = vrot.lane.b32.xlu0 %v684, 96
          %v987 = vpop.permute.xlu0 %986
          %988 = vrot.lane.b32.xlu0 %v688, 96
          %v989 = vpop.permute.xlu0 %988
          %990 = vrot.lane.b32.xlu0 %v690, 96
          %v991 = vpop.permute.xlu0 %990
          %992 = vrot.lane.b32.xlu0 %v694, 96
          %v993 = vpop.permute.xlu0 %992
          %994 = vrot.lane.b32.xlu0 %v696, 96
          %v995 = vpop.permute.xlu0 %994
          %v1004 = vcombine.low %v981, %v989
          %v1005 = vcombine.high %v981, %v989
          %v1007 = vunpack.c.l.s4 1983009808
          %v1008 = vunpack.c.0.s8 %v1007
          %v1009 = vlaneseq
          %v1010 = vshrl.u32 %v1009, 7
          %v1011 = vsub.s32 %v1008, %v1010
          %v1012 = vrot.slane %v1004, %v1011
          %v1014 = vunpack.c.l.s4 1983009808
          %v1015 = vunpack.c.0.s8 %v1014
          %v1016 = vlaneseq
          %v1017 = vshrl.u32 %v1016, 7
          %v1018 = vsub.s32 %v1015, %v1017
          %v1019 = vrot.slane %v1005, %v1018
          %v1020 = vcombine.low %v985, %v993
          %v1021 = vcombine.high %v985, %v993
          %v1023 = vunpack.c.l.s4 1983009808
          %v1024 = vunpack.c.0.s8 %v1023
          %v1025 = vlaneseq
          %v1026 = vshrl.u32 %v1025, 7
          %v1027 = vsub.s32 %v1024, %v1026
          %v1028 = vrot.slane %v1020, %v1027
          %v1030 = vunpack.c.l.s4 1983009808
          %v1031 = vunpack.c.0.s8 %v1030
          %v1032 = vlaneseq
          %v1033 = vshrl.u32 %v1032, 7
          %v1034 = vsub.s32 %v1031, %v1033
          %v1035 = vrot.slane %v1021, %v1034
          %v1036 = vcombine.low %v1012, %v1028
          %v1037 = vcombine.high %v1012, %v1028
          %v1039 = vunpack.c.l.s4 1934713408
          %v1040 = vunpack.c.0.s8 %v1039
          %v1041 = vlaneseq
          %v1042 = vshrl.u32 %v1041, 7
          %v1043 = vsub.s32 %v1040, %v1042
          %v1044 = vrot.slane %v1036, %v1043
          %v1046 = vunpack.c.l.s4 1934713408
          %v1047 = vunpack.c.0.s8 %v1046
          %v1048 = vlaneseq
          %v1049 = vshrl.u32 %v1048, 7
          %v1050 = vsub.s32 %v1047, %v1049
          %v1051 = vrot.slane %v1037, %v1050
          %v1052 = vcombine.low %v1019, %v1035
          %v1053 = vcombine.high %v1019, %v1035
          %v1055 = vunpack.c.l.s4 1934713408
          %v1056 = vunpack.c.0.s8 %v1055
          %v1057 = vlaneseq
          %v1058 = vshrl.u32 %v1057, 7
          %v1059 = vsub.s32 %v1056, %v1058
          %v1060 = vrot.slane %v1052, %v1059
          %v1062 = vunpack.c.l.s4 1934713408
          %v1063 = vunpack.c.0.s8 %v1062
          %v1064 = vlaneseq
          %v1065 = vshrl.u32 %v1064, 7
          %v1066 = vsub.s32 %v1063, %v1065
          %v1067 = vrot.slane %v1053, %v1066
          %v1068 = vcombine.high %v1044, 0.0
          %v1069 = vcombine.high %v1051, 0.0
          %v1070 = vcombine.high %v1060, 0.0
          %v1071 = vcombine.high %v1067, 0.0
          %v1072 = vcombine.low %v983, %v991
          %v1073 = vcombine.high %v983, %v991
          %v1075 = vunpack.c.l.s4 1983009808
          %v1076 = vunpack.c.0.s8 %v1075
          %v1077 = vlaneseq
          %v1078 = vshrl.u32 %v1077, 7
          %v1079 = vsub.s32 %v1076, %v1078
          %v1080 = vrot.slane %v1072, %v1079
          %v1082 = vunpack.c.l.s4 1983009808
          %v1083 = vunpack.c.0.s8 %v1082
          %v1084 = vlaneseq
          %v1085 = vshrl.u32 %v1084, 7
          %v1086 = vsub.s32 %v1083, %v1085
          %v1087 = vrot.slane %v1073, %v1086
          %v1088 = vcombine.low %v987, %v995
          %v1089 = vcombine.high %v987, %v995
          %v1091 = vunpack.c.l.s4 1983009808
          %v1092 = vunpack.c.0.s8 %v1091
          %v1093 = vlaneseq
          %v1094 = vshrl.u32 %v1093, 7
          %v1095 = vsub.s32 %v1092, %v1094
          %v1096 = vrot.slane %v1088, %v1095
          %v1098 = vunpack.c.l.s4 1983009808
          %v1099 = vunpack.c.0.s8 %v1098
          %v1100 = vlaneseq
          %v1101 = vshrl.u32 %v1100, 7
          %v1102 = vsub.s32 %v1099, %v1101
          %v1103 = vrot.slane %v1089, %v1102
          %v1104 = vcombine.low %v1080, %v1096
          %v1105 = vcombine.high %v1080, %v1096
          %v1107 = vunpack.c.l.s4 1934713408
          %v1108 = vunpack.c.0.s8 %v1107
          %v1109 = vlaneseq
          %v1110 = vshrl.u32 %v1109, 7
          %v1111 = vsub.s32 %v1108, %v1110
          %v1112 = vrot.slane %v1104, %v1111
          %v1114 = vunpack.c.l.s4 1934713408
          %v1115 = vunpack.c.0.s8 %v1114
          %v1116 = vlaneseq
          %v1117 = vshrl.u32 %v1116, 7
          %v1118 = vsub.s32 %v1115, %v1117
          %v1119 = vrot.slane %v1105, %v1118
          %v1120 = vcombine.low %v1087, %v1103
          %v1121 = vcombine.high %v1087, %v1103
          %v1123 = vunpack.c.l.s4 1934713408
          %v1124 = vunpack.c.0.s8 %v1123
          %v1125 = vlaneseq
          %v1126 = vshrl.u32 %v1125, 7
          %v1127 = vsub.s32 %v1124, %v1126
          %v1128 = vrot.slane %v1120, %v1127
          %v1130 = vunpack.c.l.s4 1934713408
          %v1131 = vunpack.c.0.s8 %v1130
          %v1132 = vlaneseq
          %v1133 = vshrl.u32 %v1132, 7
          %v1134 = vsub.s32 %v1131, %v1133
          %v1135 = vrot.slane %v1121, %v1134
          %v1136 = vcombine.high %v1112, 0.0
          %v1137 = vcombine.high %v1119, 0.0
          %v1138 = vcombine.high %v1128, 0.0
          %v1139 = vcombine.high %v1135, 0.0
          %v1140 = vcombine.low %v1044, %v1051
          %v1142 = vunpack.c.l.s4 1983009808
          %v1143 = vunpack.c.0.s8 %v1142
          %v1144 = vlaneseq
          %v1145 = vshrl.u32 %v1144, 7
          %v1146 = vsub.s32 %v1143, %v1145
          %v1147 = vrot.slane %v1140, %v1146
          %v1148 = vcombine.low %v1068, %v1069
          %v1150 = vunpack.c.l.s4 1983009808
          %v1151 = vunpack.c.0.s8 %v1150
          %v1152 = vlaneseq
          %v1153 = vshrl.u32 %v1152, 7
          %v1154 = vsub.s32 %v1151, %v1153
          %v1155 = vrot.slane %v1148, %v1154
          %v1156 = vcombine.low %v1060, %v1067
          %v1158 = vunpack.c.l.s4 1983009808
          %v1159 = vunpack.c.0.s8 %v1158
          %v1160 = vlaneseq
          %v1161 = vshrl.u32 %v1160, 7
          %v1162 = vsub.s32 %v1159, %v1161
          %v1163 = vrot.slane %v1156, %v1162
          %v1164 = vcombine.low %v1070, %v1071
          %v1166 = vunpack.c.l.s4 1983009808
          %v1167 = vunpack.c.0.s8 %v1166
          %v1168 = vlaneseq
          %v1169 = vshrl.u32 %v1168, 7
          %v1170 = vsub.s32 %v1167, %v1169
          %v1171 = vrot.slane %v1164, %v1170
          %v1172 = vcombine.low %v1147, %v1155
          %v1173 = vcombine.high %v1147, %v1155
          %v1175 = vunpack.c.l.s4 1934713408
          %v1176 = vunpack.c.0.s8 %v1175
          %v1177 = vlaneseq
          %v1178 = vshrl.u32 %v1177, 7
          %v1179 = vsub.s32 %v1176, %v1178
          %v1180 = vrot.slane %v1172, %v1179
          %v1182 = vunpack.c.l.s4 1934713408
          %v1183 = vunpack.c.0.s8 %v1182
          %v1184 = vlaneseq
          %v1185 = vshrl.u32 %v1184, 7
          %v1186 = vsub.s32 %v1183, %v1185
          %v1187 = vrot.slane %v1173, %v1186
          %v1188 = vcombine.low %v1163, %v1171
          %v1189 = vcombine.high %v1163, %v1171
          %v1191 = vunpack.c.l.s4 1934713408
          %v1192 = vunpack.c.0.s8 %v1191
          %v1193 = vlaneseq
          %v1194 = vshrl.u32 %v1193, 7
          %v1195 = vsub.s32 %v1192, %v1194
          %v1196 = vrot.slane %v1188, %v1195
          %v1198 = vunpack.c.l.s4 1934713408
          %v1199 = vunpack.c.0.s8 %v1198
          %v1200 = vlaneseq
          %v1201 = vshrl.u32 %v1200, 7
          %v1202 = vsub.s32 %v1199, %v1201
          %v1203 = vrot.slane %v1189, %v1202
          %v1204 = vcombine.low %v1180, %v1196
          %v1205 = vcombine.high %v1180, %v1196
          %v1206 = vcombine.low %v1187, %v1203
          %v1207 = vcombine.high %v1187, %v1203
          %v1208 = vcombine.low %v1112, %v1119
          %v1210 = vunpack.c.l.s4 1983009808
          %v1211 = vunpack.c.0.s8 %v1210
          %v1212 = vlaneseq
          %v1213 = vshrl.u32 %v1212, 7
          %v1214 = vsub.s32 %v1211, %v1213
          %v1215 = vrot.slane %v1208, %v1214
          %v1216 = vcombine.low %v1136, %v1137
          %v1218 = vunpack.c.l.s4 1983009808
          %v1219 = vunpack.c.0.s8 %v1218
          %v1220 = vlaneseq
          %v1221 = vshrl.u32 %v1220, 7
          %v1222 = vsub.s32 %v1219, %v1221
          %v1223 = vrot.slane %v1216, %v1222
          %v1224 = vcombine.low %v1128, %v1135
          %v1226 = vunpack.c.l.s4 1983009808
          %v1227 = vunpack.c.0.s8 %v1226
          %v1228 = vlaneseq
          %v1229 = vshrl.u32 %v1228, 7
          %v1230 = vsub.s32 %v1227, %v1229
          %v1231 = vrot.slane %v1224, %v1230
          %v1232 = vcombine.low %v1138, %v1139
          %v1234 = vunpack.c.l.s4 1983009808
          %v1235 = vunpack.c.0.s8 %v1234
          %v1236 = vlaneseq
          %v1237 = vshrl.u32 %v1236, 7
          %v1238 = vsub.s32 %v1235, %v1237
          %v1239 = vrot.slane %v1232, %v1238
          %v1240 = vcombine.low %v1215, %v1223
          %v1241 = vcombine.high %v1215, %v1223
          %v1243 = vunpack.c.l.s4 1934713408
          %v1244 = vunpack.c.0.s8 %v1243
          %v1245 = vlaneseq
          %v1246 = vshrl.u32 %v1245, 7
          %v1247 = vsub.s32 %v1244, %v1246
          %v1248 = vrot.slane %v1240, %v1247
          %v1250 = vunpack.c.l.s4 1934713408
          %v1251 = vunpack.c.0.s8 %v1250
          %v1252 = vlaneseq
          %v1253 = vshrl.u32 %v1252, 7
          %v1254 = vsub.s32 %v1251, %v1253
          %v1255 = vrot.slane %v1241, %v1254
          %v1256 = vcombine.low %v1231, %v1239
          %v1257 = vcombine.high %v1231, %v1239
          %v1259 = vunpack.c.l.s4 1934713408
          %v1260 = vunpack.c.0.s8 %v1259
          %v1261 = vlaneseq
          %v1262 = vshrl.u32 %v1261, 7
          %v1263 = vsub.s32 %v1260, %v1262
          %v1264 = vrot.slane %v1256, %v1263
          %v1266 = vunpack.c.l.s4 1934713408
          %v1267 = vunpack.c.0.s8 %v1266
          %v1268 = vlaneseq
          %v1269 = vshrl.u32 %v1268, 7
          %v1270 = vsub.s32 %v1267, %v1269
          %v1271 = vrot.slane %v1257, %v1270
          %v1272 = vcombine.low %v1248, %v1264
          %v1273 = vcombine.high %v1248, %v1264
          %v1274 = vcombine.low %v1255, %v1271
          %v1275 = vcombine.high %v1255, %v1271
          %v1276 = vpack.c.bf16 %v1272, %v1204
          %v1277 = vpack.c.bf16 %v1273, %v1205
          %v1278 = vpack.c.bf16 %v1274, %v1206
          %v1279 = vpack.c.bf16 %v1275, %v1207
          %1280 = vst.msk [vmem:[#allocation3] sm:$0xff] %vm975, %v1276
          %1281 = vst.msk [vmem:[#allocation3 + $0x8] sm:$0xff] %vm975, %v1277
          %1282 = vst.msk [vmem:[#allocation3 + $0x10] sm:$0xff] %vm975, %v1278
          %1283 = vst.msk [vmem:[#allocation3 + $0x18] sm:$0xff] %vm975, %v1279
        $region100: #{tpu_custom_call.1} parent=79 // pred_fallthru
          _
        %s1284 = smul.u32 %s37, 8
        %s1285 = scalar_lea.vmem %s557, %s1284
        %v1286 = vld [vmem:[%s1285] sm:$0xff]
        %v1287 = vld [vmem:[%s1] sm:$0x1]
        %v1288 = vld [vmem:[%s2] sm:$0x1]
        %vm1289 = vcmask 261120
        %v1290 = vsel %vm1289, %v1286, 0.0
        %1291 = vadd.xlane.f32.xlu0 %v1290
        %v1292 = vpop.xlane.xlu0 %1291
        %v1293 = vrcp.pop 32.0
        %v1294 = vmul.f32 %v1292, %v1293
        %v1295 = vsub.f32 %v1286, %v1294
        %v1296 = vmul.f32 %v1295, %v1295
        %v1297 = vsel %vm1289, %v1296, 0.0
        %1298 = vadd.xlane.f32.xlu0 %v1297
        %v1299 = vpop.xlane.xlu0 %1298
        %v1300 = vmul.f32 %v1299, %v1293
        %v1301 = vadd.f32 %v1300, 1e-05
        %v1302 = vrsqrt.pop %v1301
        %v1303 = vmul.f32 %v1295, %v1302
        %v1305 = vlaneseq
        %v1306 = vshrl.u32 %v1305, 7
        %v1307 = vsub.s32 0, %v1306
        %v1308 = vrot.slane %v1287, %v1307
        %v1310 = vmul.f32 %v1303, %v1308
        %v1312 = vlaneseq
        %v1313 = vshrl.u32 %v1312, 7
        %v1314 = vsub.s32 0, %v1313
        %v1315 = vrot.slane %v1288, %v1314
        %v1317 = vadd.f32 %v1310, %v1315
        %v1318 = vpack.c.bf16 %v1317, %v1317
        %v1319 = vld [vmem:[%s3] sm:$0xf]
        %v1320 = vld [vmem:[%s3 + $0x4] sm:$0xf]
        %v1321 = vld [vmem:[%s3 + $0x8] sm:$0xf]
        %v1322 = vld [vmem:[%s3 + $0xc] sm:$0xf]
        %v1323 = vld [vmem:[#allocation4] sm:$0x1]
        %v1325 = vlaneseq
        %v1326 = vshrl.u32 %v1325, 7
        %v1327 = vsub.s32 0, %v1326
        %v1328 = vrot.slane %v1323, %v1327
        %v1334 = vunpack.c.l.b16 %v1319
        %v1335 = vunpack.c.l.b16 %v1320
        %v1336 = vunpack.c.l.b16 %v1321
        %v1337 = vunpack.c.l.b16 %v1322
        %v1338 = vpack.c.b16 %v1335, %v1334
        %v1339 = vpack.c.b16 %v1337, %v1336
        %v1343 = vsel %vm1289, %v1318, 0
        %1345 = vmatprep.subr.bf16.mxu0 0
        %1346 = vmatpush1.bf16.msra.mxu0 %v1338
        %1347 = vmatprep.subr.bf16.mxu0 0
        %1348 = vmatpush1.bf16.msra.mxu0 %v1339
        %1349 = vmatprep.subr.bf16.mxu0 0
        %1350 = vmatpush1.bf16.msra.mxu0 0
        %1351 = vmatprep.subr.bf16.mxu0 0
        %1352 = vmatpush1.bf16.msra.mxu0 0
        %1353 = vmatprep.subr.bf16.mxu0 0
        %1354 = vmatpush1.bf16.msra.mxu0 0
        %1355 = vmatprep.subr.bf16.mxu0 0
        %1356 = vmatpush1.bf16.msra.mxu0 0
        %1357 = vmatprep.subr.bf16.mxu0 0
        %1358 = vmatpush1.bf16.msra.mxu0 0
        %1359 = vmatprep.subr.bf16.mxu0 0
        %1360 = vmatpush1.bf16.msra.mxu0 0
        %1361 = vmatprep.subr.bf16.mxu0 0
        %1362 = vmatpush1.bf16.msra.mxu0 0
        %1363 = vmatprep.subr.bf16.mxu0 0
        %1364 = vmatpush1.bf16.msra.mxu0 0
        %1365 = vmatprep.subr.bf16.mxu0 0
        %1366 = vmatpush1.bf16.msra.mxu0 0
        %1367 = vmatprep.subr.bf16.mxu0 0
        %1368 = vmatpush1.bf16.msra.mxu0 0
        %1369 = vmatprep.subr.bf16.mxu0 0
        %1370 = vmatpush1.bf16.msra.mxu0 0
        %1371 = vmatprep.subr.bf16.mxu0 0
        %1372 = vmatpush1.bf16.msra.mxu0 0
        %1373 = vmatprep.subr.bf16.mxu0 0
        %1374 = vmatpush1.bf16.msra.mxu0 0
        %1375 = vmatprep.subr.bf16.mxu0 0
        %1376 = vmatpush1.bf16.msra.mxu0 0
        %1377 = vmatprep.mubr.bf16.mxu0 0
        %1378 = vmatmul.mubr.bf16.gmra.mrb[0].mxu0 %v1343
        %v1379 = vpop.f32.mrb[0].mxu0
        %v1380 = vadd.f32 %v1328, %v1379
        %v1381 = vpop.f32.mrb[0].mxu0
        %v1382 = vpop.f32.mrb[0].mxu0
        %v1383 = vpop.f32.mrb[0].mxu0
        %1384 = vdwg.mxu0
        %1386 = vrot.lane.b32.xlu0 %v1380, 120
        %v1387 = vpop.permute.xlu0 %1386
        %1389 = vrot.lane.b32.xlu0 %v1380, 112
        %v1390 = vpop.permute.xlu0 %1389
        %1392 = vrot.lane.b32.xlu0 %v1380, 104
        %v1393 = vpop.permute.xlu0 %1392
        %v1395 = vcombine.low %v1380, %v1390
        %v1396 = vcombine.high %v1380, %v1390
        %v1398 = vunpack.c.l.s4 1983009808
        %v1399 = vunpack.c.0.s8 %v1398
        %v1400 = vlaneseq
        %v1401 = vshrl.u32 %v1400, 7
        %v1402 = vsub.s32 %v1399, %v1401
        %v1403 = vrot.slane %v1395, %v1402
        %v1405 = vunpack.c.l.s4 1983009808
        %v1406 = vunpack.c.0.s8 %v1405
        %v1407 = vlaneseq
        %v1408 = vshrl.u32 %v1407, 7
        %v1409 = vsub.s32 %v1406, %v1408
        %v1410 = vrot.slane %v1396, %v1409
        %v1411 = vcombine.low %v1387, %v1393
        %v1412 = vcombine.high %v1387, %v1393
        %v1414 = vunpack.c.l.s4 1983009808
        %v1415 = vunpack.c.0.s8 %v1414
        %v1416 = vlaneseq
        %v1417 = vshrl.u32 %v1416, 7
        %v1418 = vsub.s32 %v1415, %v1417
        %v1419 = vrot.slane %v1411, %v1418
        %v1421 = vunpack.c.l.s4 1983009808
        %v1422 = vunpack.c.0.s8 %v1421
        %v1423 = vlaneseq
        %v1424 = vshrl.u32 %v1423, 7
        %v1425 = vsub.s32 %v1422, %v1424
        %v1426 = vrot.slane %v1412, %v1425
        %v1427 = vcombine.low %v1403, %v1419
        %v1428 = vcombine.high %v1403, %v1419
        %v1430 = vunpack.c.l.s4 1934713408
        %v1431 = vunpack.c.0.s8 %v1430
        %v1432 = vlaneseq
        %v1433 = vshrl.u32 %v1432, 7
        %v1434 = vsub.s32 %v1431, %v1433
        %v1435 = vrot.slane %v1427, %v1434
        %v1437 = vunpack.c.l.s4 1934713408
        %v1438 = vunpack.c.0.s8 %v1437
        %v1439 = vlaneseq
        %v1440 = vshrl.u32 %v1439, 7
        %v1441 = vsub.s32 %v1438, %v1440
        %v1442 = vrot.slane %v1428, %v1441
        %v1443 = vcombine.low %v1410, %v1426
        %v1444 = vcombine.high %v1410, %v1426
        %v1446 = vunpack.c.l.s4 1934713408
        %v1447 = vunpack.c.0.s8 %v1446
        %v1448 = vlaneseq
        %v1449 = vshrl.u32 %v1448, 7
        %v1450 = vsub.s32 %v1447, %v1449
        %v1451 = vrot.slane %v1443, %v1450
        %v1453 = vunpack.c.l.s4 1934713408
        %v1454 = vunpack.c.0.s8 %v1453
        %v1455 = vlaneseq
        %v1456 = vshrl.u32 %v1455, 7
        %v1457 = vsub.s32 %v1454, %v1456
        %v1458 = vrot.slane %v1444, %v1457
        %v1459 = vcombine.high %v1435, 0.0
        %v1460 = vcombine.high %v1442, 0.0
        %v1461 = vcombine.high %v1451, 0.0
        %v1462 = vcombine.high %v1458, 0.0
        %v1463 = vcombine.low %v1435, %v1442
        %v1465 = vunpack.c.l.s4 1983009808
        %v1466 = vunpack.c.0.s8 %v1465
        %v1467 = vlaneseq
        %v1468 = vshrl.u32 %v1467, 7
        %v1469 = vsub.s32 %v1466, %v1468
        %v1470 = vrot.slane %v1463, %v1469
        %v1471 = vcombine.low %v1459, %v1460
        %v1473 = vunpack.c.l.s4 1983009808
        %v1474 = vunpack.c.0.s8 %v1473
        %v1475 = vlaneseq
        %v1476 = vshrl.u32 %v1475, 7
        %v1477 = vsub.s32 %v1474, %v1476
        %v1478 = vrot.slane %v1471, %v1477
        %v1479 = vcombine.low %v1451, %v1458
        %v1481 = vunpack.c.l.s4 1983009808
        %v1482 = vunpack.c.0.s8 %v1481
        %v1483 = vlaneseq
        %v1484 = vshrl.u32 %v1483, 7
        %v1485 = vsub.s32 %v1482, %v1484
        %v1486 = vrot.slane %v1479, %v1485
        %v1487 = vcombine.low %v1461, %v1462
        %v1489 = vunpack.c.l.s4 1983009808
        %v1490 = vunpack.c.0.s8 %v1489
        %v1491 = vlaneseq
        %v1492 = vshrl.u32 %v1491, 7
        %v1493 = vsub.s32 %v1490, %v1492
        %v1494 = vrot.slane %v1487, %v1493
        %v1495 = vcombine.low %v1470, %v1478
        %v1496 = vcombine.high %v1470, %v1478
        %v1498 = vunpack.c.l.s4 1934713408
        %v1499 = vunpack.c.0.s8 %v1498
        %v1500 = vlaneseq
        %v1501 = vshrl.u32 %v1500, 7
        %v1502 = vsub.s32 %v1499, %v1501
        %v1503 = vrot.slane %v1495, %v1502
        %v1505 = vunpack.c.l.s4 1934713408
        %v1506 = vunpack.c.0.s8 %v1505
        %v1507 = vlaneseq
        %v1508 = vshrl.u32 %v1507, 7
        %v1509 = vsub.s32 %v1506, %v1508
        %v1510 = vrot.slane %v1496, %v1509
        %v1511 = vcombine.low %v1486, %v1494
        %v1512 = vcombine.high %v1486, %v1494
        %v1514 = vunpack.c.l.s4 1934713408
        %v1515 = vunpack.c.0.s8 %v1514
        %v1516 = vlaneseq
        %v1517 = vshrl.u32 %v1516, 7
        %v1518 = vsub.s32 %v1515, %v1517
        %v1519 = vrot.slane %v1511, %v1518
        %v1521 = vunpack.c.l.s4 1934713408
        %v1522 = vunpack.c.0.s8 %v1521
        %v1523 = vlaneseq
        %v1524 = vshrl.u32 %v1523, 7
        %v1525 = vsub.s32 %v1522, %v1524
        %v1526 = vrot.slane %v1512, %v1525
        %v1527 = vcombine.low %v1503, %v1519
        %v1528 = vcombine.high %v1503, %v1519
        %v1529 = vcombine.low %v1510, %v1526
        %v1530 = vcombine.high %v1510, %v1526
        %v1531 = vpack.c.bf16 %v1527, %v1527
        %v1532 = vpack.c.bf16 %v1528, %v1528
        %v1533 = vpack.c.bf16 %v1529, %v1529
        %v1534 = vpack.c.bf16 %v1530, %v1530
        %v1535 = vld [vmem:[#allocation2] sm:$0xff]
        %v1536 = vld [vmem:[#allocation2 + $0x8] sm:$0xff]
        %v1537 = vld [vmem:[#allocation2 + $0x10] sm:$0xff]
        %v1538 = vld [vmem:[#allocation2 + $0x18] sm:$0xff]
        %vm1539 = vcmask 64512
        %v1541 = vsel %vm1539, %v1531, 0
        %v1544 = vsel %vm1539, %v1535, 0
        %1546 = vmatprep.subr.bf16.mxu0 0
        %1547 = vmatpush1.bf16.xpose.msra.mxu0 %v1544
        %1548 = vmatprep.subr.bf16.mxu0 0
        %1549 = vmatpush1.bf16.xpose.msra.mxu0 0
        %1550 = vmatprep.subr.bf16.mxu0 0
        %1551 = vmatpush1.bf16.xpose.msra.mxu0 0
        %1552 = vmatprep.subr.bf16.mxu0 0
        %1553 = vmatpush1.bf16.xpose.msra.mxu0 0
        %1554 = vmatprep.subr.bf16.mxu0 0
        %1555 = vmatpush1.bf16.xpose.msra.mxu0 0
        %1556 = vmatprep.subr.bf16.mxu0 0
        %1557 = vmatpush1.bf16.xpose.msra.mxu0 0
        %1558 = vmatprep.subr.bf16.mxu0 0
        %1559 = vmatpush1.bf16.xpose.msra.mxu0 0
        %1560 = vmatprep.subr.bf16.mxu0 0
        %1561 = vmatpush1.bf16.xpose.msra.mxu0 0
        %1562 = vmatprep.subr.bf16.mxu0 0
        %1563 = vmatpush1.bf16.xpose.msra.mxu0 0
        %1564 = vmatprep.subr.bf16.mxu0 0
        %1565 = vmatpush1.bf16.xpose.msra.mxu0 0
        %1566 = vmatprep.subr.bf16.mxu0 0
        %1567 = vmatpush1.bf16.xpose.msra.mxu0 0
        %1568 = vmatprep.subr.bf16.mxu0 0
        %1569 = vmatpush1.bf16.xpose.msra.mxu0 0
        %1570 = vmatprep.subr.bf16.mxu0 0
        %1571 = vmatpush1.bf16.xpose.msra.mxu0 0
        %1572 = vmatprep.subr.bf16.mxu0 0
        %1573 = vmatpush1.bf16.xpose.msra.mxu0 0
        %1574 = vmatprep.subr.bf16.mxu0 0
        %1575 = vmatpush1.bf16.xpose.msra.mxu0 0
        %1576 = vmatprep.subr.bf16.mxu0 0
        %1577 = vmatpush1.bf16.xpose.msra.mxu0 0
        %1578 = vmatprep.mubr.bf16.mxu0 0
        %1579 = vmatmul.mubr.bf16.gmra.mrb[0].mxu0 %v1541
        %v1580 = vpop.f32.mrb[0].mxu0
        %v1581 = vadd.f32 0.0, %v1580
        %v1582 = vpop.f32.mrb[0].mxu0
        %v1583 = vpop.f32.mrb[0].mxu0
        %v1584 = vpop.f32.mrb[0].mxu0
        %1585 = vdwg.mxu0
        %v1587 = vsel %vm1539, %v1532, 0
        %v1590 = vsel %vm1539, %v1536, 0
        %1592 = vmatprep.subr.bf16.mxu0 0
        %1593 = vmatpush1.bf16.xpose.msra.mxu0 %v1590
        %1594 = vmatprep.subr.bf16.mxu0 0
        %1595 = vmatpush1.bf16.xpose.msra.mxu0 0
        %1596 = vmatprep.subr.bf16.mxu0 0
        %1597 = vmatpush1.bf16.xpose.msra.mxu0 0
        %1598 = vmatprep.subr.bf16.mxu0 0
        %1599 = vmatpush1.bf16.xpose.msra.mxu0 0
        %1600 = vmatprep.subr.bf16.mxu0 0
        %1601 = vmatpush1.bf16.xpose.msra.mxu0 0
        %1602 = vmatprep.subr.bf16.mxu0 0
        %1603 = vmatpush1.bf16.xpose.msra.mxu0 0
        %1604 = vmatprep.subr.bf16.mxu0 0
        %1605 = vmatpush1.bf16.xpose.msra.mxu0 0
        %1606 = vmatprep.subr.bf16.mxu0 0
        %1607 = vmatpush1.bf16.xpose.msra.mxu0 0
        %1608 = vmatprep.subr.bf16.mxu0 0
        %1609 = vmatpush1.bf16.xpose.msra.mxu0 0
        %1610 = vmatprep.subr.bf16.mxu0 0
        %1611 = vmatpush1.bf16.xpose.msra.mxu0 0
        %1612 = vmatprep.subr.bf16.mxu0 0
        %1613 = vmatpush1.bf16.xpose.msra.mxu0 0
        %1614 = vmatprep.subr.bf16.mxu0 0
        %1615 = vmatpush1.bf16.xpose.msra.mxu0 0
        %1616 = vmatprep.subr.bf16.mxu0 0
        %1617 = vmatpush1.bf16.xpose.msra.mxu0 0
        %1618 = vmatprep.subr.bf16.mxu0 0
        %1619 = vmatpush1.bf16.xpose.msra.mxu0 0
        %1620 = vmatprep.subr.bf16.mxu0 0
        %1621 = vmatpush1.bf16.xpose.msra.mxu0 0
        %1622 = vmatprep.subr.bf16.mxu0 0
        %1623 = vmatpush1.bf16.xpose.msra.mxu0 0
        %1624 = vmatprep.mubr.bf16.mxu0 0
        %1625 = vmatmul.mubr.bf16.gmra.mrb[0].mxu0 %v1587
        %v1626 = vpop.f32.mrb[0].mxu0
        %v1627 = vadd.f32 0.0, %v1626
        %v1628 = vpop.f32.mrb[0].mxu0
        %v1629 = vpop.f32.mrb[0].mxu0
        %v1630 = vpop.f32.mrb[0].mxu0
        %1631 = vdwg.mxu0
        %v1633 = vsel %vm1539, %v1533, 0
        %v1636 = vsel %vm1539, %v1537, 0
        %1638 = vmatprep.subr.bf16.mxu0 0
        %1639 = vmatpush1.bf16.xpose.msra.mxu0 %v1636
        %1640 = vmatprep.subr.bf16.mxu0 0
        %1641 = vmatpush1.bf16.xpose.msra.mxu0 0
        %1642 = vmatprep.subr.bf16.mxu0 0
        %1643 = vmatpush1.bf16.xpose.msra.mxu0 0
        %1644 = vmatprep.subr.bf16.mxu0 0
        %1645 = vmatpush1.bf16.xpose.msra.mxu0 0
        %1646 = vmatprep.subr.bf16.mxu0 0
        %1647 = vmatpush1.bf16.xpose.msra.mxu0 0
        %1648 = vmatprep.subr.bf16.mxu0 0
        %1649 = vmatpush1.bf16.xpose.msra.mxu0 0
        %1650 = vmatprep.subr.bf16.mxu0 0
        %1651 = vmatpush1.bf16.xpose.msra.mxu0 0
        %1652 = vmatprep.subr.bf16.mxu0 0
        %1653 = vmatpush1.bf16.xpose.msra.mxu0 0
        %1654 = vmatprep.subr.bf16.mxu0 0
        %1655 = vmatpush1.bf16.xpose.msra.mxu0 0
        %1656 = vmatprep.subr.bf16.mxu0 0
        %1657 = vmatpush1.bf16.xpose.msra.mxu0 0
        %1658 = vmatprep.subr.bf16.mxu0 0
        %1659 = vmatpush1.bf16.xpose.msra.mxu0 0
        %1660 = vmatprep.subr.bf16.mxu0 0
        %1661 = vmatpush1.bf16.xpose.msra.mxu0 0
        %1662 = vmatprep.subr.bf16.mxu0 0
        %1663 = vmatpush1.bf16.xpose.msra.mxu0 0
        %1664 = vmatprep.subr.bf16.mxu0 0
        %1665 = vmatpush1.bf16.xpose.msra.mxu0 0
        %1666 = vmatprep.subr.bf16.mxu0 0
        %1667 = vmatpush1.bf16.xpose.msra.mxu0 0
        %1668 = vmatprep.subr.bf16.mxu0 0
        %1669 = vmatpush1.bf16.xpose.msra.mxu0 0
        %1670 = vmatprep.mubr.bf16.mxu0 0
        %1671 = vmatmul.mubr.bf16.gmra.mrb[0].mxu0 %v1633
        %v1672 = vpop.f32.mrb[0].mxu0
        %v1673 = vadd.f32 0.0, %v1672
        %v1674 = vpop.f32.mrb[0].mxu0
        %v1675 = vpop.f32.mrb[0].mxu0
        %v1676 = vpop.f32.mrb[0].mxu0
        %1677 = vdwg.mxu0
        %v1679 = vsel %vm1539, %v1534, 0
        %v1682 = vsel %vm1539, %v1538, 0
        %1684 = vmatprep.subr.bf16.mxu0 0
        %1685 = vmatpush1.bf16.xpose.msra.mxu0 %v1682
        %1686 = vmatprep.subr.bf16.mxu0 0
        %1687 = vmatpush1.bf16.xpose.msra.mxu0 0
        %1688 = vmatprep.subr.bf16.mxu0 0
        %1689 = vmatpush1.bf16.xpose.msra.mxu0 0
        %1690 = vmatprep.subr.bf16.mxu0 0
        %1691 = vmatpush1.bf16.xpose.msra.mxu0 0
        %1692 = vmatprep.subr.bf16.mxu0 0
        %1693 = vmatpush1.bf16.xpose.msra.mxu0 0
        %1694 = vmatprep.subr.bf16.mxu0 0
        %1695 = vmatpush1.bf16.xpose.msra.mxu0 0
        %1696 = vmatprep.subr.bf16.mxu0 0
        %1697 = vmatpush1.bf16.xpose.msra.mxu0 0
        %1698 = vmatprep.subr.bf16.mxu0 0
        %1699 = vmatpush1.bf16.xpose.msra.mxu0 0
        %1700 = vmatprep.subr.bf16.mxu0 0
        %1701 = vmatpush1.bf16.xpose.msra.mxu0 0
        %1702 = vmatprep.subr.bf16.mxu0 0
        %1703 = vmatpush1.bf16.xpose.msra.mxu0 0
        %1704 = vmatprep.subr.bf16.mxu0 0
        %1705 = vmatpush1.bf16.xpose.msra.mxu0 0
        %1706 = vmatprep.subr.bf16.mxu0 0
        %1707 = vmatpush1.bf16.xpose.msra.mxu0 0
        %1708 = vmatprep.subr.bf16.mxu0 0
        %1709 = vmatpush1.bf16.xpose.msra.mxu0 0
        %1710 = vmatprep.subr.bf16.mxu0 0
        %1711 = vmatpush1.bf16.xpose.msra.mxu0 0
        %1712 = vmatprep.subr.bf16.mxu0 0
        %1713 = vmatpush1.bf16.xpose.msra.mxu0 0
        %1714 = vmatprep.subr.bf16.mxu0 0
        %1715 = vmatpush1.bf16.xpose.msra.mxu0 0
        %1716 = vmatprep.mubr.bf16.mxu0 0
        %1717 = vmatmul.mubr.bf16.gmra.mrb[0].mxu0 %v1679
        %v1718 = vpop.f32.mrb[0].mxu0
        %v1719 = vadd.f32 0.0, %v1718
        %v1720 = vpop.f32.mrb[0].mxu0
        %v1721 = vpop.f32.mrb[0].mxu0
        %v1722 = vpop.f32.mrb[0].mxu0
        %1723 = vdwg.mxu0
        %v1724 = vmul.f32 %v1581, 0.35355338
        %v1725 = vmul.f32 %v1627, 0.35355338
        %v1726 = vmul.f32 %v1673, 0.35355338
        %v1727 = vmul.f32 %v1719, 0.35355338
        %vm1728 = vcmask 130048
        %v1729 = vsel %vm1728, %v1724, -inf
        %1730 = vmax.xlane.f32.xlu0 %v1729
        %v1731 = vpop.xlane.xlu0 %1730
        %v1732 = vsel %vm1728, %v1725, -inf
        %1733 = vmax.xlane.f32.xlu0 %v1732
        %v1734 = vpop.xlane.xlu0 %1733
        %v1735 = vsel %vm1728, %v1726, -inf
        %1736 = vmax.xlane.f32.xlu0 %v1735
        %v1737 = vpop.xlane.xlu0 %1736
        %v1738 = vsel %vm1728, %v1727, -inf
        %1739 = vmax.xlane.f32.xlu0 %v1738
        %v1740 = vpop.xlane.xlu0 %1739
        %v1741 = vsub.f32 %v1724, %v1731
        %v1742 = vsub.f32 %v1725, %v1734
        %v1743 = vsub.f32 %v1726, %v1737
        %v1744 = vsub.f32 %v1727, %v1740
        %v1745 = vpack.c.bf16 %v1741, %v1741
        %v1746 = vpack.c.bf16 %v1742, %v1742
        %v1747 = vpack.c.bf16 %v1743, %v1743
        %v1748 = vpack.c.bf16 %v1744, %v1744
        %v1750 = vmul.bf16 %v1745, 1069105081
        %v1751 = vpow.bf16.pop %v1750
        %v1753 = vmul.bf16 %v1746, 1069105081
        %v1754 = vpow.bf16.pop %v1753
        %v1756 = vmul.bf16 %v1747, 1069105081
        %v1757 = vpow.bf16.pop %v1756
        %v1759 = vmul.bf16 %v1748, 1069105081
        %v1760 = vpow.bf16.pop %v1759
        %v1761 = vunpack.c.l.bf16 %v1751
        %v1762 = vunpack.c.l.bf16 %v1754
        %v1763 = vunpack.c.l.bf16 %v1757
        %v1764 = vunpack.c.l.bf16 %v1760
        %v1765 = vsel %vm1728, %v1761, 0.0
        %1766 = vadd.xlane.f32.xlu0 %v1765
        %v1767 = vpop.xlane.xlu0 %1766
        %v1768 = vsel %vm1728, %v1762, 0.0
        %1769 = vadd.xlane.f32.xlu0 %v1768
        %v1770 = vpop.xlane.xlu0 %1769
        %v1771 = vsel %vm1728, %v1763, 0.0
        %1772 = vadd.xlane.f32.xlu0 %v1771
        %v1773 = vpop.xlane.xlu0 %1772
        %v1774 = vsel %vm1728, %v1764, 0.0
        %1775 = vadd.xlane.f32.xlu0 %v1774
        %v1776 = vpop.xlane.xlu0 %1775
        %v1777 = vld [vmem:[#allocation3] sm:$0xff]
        %v1778 = vld [vmem:[#allocation3 + $0x8] sm:$0xff]
        %v1779 = vld [vmem:[#allocation3 + $0x10] sm:$0xff]
        %v1780 = vld [vmem:[#allocation3 + $0x18] sm:$0xff]
        %v1782 = vsel %vm1728, %v1751, 0
        %1784 = vmatprep.subr.bf16.mxu0 0
        %1785 = vmatpush1.bf16.msra.mxu0 %v1777
        %1786 = vmatprep.subr.bf16.mxu0 0
        %1787 = vmatpush1.bf16.msra.mxu0 0
        %1788 = vmatprep.subr.bf16.mxu0 0
        %1789 = vmatpush1.bf16.msra.mxu0 0
        %1790 = vmatprep.subr.bf16.mxu0 0
        %1791 = vmatpush1.bf16.msra.mxu0 0
        %1792 = vmatprep.subr.bf16.mxu0 0
        %1793 = vmatpush1.bf16.msra.mxu0 0
        %1794 = vmatprep.subr.bf16.mxu0 0
        %1795 = vmatpush1.bf16.msra.mxu0 0
        %1796 = vmatprep.subr.bf16.mxu0 0
        %1797 = vmatpush1.bf16.msra.mxu0 0
        %1798 = vmatprep.subr.bf16.mxu0 0
        %1799 = vmatpush1.bf16.msra.mxu0 0
        %1800 = vmatprep.subr.bf16.mxu0 0
        %1801 = vmatpush1.bf16.msra.mxu0 0
        %1802 = vmatprep.subr.bf16.mxu0 0
        %1803 = vmatpush1.bf16.msra.mxu0 0
        %1804 = vmatprep.subr.bf16.mxu0 0
        %1805 = vmatpush1.bf16.msra.mxu0 0
        %1806 = vmatprep.subr.bf16.mxu0 0
        %1807 = vmatpush1.bf16.msra.mxu0 0
        %1808 = vmatprep.subr.bf16.mxu0 0
        %1809 = vmatpush1.bf16.msra.mxu0 0
        %1810 = vmatprep.subr.bf16.mxu0 0
        %1811 = vmatpush1.bf16.msra.mxu0 0
        %1812 = vmatprep.subr.bf16.mxu0 0
        %1813 = vmatpush1.bf16.msra.mxu0 0
        %1814 = vmatprep.subr.bf16.mxu0 0
        %1815 = vmatpush1.bf16.msra.mxu0 0
        %1816 = vmatprep.mubr.bf16.mxu0 0
        %1817 = vmatmul.mubr.bf16.gmra.mrb[0].mxu0 %v1782
        %v1818 = vpop.f32.mrb[0].mxu0
        %v1819 = vadd.f32 0.0, %v1818
        %v1820 = vpop.f32.mrb[0].mxu0
        %v1821 = vpop.f32.mrb[0].mxu0
        %v1822 = vpop.f32.mrb[0].mxu0
        %1823 = vdwg.mxu0
        %v1825 = vsel %vm1728, %v1754, 0
        %1827 = vmatprep.subr.bf16.mxu0 0
        %1828 = vmatpush1.bf16.msra.mxu0 %v1778
        %1829 = vmatprep.subr.bf16.mxu0 0
        %1830 = vmatpush1.bf16.msra.mxu0 0
        %1831 = vmatprep.subr.bf16.mxu0 0
        %1832 = vmatpush1.bf16.msra.mxu0 0
        %1833 = vmatprep.subr.bf16.mxu0 0
        %1834 = vmatpush1.bf16.msra.mxu0 0
        %1835 = vmatprep.subr.bf16.mxu0 0
        %1836 = vmatpush1.bf16.msra.mxu0 0
        %1837 = vmatprep.subr.bf16.mxu0 0
        %1838 = vmatpush1.bf16.msra.mxu0 0
        %1839 = vmatprep.subr.bf16.mxu0 0
        %1840 = vmatpush1.bf16.msra.mxu0 0
        %1841 = vmatprep.subr.bf16.mxu0 0
        %1842 = vmatpush1.bf16.msra.mxu0 0
        %1843 = vmatprep.subr.bf16.mxu0 0
        %1844 = vmatpush1.bf16.msra.mxu0 0
        %1845 = vmatprep.subr.bf16.mxu0 0
        %1846 = vmatpush1.bf16.msra.mxu0 0
        %1847 = vmatprep.subr.bf16.mxu0 0
        %1848 = vmatpush1.bf16.msra.mxu0 0
        %1849 = vmatprep.subr.bf16.mxu0 0
        %1850 = vmatpush1.bf16.msra.mxu0 0
        %1851 = vmatprep.subr.bf16.mxu0 0
        %1852 = vmatpush1.bf16.msra.mxu0 0
        %1853 = vmatprep.subr.bf16.mxu0 0
        %1854 = vmatpush1.bf16.msra.mxu0 0
        %1855 = vmatprep.subr.bf16.mxu0 0
        %1856 = vmatpush1.bf16.msra.mxu0 0
        %1857 = vmatprep.subr.bf16.mxu0 0
        %1858 = vmatpush1.bf16.msra.mxu0 0
        %1859 = vmatprep.mubr.bf16.mxu0 0
        %1860 = vmatmul.mubr.bf16.gmra.mrb[0].mxu0 %v1825
        %v1861 = vpop.f32.mrb[0].mxu0
        %v1862 = vadd.f32 0.0, %v1861
        %v1863 = vpop.f32.mrb[0].mxu0
        %v1864 = vpop.f32.mrb[0].mxu0
        %v1865 = vpop.f32.mrb[0].mxu0
        %1866 = vdwg.mxu0
        %v1868 = vsel %vm1728, %v1757, 0
        %1870 = vmatprep.subr.bf16.mxu0 0
        %1871 = vmatpush1.bf16.msra.mxu0 %v1779
        %1872 = vmatprep.subr.bf16.mxu0 0
        %1873 = vmatpush1.bf16.msra.mxu0 0
        %1874 = vmatprep.subr.bf16.mxu0 0
        %1875 = vmatpush1.bf16.msra.mxu0 0
        %1876 = vmatprep.subr.bf16.mxu0 0
        %1877 = vmatpush1.bf16.msra.mxu0 0
        %1878 = vmatprep.subr.bf16.mxu0 0
        %1879 = vmatpush1.bf16.msra.mxu0 0
        %1880 = vmatprep.subr.bf16.mxu0 0
        %1881 = vmatpush1.bf16.msra.mxu0 0
        %1882 = vmatprep.subr.bf16.mxu0 0
        %1883 = vmatpush1.bf16.msra.mxu0 0
        %1884 = vmatprep.subr.bf16.mxu0 0
        %1885 = vmatpush1.bf16.msra.mxu0 0
        %1886 = vmatprep.subr.bf16.mxu0 0
        %1887 = vmatpush1.bf16.msra.mxu0 0
        %1888 = vmatprep.subr.bf16.mxu0 0
        %1889 = vmatpush1.bf16.msra.mxu0 0
        %1890 = vmatprep.subr.bf16.mxu0 0
        %1891 = vmatpush1.bf16.msra.mxu0 0
        %1892 = vmatprep.subr.bf16.mxu0 0
        %1893 = vmatpush1.bf16.msra.mxu0 0
        %1894 = vmatprep.subr.bf16.mxu0 0
        %1895 = vmatpush1.bf16.msra.mxu0 0
        %1896 = vmatprep.subr.bf16.mxu0 0
        %1897 = vmatpush1.bf16.msra.mxu0 0
        %1898 = vmatprep.subr.bf16.mxu0 0
        %1899 = vmatpush1.bf16.msra.mxu0 0
        %1900 = vmatprep.subr.bf16.mxu0 0
        %1901 = vmatpush1.bf16.msra.mxu0 0
        %1902 = vmatprep.mubr.bf16.mxu0 0
        %1903 = vmatmul.mubr.bf16.gmra.mrb[0].mxu0 %v1868
        %v1904 = vpop.f32.mrb[0].mxu0
        %v1905 = vadd.f32 0.0, %v1904
        %v1906 = vpop.f32.mrb[0].mxu0
        %v1907 = vpop.f32.mrb[0].mxu0
        %v1908 = vpop.f32.mrb[0].mxu0
        %1909 = vdwg.mxu0
        %v1911 = vsel %vm1728, %v1760, 0
        %1913 = vmatprep.subr.bf16.mxu0 0
        %1914 = vmatpush1.bf16.msra.mxu0 %v1780
        %1915 = vmatprep.subr.bf16.mxu0 0
        %1916 = vmatpush1.bf16.msra.mxu0 0
        %1917 = vmatprep.subr.bf16.mxu0 0
        %1918 = vmatpush1.bf16.msra.mxu0 0
        %1919 = vmatprep.subr.bf16.mxu0 0
        %1920 = vmatpush1.bf16.msra.mxu0 0
        %1921 = vmatprep.subr.bf16.mxu0 0
        %1922 = vmatpush1.bf16.msra.mxu0 0
        %1923 = vmatprep.subr.bf16.mxu0 0
        %1924 = vmatpush1.bf16.msra.mxu0 0
        %1925 = vmatprep.subr.bf16.mxu0 0
        %1926 = vmatpush1.bf16.msra.mxu0 0
        %1927 = vmatprep.subr.bf16.mxu0 0
        %1928 = vmatpush1.bf16.msra.mxu0 0
        %1929 = vmatprep.subr.bf16.mxu0 0
        %1930 = vmatpush1.bf16.msra.mxu0 0
        %1931 = vmatprep.subr.bf16.mxu0 0
        %1932 = vmatpush1.bf16.msra.mxu0 0
        %1933 = vmatprep.subr.bf16.mxu0 0
        %1934 = vmatpush1.bf16.msra.mxu0 0
        %1935 = vmatprep.subr.bf16.mxu0 0
        %1936 = vmatpush1.bf16.msra.mxu0 0
        %1937 = vmatprep.subr.bf16.mxu0 0
        %1938 = vmatpush1.bf16.msra.mxu0 0
        %1939 = vmatprep.subr.bf16.mxu0 0
        %1940 = vmatpush1.bf16.msra.mxu0 0
        %1941 = vmatprep.subr.bf16.mxu0 0
        %1942 = vmatpush1.bf16.msra.mxu0 0
        %1943 = vmatprep.subr.bf16.mxu0 0
        %1944 = vmatpush1.bf16.msra.mxu0 0
        %1945 = vmatprep.mubr.bf16.mxu0 0
        %1946 = vmatmul.mubr.bf16.gmra.mrb[0].mxu0 %v1911
        %v1947 = vpop.f32.mrb[0].mxu0
        %v1948 = vadd.f32 0.0, %v1947
        %v1949 = vpop.f32.mrb[0].mxu0
        %v1950 = vpop.f32.mrb[0].mxu0
        %v1951 = vpop.f32.mrb[0].mxu0
        %1952 = vdwg.mxu0
        %v1953 = vrcp.pop %v1767
        %v1954 = vrcp.pop %v1770
        %v1955 = vrcp.pop %v1773
        %v1956 = vrcp.pop %v1776
        %v1957 = vmul.f32 %v1819, %v1953
        %v1958 = vmul.f32 %v1862, %v1954
        %v1959 = vmul.f32 %v1905, %v1955
        %v1960 = vmul.f32 %v1948, %v1956
        %v1961 = vpack.c.bf16 %v1957, %v1957
        %v1963 = vunpack.c.l.s4 1983009808
        %v1964 = vunpack.c.0.s8 %v1963
        %v1965 = vlaneseq
        %v1966 = vshrl.u32 %v1965, 7
        %v1967 = vsub.s32 %v1964, %v1966
        %v1968 = vrot.slane %v1961, %v1967
        %v1969 = vpack.c.bf16 %v1959, %v1959
        %v1971 = vunpack.c.l.s4 1983009808
        %v1972 = vunpack.c.0.s8 %v1971
        %v1973 = vlaneseq
        %v1974 = vshrl.u32 %v1973, 7
        %v1975 = vsub.s32 %v1972, %v1974
        %v1976 = vrot.slane %v1969, %v1975
        %v1977 = vcombine.low %v1968, %v1976
        %v1978 = vcombine.high %v1968, %v1976
        %v1980 = vunpack.c.l.s4 1934713408
        %v1981 = vunpack.c.0.s8 %v1980
        %v1982 = vlaneseq
        %v1983 = vshrl.u32 %v1982, 7
        %v1984 = vsub.s32 %v1981, %v1983
        %v1985 = vrot.slane %v1977, %v1984
        %v1987 = vunpack.c.l.s4 1934713408
        %v1988 = vunpack.c.0.s8 %v1987
        %v1989 = vlaneseq
        %v1990 = vshrl.u32 %v1989, 7
        %v1991 = vsub.s32 %v1988, %v1990
        %v1992 = vrot.slane %v1978, %v1991
        %v1993 = vcombine.high %v1985, 0
        %v1994 = vcombine.high %v1992, 0
        %v1995 = vpack.c.bf16 %v1958, %v1958
        %v1997 = vunpack.c.l.s4 1983009808
        %v1998 = vunpack.c.0.s8 %v1997
        %v1999 = vlaneseq
        %v2000 = vshrl.u32 %v1999, 7
        %v2001 = vsub.s32 %v1998, %v2000
        %v2002 = vrot.slane %v1995, %v2001
        %v2003 = vpack.c.bf16 %v1960, %v1960
        %v2005 = vunpack.c.l.s4 1983009808
        %v2006 = vunpack.c.0.s8 %v2005
        %v2007 = vlaneseq
        %v2008 = vshrl.u32 %v2007, 7
        %v2009 = vsub.s32 %v2006, %v2008
        %v2010 = vrot.slane %v2003, %v2009
        %v2011 = vcombine.low %v2002, %v2010
        %v2012 = vcombine.high %v2002, %v2010
        %v2014 = vunpack.c.l.s4 1934713408
        %v2015 = vunpack.c.0.s8 %v2014
        %v2016 = vlaneseq
        %v2017 = vshrl.u32 %v2016, 7
        %v2018 = vsub.s32 %v2015, %v2017
        %v2019 = vrot.slane %v2011, %v2018
        %v2021 = vunpack.c.l.s4 1934713408
        %v2022 = vunpack.c.0.s8 %v2021
        %v2023 = vlaneseq
        %v2024 = vshrl.u32 %v2023, 7
        %v2025 = vsub.s32 %v2022, %v2024
        %v2026 = vrot.slane %v2012, %v2025
        %v2027 = vcombine.high %v2019, 0
        %v2028 = vcombine.high %v2026, 0
        %v2031 = vpack.i.b16 %v2019, %v1985
        %v2033 = vshrl.u32 %v1985, 16
        %v2034 = vshrl.u32 %v2019, 16
        %v2035 = vpack.i.b16 %v2034, %v2033
        %v2039 = vpack.i.b16 %v2027, %v1993
        %v2041 = vshrl.u32 %v1993, 16
        %v2042 = vshrl.u32 %v2027, 16
        %v2043 = vpack.i.b16 %v2042, %v2041
        %v2047 = vpack.i.b16 %v2026, %v1992
        %v2049 = vshrl.u32 %v1992, 16
        %v2050 = vshrl.u32 %v2026, 16
        %v2051 = vpack.i.b16 %v2050, %v2049
        %v2055 = vpack.i.b16 %v2028, %v1994
        %v2057 = vshrl.u32 %v1994, 16
        %v2058 = vshrl.u32 %v2028, 16
        %v2059 = vpack.i.b16 %v2058, %v2057
        %v2061 = vcombine.low %v2031, %v2047
        %v2063 = vunpack.c.l.s4 1983009808
        %v2064 = vunpack.c.0.s8 %v2063
        %v2065 = vlaneseq
        %v2066 = vshrl.u32 %v2065, 7
        %v2067 = vsub.s32 %v2064, %v2066
        %v2068 = vrot.slane %v2061, %v2067
        %v2069 = vcombine.low %v2039, %v2055
        %v2071 = vunpack.c.l.s4 1983009808
        %v2072 = vunpack.c.0.s8 %v2071
        %v2073 = vlaneseq
        %v2074 = vshrl.u32 %v2073, 7
        %v2075 = vsub.s32 %v2072, %v2074
        %v2076 = vrot.slane %v2069, %v2075
        %v2077 = vcombine.low %v2068, %v2076
        %v2079 = vunpack.c.l.s4 1934713408
        %v2080 = vunpack.c.0.s8 %v2079
        %v2081 = vlaneseq
        %v2082 = vshrl.u32 %v2081, 7
        %v2083 = vsub.s32 %v2080, %v2082
        %v2084 = vrot.slane %v2077, %v2083
        %v2085 = vcombine.high %v2084, 0
        %v2086 = vcombine.low %v2035, %v2051
        %v2088 = vunpack.c.l.s4 1983009808
        %v2089 = vunpack.c.0.s8 %v2088
        %v2090 = vlaneseq
        %v2091 = vshrl.u32 %v2090, 7
        %v2092 = vsub.s32 %v2089, %v2091
        %v2093 = vrot.slane %v2086, %v2092
        %v2094 = vcombine.low %v2043, %v2059
        %v2096 = vunpack.c.l.s4 1983009808
        %v2097 = vunpack.c.0.s8 %v2096
        %v2098 = vlaneseq
        %v2099 = vshrl.u32 %v2098, 7
        %v2100 = vsub.s32 %v2097, %v2099
        %v2101 = vrot.slane %v2094, %v2100
        %v2102 = vcombine.low %v2093, %v2101
        %v2104 = vunpack.c.l.s4 1934713408
        %v2105 = vunpack.c.0.s8 %v2104
        %v2106 = vlaneseq
        %v2107 = vshrl.u32 %v2106, 7
        %v2108 = vsub.s32 %v2105, %v2107
        %v2109 = vrot.slane %v2102, %v2108
        %v2110 = vcombine.high %v2109, 0
        %v2113 = vpack.i.b16 %v2109, %v2084
        %v2114 = vshrl.u32 %v2084, 16
        %v2115 = vshrl.u32 %v2109, 16
        %v2116 = vpack.i.b16 %v2115, %v2114
        %v2119 = vpack.i.b16 %v2110, %v2085
        %v2120 = vshrl.u32 %v2085, 16
        %v2121 = vshrl.u32 %v2110, 16
        %v2122 = vpack.i.b16 %v2121, %v2120
        %2123 = vrot.lane.b32.xlu0 %v2116, 8
        %v2124 = vpop.permute.xlu0 %2123
        %2125 = vrot.lane.b32.xlu0 %v2119, 16
        %v2126 = vpop.permute.xlu0 %2125
        %2127 = vrot.lane.b32.xlu0 %v2122, 24
        %v2128 = vpop.permute.xlu0 %2127
        %v2131 = vsel %vm1539, %v2113, %v2124
        %v2133 = vsel %vm1728, %v2131, %v2126
        %vm2134 = vcmask 195584
        %v2136 = vsel %vm2134, %v2133, %v2128
        %v2137 = vld [vmem:[%s7] sm:$0xf]
        %v2138 = vld [vmem:[%s7 + $0x4] sm:$0xf]
        %v2139 = vld [vmem:[%s7 + $0x8] sm:$0xf]
        %v2140 = vld [vmem:[%s7 + $0xc] sm:$0xf]
        %v2141 = vld [vmem:[#allocation9] sm:$0x1]
        %v2143 = vlaneseq
        %v2144 = vshrl.u32 %v2143, 7
        %v2145 = vsub.s32 0, %v2144
        %v2146 = vrot.slane %v2141, %v2145
        %v2152 = vunpack.c.l.b16 %v2137
        %v2153 = vunpack.c.l.b16 %v2138
        %v2154 = vunpack.c.l.b16 %v2139
        %v2155 = vunpack.c.l.b16 %v2140
        %v2156 = vpack.c.b16 %v2153, %v2152
        %v2157 = vpack.c.b16 %v2155, %v2154
        %v2160 = vsel %vm1289, %v2136, 0
        %2162 = vmatprep.subr.bf16.mxu0 0
        %2163 = vmatpush1.bf16.msra.mxu0 %v2156
        %2164 = vmatprep.subr.bf16.mxu0 0
        %2165 = vmatpush1.bf16.msra.mxu0 %v2157
        %2166 = vmatprep.subr.bf16.mxu0 0
        %2167 = vmatpush1.bf16.msra.mxu0 0
        %2168 = vmatprep.subr.bf16.mxu0 0
        %2169 = vmatpush1.bf16.msra.mxu0 0
        %2170 = vmatprep.subr.bf16.mxu0 0
        %2171 = vmatpush1.bf16.msra.mxu0 0
        %2172 = vmatprep.subr.bf16.mxu0 0
        %2173 = vmatpush1.bf16.msra.mxu0 0
        %2174 = vmatprep.subr.bf16.mxu0 0
        %2175 = vmatpush1.bf16.msra.mxu0 0
        %2176 = vmatprep.subr.bf16.mxu0 0
        %2177 = vmatpush1.bf16.msra.mxu0 0
        %2178 = vmatprep.subr.bf16.mxu0 0
        %2179 = vmatpush1.bf16.msra.mxu0 0
        %2180 = vmatprep.subr.bf16.mxu0 0
        %2181 = vmatpush1.bf16.msra.mxu0 0
        %2182 = vmatprep.subr.bf16.mxu0 0
        %2183 = vmatpush1.bf16.msra.mxu0 0
        %2184 = vmatprep.subr.bf16.mxu0 0
        %2185 = vmatpush1.bf16.msra.mxu0 0
        %2186 = vmatprep.subr.bf16.mxu0 0
        %2187 = vmatpush1.bf16.msra.mxu0 0
        %2188 = vmatprep.subr.bf16.mxu0 0
        %2189 = vmatpush1.bf16.msra.mxu0 0
        %2190 = vmatprep.subr.bf16.mxu0 0
        %2191 = vmatpush1.bf16.msra.mxu0 0
        %2192 = vmatprep.subr.bf16.mxu0 0
        %2193 = vmatpush1.bf16.msra.mxu0 0
        %2194 = vmatprep.mubr.bf16.mxu0 0
        %2195 = vmatmul.mubr.bf16.gmra.mrb[0].mxu0 %v2160
        %v2196 = vpop.f32.mrb[0].mxu0
        %v2197 = vadd.f32 %v2146, %v2196
        %v2198 = vpop.f32.mrb[0].mxu0
        %v2199 = vpop.f32.mrb[0].mxu0
        %v2200 = vpop.f32.mrb[0].mxu0
        %2201 = vdwg.mxu0
        %v2202 = vadd.f32 %v2197, %v1286
        %v2203 = vld [vmem:[#allocation10] sm:$0x1]
        %v2204 = vld [vmem:[%s10] sm:$0x1]
        %v2205 = vsel %vm1289, %v2202, 0.0
        %2206 = vadd.xlane.f32.xlu0 %v2205
        %v2207 = vpop.xlane.xlu0 %2206
        %v2208 = vmul.f32 %v2207, %v1293
        %v2209 = vsub.f32 %v2202, %v2208
        %v2210 = vmul.f32 %v2209, %v2209
        %v2211 = vsel %vm1289, %v2210, 0.0
        %2212 = vadd.xlane.f32.xlu0 %v2211
        %v2213 = vpop.xlane.xlu0 %2212
        %v2214 = vmul.f32 %v2213, %v1293
        %v2215 = vadd.f32 %v2214, 1e-05
        %v2216 = vrsqrt.pop %v2215
        %v2217 = vmul.f32 %v2209, %v2216
        %v2219 = vlaneseq
        %v2220 = vshrl.u32 %v2219, 7
        %v2221 = vsub.s32 0, %v2220
        %v2222 = vrot.slane %v2203, %v2221
        %v2224 = vmul.f32 %v2217, %v2222
        %v2226 = vlaneseq
        %v2227 = vshrl.u32 %v2226, 7
        %v2228 = vsub.s32 0, %v2227
        %v2229 = vrot.slane %v2204, %v2228
        %v2231 = vadd.f32 %v2224, %v2229
        %v2232 = vpack.c.bf16 %v2231, %v2231
        %v2233 = vld [vmem:[%s11] sm:$0xf]
        %v2234 = vld [vmem:[%s11 + $0x4] sm:$0xf]
        %v2235 = vld [vmem:[%s11 + $0x8] sm:$0xf]
        %v2236 = vld [vmem:[%s11 + $0xc] sm:$0xf]
        %v2237 = vld [vmem:[%s12] sm:$0x1]
        %v2239 = vlaneseq
        %v2240 = vshrl.u32 %v2239, 7
        %v2241 = vsub.s32 0, %v2240
        %v2242 = vrot.slane %v2237, %v2241
        %v2248 = vunpack.c.l.b16 %v2233
        %v2249 = vunpack.c.l.b16 %v2234
        %v2250 = vunpack.c.l.b16 %v2235
        %v2251 = vunpack.c.l.b16 %v2236
        %v2252 = vpack.c.b16 %v2249, %v2248
        %v2253 = vpack.c.b16 %v2251, %v2250
        %v2257 = vsel %vm1289, %v2232, 0
        %2259 = vmatprep.subr.bf16.mxu0 0
        %2260 = vmatpush1.bf16.msra.mxu0 %v2252
        %2261 = vmatprep.subr.bf16.mxu0 0
        %2262 = vmatpush1.bf16.msra.mxu0 %v2253
        %2263 = vmatprep.subr.bf16.mxu0 0
        %2264 = vmatpush1.bf16.msra.mxu0 0
        %2265 = vmatprep.subr.bf16.mxu0 0
        %2266 = vmatpush1.bf16.msra.mxu0 0
        %2267 = vmatprep.subr.bf16.mxu0 0
        %2268 = vmatpush1.bf16.msra.mxu0 0
        %2269 = vmatprep.subr.bf16.mxu0 0
        %2270 = vmatpush1.bf16.msra.mxu0 0
        %2271 = vmatprep.subr.bf16.mxu0 0
        %2272 = vmatpush1.bf16.msra.mxu0 0
        %2273 = vmatprep.subr.bf16.mxu0 0
        %2274 = vmatpush1.bf16.msra.mxu0 0
        %2275 = vmatprep.subr.bf16.mxu0 0
        %2276 = vmatpush1.bf16.msra.mxu0 0
        %2277 = vmatprep.subr.bf16.mxu0 0
        %2278 = vmatpush1.bf16.msra.mxu0 0
        %2279 = vmatprep.subr.bf16.mxu0 0
        %2280 = vmatpush1.bf16.msra.mxu0 0
        %2281 = vmatprep.subr.bf16.mxu0 0
        %2282 = vmatpush1.bf16.msra.mxu0 0
        %2283 = vmatprep.subr.bf16.mxu0 0
        %2284 = vmatpush1.bf16.msra.mxu0 0
        %2285 = vmatprep.subr.bf16.mxu0 0
        %2286 = vmatpush1.bf16.msra.mxu0 0
        %2287 = vmatprep.subr.bf16.mxu0 0
        %2288 = vmatpush1.bf16.msra.mxu0 0
        %2289 = vmatprep.subr.bf16.mxu0 0
        %2290 = vmatpush1.bf16.msra.mxu0 0
        %2291 = vmatprep.mubr.bf16.mxu0 0
        %2292 = vmatmul.mubr.bf16.gmra.mrb[0].mxu0 %v2257
        %v2293 = vpop.f32.mrb[0].mxu0
        %v2294 = vadd.f32 %v2242, %v2293
        %v2295 = vpop.f32.mrb[0].mxu0
        %v2296 = vpop.f32.mrb[0].mxu0
        %v2297 = vpop.f32.mrb[0].mxu0
        %2298 = vdwg.mxu0
        %v2299 = vmul.f32 %v2294, %v2294
        %v2300 = vmul.f32 %v2294, %v2299
        %v2301 = vmul.f32 %v2300, 0.044715
        %v2302 = vadd.f32 %v2294, %v2301
        %v2303 = vmul.f32 %v2302, 0.7978846
        %v2304 = vtanh.pop %v2303
        %v2305 = vadd.f32 %v2304, 1.0
        %v2306 = vmul.f32 %v2305, 0.5
        %v2307 = vmul.f32 %v2294, %v2306
        %v2308 = vpack.c.bf16 %v2307, %v2307
        %v2309 = vld [vmem:[%s13] sm:$0xf]
        %v2310 = vld [vmem:[%s13 + $0x4] sm:$0xf]
        %v2311 = vld [vmem:[%s13 + $0x8] sm:$0xf]
        %v2312 = vld [vmem:[%s13 + $0xc] sm:$0xf]
        %v2313 = vld [vmem:[%s13 + $0x10] sm:$0xf]
        %v2314 = vld [vmem:[%s13 + $0x14] sm:$0xf]
        %v2315 = vld [vmem:[%s13 + $0x18] sm:$0xf]
        %v2316 = vld [vmem:[%s13 + $0x1c] sm:$0xf]
        %v2317 = vld [vmem:[%s13 + $0x20] sm:$0xf]
        %v2318 = vld [vmem:[%s13 + $0x24] sm:$0xf]
        %v2319 = vld [vmem:[%s13 + $0x28] sm:$0xf]
        %v2320 = vld [vmem:[%s13 + $0x2c] sm:$0xf]
        %v2321 = vld [vmem:[%s13 + $0x30] sm:$0xf]
        %v2322 = vld [vmem:[%s13 + $0x34] sm:$0xf]
        %v2323 = vld [vmem:[%s13 + $0x38] sm:$0xf]
        %v2324 = vld [vmem:[%s13 + $0x3c] sm:$0xf]
        %v2325 = vld [vmem:[%s14] sm:$0x1]
        %v2327 = vlaneseq
        %v2328 = vshrl.u32 %v2327, 7
        %v2329 = vsub.s32 0, %v2328
        %v2330 = vrot.slane %v2325, %v2329
        %v2348 = vunpack.c.l.b16 %v2309
        %v2349 = vunpack.c.l.b16 %v2310
        %v2350 = vunpack.c.l.b16 %v2311
        %v2351 = vunpack.c.l.b16 %v2312
        %v2352 = vunpack.c.l.b16 %v2313
        %v2353 = vunpack.c.l.b16 %v2314
        %v2354 = vunpack.c.l.b16 %v2315
        %v2355 = vunpack.c.l.b16 %v2316
        %v2356 = vunpack.c.l.b16 %v2317
        %v2357 = vunpack.c.l.b16 %v2318
        %v2358 = vunpack.c.l.b16 %v2319
        %v2359 = vunpack.c.l.b16 %v2320
        %v2360 = vunpack.c.l.b16 %v2321
        %v2361 = vunpack.c.l.b16 %v2322
        %v2362 = vunpack.c.l.b16 %v2323
        %v2363 = vunpack.c.l.b16 %v2324
        %v2364 = vpack.c.b16 %v2349, %v2348
        %v2365 = vpack.c.b16 %v2351, %v2350
        %v2366 = vpack.c.b16 %v2353, %v2352
        %v2367 = vpack.c.b16 %v2355, %v2354
        %v2368 = vpack.c.b16 %v2357, %v2356
        %v2369 = vpack.c.b16 %v2359, %v2358
        %v2370 = vpack.c.b16 %v2361, %v2360
        %v2371 = vpack.c.b16 %v2363, %v2362
        %2380 = vmatprep.subr.bf16.mxu0 0
        %2381 = vmatpush1.bf16.msra.mxu0 %v2364
        %2382 = vmatprep.subr.bf16.mxu0 0
        %2383 = vmatpush1.bf16.msra.mxu0 %v2365
        %2384 = vmatprep.subr.bf16.mxu0 0
        %2385 = vmatpush1.bf16.msra.mxu0 %v2366
        %2386 = vmatprep.subr.bf16.mxu0 0
        %2387 = vmatpush1.bf16.msra.mxu0 %v2367
        %2388 = vmatprep.subr.bf16.mxu0 0
        %2389 = vmatpush1.bf16.msra.mxu0 %v2368
        %2390 = vmatprep.subr.bf16.mxu0 0
        %2391 = vmatpush1.bf16.msra.mxu0 %v2369
        %2392 = vmatprep.subr.bf16.mxu0 0
        %2393 = vmatpush1.bf16.msra.mxu0 %v2370
        %2394 = vmatprep.subr.bf16.mxu0 0
        %2395 = vmatpush1.bf16.msra.mxu0 %v2371
        %2396 = vmatprep.subr.bf16.mxu0 0
        %2397 = vmatpush1.bf16.msra.mxu0 0
        %2398 = vmatprep.subr.bf16.mxu0 0
        %2399 = vmatpush1.bf16.msra.mxu0 0
        %2400 = vmatprep.subr.bf16.mxu0 0
        %2401 = vmatpush1.bf16.msra.mxu0 0
        %2402 = vmatprep.subr.bf16.mxu0 0
        %2403 = vmatpush1.bf16.msra.mxu0 0
        %2404 = vmatprep.subr.bf16.mxu0 0
        %2405 = vmatpush1.bf16.msra.mxu0 0
        %2406 = vmatprep.subr.bf16.mxu0 0
        %2407 = vmatpush1.bf16.msra.mxu0 0
        %2408 = vmatprep.subr.bf16.mxu0 0
        %2409 = vmatpush1.bf16.msra.mxu0 0
        %2410 = vmatprep.subr.bf16.mxu0 0
        %2411 = vmatpush1.bf16.msra.mxu0 0
        %2412 = vmatprep.mubr.bf16.mxu0 0
        %2413 = vmatmul.mubr.bf16.gmra.mrb[0].mxu0 %v2308
        %v2414 = vpop.f32.mrb[0].mxu0
        %v2415 = vadd.f32 %v2330, %v2414
        %v2416 = vpop.f32.mrb[0].mxu0
        %v2417 = vpop.f32.mrb[0].mxu0
        %v2418 = vpop.f32.mrb[0].mxu0
        %2419 = vdwg.mxu0
        %v2420 = vadd.f32 %v2415, %v2202
        %2421 = vst.msk [vmem:[%s552] sm:$0xff] %vm1289, %v2420
        %s2422 = sand.u32 %s374, 1
        %s2423 = scalar_lea.sflag [#allocation6], %s2422
        %s2424 = sand.u32 %s374, 1
        %s2425 = smul.addr %s2424, 8
        %s2426 = scalar_lea.vmem [#allocation12], %s2425
        // Predicated region
        $region101: #{tpu_custom_call.1} parent=79 // pred_check
          %p2427 = pneg %p384
        $region102: #{tpu_custom_call.1} parent=79 // pred_check_branch
          %2429 = sbr.rel (%p2427) target = $region104
        $region103: #{tpu_custom_call.1} parent=79 // pred_region
          %s2431 = ssub.s32 128, 128
          %2432 = vsyncadd %s2423, %s2431
          %s2433 = smul.addr %s36, 2
          %s2434 = sadd.s32 %s37, %s2433
          %s2435 = smul.addr %s2434, 128
          %s2436 = scalar_lea.hbm %s15, %s2435
          %s2438 = sshll.u32 %s2426, 4
          %s2439 = int_to_ptr.vmem [resolvable:$true] %s2438
          %2441 = dma.vmem_to_hbm [thread:$0]  %s2439, 128, %s2436, %s2423
        $region104: #{tpu_custom_call.1} parent=79 // pred_fallthru
          _
      $region80: #{tpu_custom_call.1} parent=5 // pred_fallthru
        _
      %p2442 = scmp.le.s32.totalorder 2, %s27
      // Predicated region
      $region105: #{tpu_custom_call.1} parent=5 // pred_check
        %p2443 = pneg %p2442
      $region106: #{tpu_custom_call.1} parent=5 // pred_check_branch
        %2445 = sbr.rel (%p2443) target = $region108
      $region107: #{tpu_custom_call.1} parent=5 // pred_region
        %s2446 = ssub.s32 %s27, 2
        // Predicated region
        $region109: #{tpu_custom_call.1} parent=107 // pred_check
          %p2447 = pneg %p390
        $region110: #{tpu_custom_call.1} parent=107 // pred_check_branch
          %2449 = sbr.rel (%p2447) target = $region112
        $region111: #{tpu_custom_call.1} parent=107 // pred_region
          %s2450 = sand.u32 %s375, 1
          %s2451 = scalar_lea.sflag [#allocation6], %s2450
          %s2452 = sand.u32 %s375, 1
          %s2453 = smul.addr %s2452, 8
          %s2454 = scalar_lea.vmem [#allocation12], %s2453
          %2455 = dma.done %s2451, 128
        $region112: #{tpu_custom_call.1} parent=107 // pred_fallthru
          _
      $region108: #{tpu_custom_call.1} parent=5 // pred_fallthru
        _
    $region6: #{tpu_custom_call.1} parent=1 // loop_footer
      %s31 = sadd.s32 1, %s27
    $region7: #{tpu_custom_call.1} parent=1 // loop_footer_branch
      %26 = sbr.rel target = $region3
    $region8: #{tpu_custom_call.1} parent=1 // loop_exit
      _
    %2456 = vsyncpa [#allocation5], 1
    %s2457 = scalar_lea.sflag [#allocation5], 1
    %2458 = vsyncpa %s2457, 1
    %2459 = vsyncpa [#allocation8], 1
    %2460 = vsyncpa [#allocation11], 1
    %2461 = vsyncpa [#allocation6], 1
    %s2462 = scalar_lea.sflag [#allocation6], 1
    %2463 = vsyncpa %s2462, 1

// kernel: tpu_custom_call.1
$region0: #{tpu_custom_call.1}
  #allocation0 [shape = 'u32[]', space=smem, size = 0x4, offset = 0x4, fixed_abs, tag = 'smem constant byte address 0x4 - core index']
  #allocation1 [shape = 'u32[144,128]{1,0:T(1,128)}', space=vmem, size = 0x12000, scoped, tag = 'internal scratch']
  #allocation2 [shape = 'bf16[4,16,8]{2,1,0:T(16,128)(2,1)}', space=vmem, size = 0x4000, scoped, tag = 'scratch operand']
  #allocation3 [shape = 'bf16[4,16,8]{2,1,0:T(16,128)(2,1)}', space=vmem, size = 0x4000, scoped, tag = 'scratch operand']
  %s0 = inlined_call_operand.vmem [shape: f32[2,16,32], index: 0, kind: input, shape index: {}]
  %s1 = inlined_call_operand.vmem [shape: f32[1,32], index: 1, kind: input, shape index: {}]
  %s2 = inlined_call_operand.vmem [shape: f32[1,32], index: 2, kind: input, shape index: {}]
  %s3 = inlined_call_operand.vmem [shape: bf16[32,32], index: 3, kind: input, shape index: {}]
  %s4 = inlined_call_operand.hbm [shape: f32[1,32], index: 4, kind: input, shape index: {}]
  %s5 = inlined_call_operand.vmem [shape: bf16[32,64], index: 5, kind: input, shape index: {}]
  %s6 = inlined_call_operand.hbm [shape: f32[1,64], index: 6, kind: input, shape index: {}]
  %s7 = inlined_call_operand.vmem [shape: bf16[32,32], index: 7, kind: input, shape index: {}]
  %s8 = inlined_call_operand.hbm [shape: f32[1,32], index: 8, kind: input, shape index: {}]
  %s9 = inlined_call_operand.hbm [shape: f32[1,32], index: 9, kind: input, shape index: {}]
  %s10 = inlined_call_operand.vmem [shape: f32[1,32], index: 10, kind: input, shape index: {}]
  %s11 = inlined_call_operand.vmem [shape: bf16[32,128], index: 11, kind: input, shape index: {}]
  %s12 = inlined_call_operand.vmem [shape: f32[1,128], index: 12, kind: input, shape index: {}]
  %s13 = inlined_call_operand.vmem [shape: bf16[128,32], index: 13, kind: input, shape index: {}]
  %s14 = inlined_call_operand.vmem [shape: f32[1,32], index: 14, kind: input, shape index: {}]
  %s15 = inlined_call_operand.hbm [shape: f32[2,16,32], index: 15, kind: output, shape index: {}]
  %s16 = sld [smem:[#allocation0]]
  $region113: #{tpu_custom_call.1} parent=0
    _
  %s18 = ssub.s32 1, %s16
  %s19 = scalar_select 0, %s18, %s16
  $region1: #{tpu_custom_call.1} parent=0
    #allocation4 [shape = 'u8[512]{0}', space=vmem, size = 0x400, scoped, tag = 'input window, operand 4, single buffered']
    #allocation5 [shape = 's32[2]{0}', space=sflag, size = 0x8, scoped, tag = 'scoped memory for tpu_custom_call.1']
    #allocation6 [shape = 's32[2]{0}', space=sflag, size = 0x8, scoped, tag = 'scoped memory for tpu_custom_call.1']
    #allocation7 [shape = 'u8[512]{0}', space=vmem, size = 0x400, scoped, tag = 'input window, operand 6, single buffered']
    #allocation8 [shape = 's32[1]{0}', space=sflag, size = 0x4, scoped, tag = 'scoped memory for tpu_custom_call.1']
    #allocation9 [shape = 'u8[512]{0}', space=vmem, size = 0x400, scoped, tag = 'input window, operand 8, single buffered']
    #allocation10 [shape = 'u8[512]{0}', space=vmem, size = 0x400, scoped, tag = 'input window, operand 9, single buffered']
    #allocation11 [shape = 's32[1]{0}', space=sflag, size = 0x4, scoped, tag = 'scoped memory for tpu_custom_call.1']
    #allocation12 [shape = 'u8[8192]{0}', space=vmem, size = 0x2000, scoped, tag = 'output window, operand 0']
    %20 = vsyncpa [#allocation5], 0
    %21 = vsyncpa [#allocation8], 0
    %22 = vsyncpa [#allocation11], 0
    %23 = vsyncpa [#allocation6], 0
    %s24 = scalar_lea.sflag [#allocation6], 1
    %25 = vsyncpa %s24, 0
    loop: start=0, step=1, limit=6
    $region2: #{tpu_custom_call.1} parent=1 // loop_pre_header
      _
    $region3: #{tpu_custom_call.1} parent=1 // loop_header
      %s27 = sphi 0, %s31
      %p28 = scmp.ge.s32.totalorder %s27, 6
      %s34 = sphi 0, %s46
      %s35 = sphi 0, %s42
      %s36 = sphi 0, %s34
      %s37 = sphi 0, %s35
      %s38 = sphi 0, %s36
      %s39 = sphi 0, %s37
      %s49 = sphi 0, %s51
      %s52 = sphi 0, %s49
      %s53 = sphi 0, %s52
      %s69 = sphi 0, %s53
      %s73 = sphi 0, %s73
      %s75 = sphi 0, %s73
      %s76 = sphi 0, %s75
      %s90 = sphi 0, %s76
      %s94 = sphi 0, %s94
      %s96 = sphi 0, %s94
      %s97 = sphi 0, %s96
      %s111 = sphi 0, %s97
      %s115 = sphi 0, %s115
      %s117 = sphi 0, %s115
      %s118 = sphi 0, %s117
      %s132 = sphi 0, %s118
      %s136 = sphi 0, %s136
      %s138 = sphi 0, %s136
      %s139 = sphi 0, %s138
      %s153 = sphi 0, %s139
      %s157 = sphi 0, %s157
      %s159 = sphi 0, %s157
      %s160 = sphi 0, %s159
      %s174 = sphi 0, %s160
      %s178 = sphi 0, %s178
      %s180 = sphi 0, %s178
      %s181 = sphi 0, %s180
      %s195 = sphi 0, %s181
      %s199 = sphi 0, %s199
      %s201 = sphi 0, %s199
      %s202 = sphi 0, %s201
      %s216 = sphi 0, %s202
      %s220 = sphi 0, %s220
      %s222 = sphi 0, %s220
      %s223 = sphi 0, %s222
      %s237 = sphi 0, %s223
      %s241 = sphi 0, %s241
      %s243 = sphi 0, %s241
      %s244 = sphi 0, %s243
      %s258 = sphi 0, %s244
      %s262 = sphi 0, %s262
      %s264 = sphi 0, %s262
      %s265 = sphi 0, %s264
      %s279 = sphi 0, %s265
      %s283 = sphi 0, %s283
      %s285 = sphi 0, %s283
      %s286 = sphi 0, %s285
      %s300 = sphi 0, %s286
      %s304 = sphi 0, %s304
      %s306 = sphi 0, %s304
      %s307 = sphi 0, %s306
      %s321 = sphi 0, %s307
      %s325 = sphi 0, %s325
      %s327 = sphi 0, %s325
      %s328 = sphi 0, %s327
      %s342 = sphi 0, %s328
      %s346 = sphi 0, %s346
      %s348 = sphi 0, %s346
      %s349 = sphi 0, %s348
      %s363 = sphi 0, %s349
      %s371 = sphi 0, %s373
      %s374 = sphi 0, %s371
      %s375 = sphi 0, %s374
      %s391 = sphi 0, %s375
    $region4: #{tpu_custom_call.1} parent=1 // loop_header_branch
      %30 = sbr.rel (%p28) target = $region8
    $region5: #{tpu_custom_call.1} parent=1 // loop_body
      %s32 = ssub.s32 %s27, 1
      %s33 = ssub.s32 %s27, 2
      %s40 = sadd.s32 1, %s35
      %p41 = scmp.ge.s32.totalorder %s40, 2
      %s42 = scalar_select %p41, 0, %s40
      %s43 = sadd.s32 1, %s34
      %s44 = scalar_select %p41, %s43, %s34
      %p45 = scmp.ge.s32.totalorder %s44, 2
      %s46 = scalar_select %p45, 0, %s44
      %s47 = ssub.s32 %s34, %s46
      %p48 = scmp.eq.s32.totalorder %s47, 0
      %s50 = sadd.s32 %s49, 1
      %s51 = scalar_select %p48, %s49, %s50
      %p54 = pneg %p48
      %p55 = scmp.eq.s32.totalorder %s27, 3
      %p56 = por %p54, %p55
      %p57 = scmp.ne.s32.totalorder %s49, %s52
      %p58 = scmp.eq.s32.totalorder %s27, 0
      %p59 = por %p57, %p58
      %p60 = scmp.ne.s32.totalorder %s49, %s52
      %p61 = scmp.eq.s32.totalorder %s32, 3
      %p62 = por %p60, %p61
      %p63 = scmp.ne.s32.totalorder %s52, %s53
      %p64 = scmp.eq.s32.totalorder %s32, 0
      %p65 = por %p63, %p64
      %p66 = scmp.ne.s32.totalorder %s52, %s53
      %p67 = scmp.eq.s32.totalorder %s33, 3
      %p68 = por %p66, %p67
      %p70 = scmp.ne.s32.totalorder %s53, %s69
      %p71 = scmp.eq.s32.totalorder %s33, 0
      %p72 = por %p70, %p71
      %s74 = sadd.s32 %s73, 1
      %p77 = scmp.eq.s32.totalorder %s27, 3
      %p78 = scmp.ne.s32.totalorder %s73, %s75
      %p79 = scmp.eq.s32.totalorder %s27, 0
      %p80 = por %p78, %p79
      %p81 = scmp.ne.s32.totalorder %s73, %s75
      %p82 = scmp.eq.s32.totalorder %s32, 3
      %p83 = por %p81, %p82
      %p84 = scmp.ne.s32.totalorder %s75, %s76
      %p85 = scmp.eq.s32.totalorder %s32, 0
      %p86 = por %p84, %p85
      %p87 = scmp.ne.s32.totalorder %s75, %s76
      %p88 = scmp.eq.s32.totalorder %s33, 3
      %p89 = por %p87, %p88
      %p91 = scmp.ne.s32.totalorder %s76, %s90
      %p92 = scmp.eq.s32.totalorder %s33, 0
      %p93 = por %p91, %p92
      %s95 = sadd.s32 %s94, 1
      %p98 = scmp.eq.s32.totalorder %s27, 3
      %p99 = scmp.ne.s32.totalorder %s94, %s96
      %p100 = scmp.eq.s32.totalorder %s27, 0
      %p101 = por %p99, %p100
      %p102 = scmp.ne.s32.totalorder %s94, %s96
      %p103 = scmp.eq.s32.totalorder %s32, 3
      %p104 = por %p102, %p103
      %p105 = scmp.ne.s32.totalorder %s96, %s97
      %p106 = scmp.eq.s32.totalorder %s32, 0
      %p107 = por %p105, %p106
      %p108 = scmp.ne.s32.totalorder %s96, %s97
      %p109 = scmp.eq.s32.totalorder %s33, 3
      %p110 = por %p108, %p109
      %p112 = scmp.ne.s32.totalorder %s97, %s111
      %p113 = scmp.eq.s32.totalorder %s33, 0
      %p114 = por %p112, %p113
      %s116 = sadd.s32 %s115, 1
      %p119 = scmp.eq.s32.totalorder %s27, 3
      %p120 = scmp.ne.s32.totalorder %s115, %s117
      %p121 = scmp.eq.s32.totalorder %s27, 0
      %p122 = por %p120, %p121
      %p123 = scmp.ne.s32.totalorder %s115, %s117
      %p124 = scmp.eq.s32.totalorder %s32, 3
      %p125 = por %p123, %p124
      %p126 = scmp.ne.s32.totalorder %s117, %s118
      %p127 = scmp.eq.s32.totalorder %s32, 0
      %p128 = por %p126, %p127
      %p129 = scmp.ne.s32.totalorder %s117, %s118
      %p130 = scmp.eq.s32.totalorder %s33, 3
      %p131 = por %p129, %p130
      %p133 = scmp.ne.s32.totalorder %s118, %s132
      %p134 = scmp.eq.s32.totalorder %s33, 0
      %p135 = por %p133, %p134
      %s137 = sadd.s32 %s136, 1
      %p140 = scmp.eq.s32.totalorder %s27, 3
      %p141 = scmp.ne.s32.totalorder %s136, %s138
      %p142 = scmp.eq.s32.totalorder %s27, 0
      %p143 = por %p141, %p142
      %p144 = scmp.ne.s32.totalorder %s136, %s138
      %p145 = scmp.eq.s32.totalorder %s32, 3
      %p146 = por %p144, %p145
      %p147 = scmp.ne.s32.totalorder %s138, %s139
      %p148 = scmp.eq.s32.totalorder %s32, 0
      %p149 = por %p147, %p148
      %p150 = scmp.ne.s32.totalorder %s138, %s139
      %p151 = scmp.eq.s32.totalorder %s33, 3
      %p152 = por %p150, %p151
      %p154 = scmp.ne.s32.totalorder %s139, %s153
      %p155 = scmp.eq.s32.totalorder %s33, 0
      %p156 = por %p154, %p155
      %s158 = sadd.s32 %s157, 1
      %p161 = scmp.eq.s32.totalorder %s27, 3
      %p162 = scmp.ne.s32.totalorder %s157, %s159
      %p163 = scmp.eq.s32.totalorder %s27, 0
      %p164 = por %p162, %p163
      %p165 = scmp.ne.s32.totalorder %s157, %s159
      %p166 = scmp.eq.s32.totalorder %s32, 3
      %p167 = por %p165, %p166
      %p168 = scmp.ne.s32.totalorder %s159, %s160
      %p169 = scmp.eq.s32.totalorder %s32, 0
      %p170 = por %p168, %p169
      %p171 = scmp.ne.s32.totalorder %s159, %s160
      %p172 = scmp.eq.s32.totalorder %s33, 3
      %p173 = por %p171, %p172
      %p175 = scmp.ne.s32.totalorder %s160, %s174
      %p176 = scmp.eq.s32.totalorder %s33, 0
      %p177 = por %p175, %p176
      %s179 = sadd.s32 %s178, 1
      %p182 = scmp.eq.s32.totalorder %s27, 3
      %p183 = scmp.ne.s32.totalorder %s178, %s180
      %p184 = scmp.eq.s32.totalorder %s27, 0
      %p185 = por %p183, %p184
      %p186 = scmp.ne.s32.totalorder %s178, %s180
      %p187 = scmp.eq.s32.totalorder %s32, 3
      %p188 = por %p186, %p187
      %p189 = scmp.ne.s32.totalorder %s180, %s181
      %p190 = scmp.eq.s32.totalorder %s32, 0
      %p191 = por %p189, %p190
      %p192 = scmp.ne.s32.totalorder %s180, %s181
      %p193 = scmp.eq.s32.totalorder %s33, 3
      %p194 = por %p192, %p193
      %p196 = scmp.ne.s32.totalorder %s181, %s195
      %p197 = scmp.eq.s32.totalorder %s33, 0
      %p198 = por %p196, %p197
      %s200 = sadd.s32 %s199, 1
      %p203 = scmp.eq.s32.totalorder %s27, 3
      %p204 = scmp.ne.s32.totalorder %s199, %s201
      %p205 = scmp.eq.s32.totalorder %s27, 0
      %p206 = por %p204, %p205
      %p207 = scmp.ne.s32.totalorder %s199, %s201
      %p208 = scmp.eq.s32.totalorder %s32, 3
      %p209 = por %p207, %p208
      %p210 = scmp.ne.s32.totalorder %s201, %s202
      %p211 = scmp.eq.s32.totalorder %s32, 0
      %p212 = por %p210, %p211
      %p213 = scmp.ne.s32.totalorder %s201, %s202
      %p214 = scmp.eq.s32.totalorder %s33, 3
      %p215 = por %p213, %p214
      %p217 = scmp.ne.s32.totalorder %s202, %s216
      %p218 = scmp.eq.s32.totalorder %s33, 0
      %p219 = por %p217, %p218
      %s221 = sadd.s32 %s220, 1
      %p224 = scmp.eq.s32.totalorder %s27, 3
      %p225 = scmp.ne.s32.totalorder %s220, %s222
      %p226 = scmp.eq.s32.totalorder %s27, 0
      %p227 = por %p225, %p226
      %p228 = scmp.ne.s32.totalorder %s220, %s222
      %p229 = scmp.eq.s32.totalorder %s32, 3
      %p230 = por %p228, %p229
      %p231 = scmp.ne.s32.totalorder %s222, %s223
      %p232 = scmp.eq.s32.totalorder %s32, 0
      %p233 = por %p231, %p232
      %p234 = scmp.ne.s32.totalorder %s222, %s223
      %p235 = scmp.eq.s32.totalorder %s33, 3
      %p236 = por %p234, %p235
      %p238 = scmp.ne.s32.totalorder %s223, %s237
      %p239 = scmp.eq.s32.totalorder %s33, 0
      %p240 = por %p238, %p239
      %s242 = sadd.s32 %s241, 1
      %p245 = scmp.eq.s32.totalorder %s27, 3
      %p246 = scmp.ne.s32.totalorder %s241, %s243
      %p247 = scmp.eq.s32.totalorder %s27, 0
      %p248 = por %p246, %p247
      %p249 = scmp.ne.s32.totalorder %s241, %s243
      %p250 = scmp.eq.s32.totalorder %s32, 3
      %p251 = por %p249, %p250
      %p252 = scmp.ne.s32.totalorder %s243, %s244
      %p253 = scmp.eq.s32.totalorder %s32, 0
      %p254 = por %p252, %p253
      %p255 = scmp.ne.s32.totalorder %s243, %s244
      %p256 = scmp.eq.s32.totalorder %s33, 3
      %p257 = por %p255, %p256
      %p259 = scmp.ne.s32.totalorder %s244, %s258
      %p260 = scmp.eq.s32.totalorder %s33, 0
      %p261 = por %p259, %p260
      %s263 = sadd.s32 %s262, 1
      %p266 = scmp.eq.s32.totalorder %s27, 3
      %p267 = scmp.ne.s32.totalorder %s262, %s264
      %p268 = scmp.eq.s32.totalorder %s27, 0
      %p269 = por %p267, %p268
      %p270 = scmp.ne.s32.totalorder %s262, %s264
      %p271 = scmp.eq.s32.totalorder %s32, 3
      %p272 = por %p270, %p271
      %p273 = scmp.ne.s32.totalorder %s264, %s265
      %p274 = scmp.eq.s32.totalorder %s32, 0
      %p275 = por %p273, %p274
      %p276 = scmp.ne.s32.totalorder %s264, %s265
      %p277 = scmp.eq.s32.totalorder %s33, 3
      %p278 = por %p276, %p277
      %p280 = scmp.ne.s32.totalorder %s265, %s279
      %p281 = scmp.eq.s32.totalorder %s33, 0
      %p282 = por %p280, %p281
      %s284 = sadd.s32 %s283, 1
      %p287 = scmp.eq.s32.totalorder %s27, 3
      %p288 = scmp.ne.s32.totalorder %s283, %s285
      %p289 = scmp.eq.s32.totalorder %s27, 0
      %p290 = por %p288, %p289
      %p291 = scmp.ne.s32.totalorder %s283, %s285
      %p292 = scmp.eq.s32.totalorder %s32, 3
      %p293 = por %p291, %p292
      %p294 = scmp.ne.s32.totalorder %s285, %s286
      %p295 = scmp.eq.s32.totalorder %s32, 0
      %p296 = por %p294, %p295
      %p297 = scmp.ne.s32.totalorder %s285, %s286
      %p298 = scmp.eq.s32.totalorder %s33, 3
      %p299 = por %p297, %p298
      %p301 = scmp.ne.s32.totalorder %s286, %s300
      %p302 = scmp.eq.s32.totalorder %s33, 0
      %p303 = por %p301, %p302
      %s305 = sadd.s32 %s304, 1
      %p308 = scmp.eq.s32.totalorder %s27, 3
      %p309 = scmp.ne.s32.totalorder %s304, %s306
      %p310 = scmp.eq.s32.totalorder %s27, 0
      %p311 = por %p309, %p310
      %p312 = scmp.ne.s32.totalorder %s304, %s306
      %p313 = scmp.eq.s32.totalorder %s32, 3
      %p314 = por %p312, %p313
      %p315 = scmp.ne.s32.totalorder %s306, %s307
      %p316 = scmp.eq.s32.totalorder %s32, 0
      %p317 = por %p315, %p316
      %p318 = scmp.ne.s32.totalorder %s306, %s307
      %p319 = scmp.eq.s32.totalorder %s33, 3
      %p320 = por %p318, %p319
      %p322 = scmp.ne.s32.totalorder %s307, %s321
      %p323 = scmp.eq.s32.totalorder %s33, 0
      %p324 = por %p322, %p323
      %s326 = sadd.s32 %s325, 1
      %p329 = scmp.eq.s32.totalorder %s27, 3
      %p330 = scmp.ne.s32.totalorder %s325, %s327
      %p331 = scmp.eq.s32.totalorder %s27, 0
      %p332 = por %p330, %p331
      %p333 = scmp.ne.s32.totalorder %s325, %s327
      %p334 = scmp.eq.s32.totalorder %s32, 3
      %p335 = por %p333, %p334
      %p336 = scmp.ne.s32.totalorder %s327, %s328
      %p337 = scmp.eq.s32.totalorder %s32, 0
      %p338 = por %p336, %p337
      %p339 = scmp.ne.s32.totalorder %s327, %s328
      %p340 = scmp.eq.s32.totalorder %s33, 3
      %p341 = por %p339, %p340
      %p343 = scmp.ne.s32.totalorder %s328, %s342
      %p344 = scmp.eq.s32.totalorder %s33, 0
      %p345 = por %p343, %p344
      %s347 = sadd.s32 %s346, 1
      %p350 = scmp.eq.s32.totalorder %s27, 3
      %p351 = scmp.ne.s32.totalorder %s346, %s348
      %p352 = scmp.eq.s32.totalorder %s27, 0
      %p353 = por %p351, %p352
      %p354 = scmp.ne.s32.totalorder %s346, %s348
      %p355 = scmp.eq.s32.totalorder %s32, 3
      %p356 = por %p354, %p355
      %p357 = scmp.ne.s32.totalorder %s348, %s349
      %p358 = scmp.eq.s32.totalorder %s32, 0
      %p359 = por %p357, %p358
      %p360 = scmp.ne.s32.totalorder %s348, %s349
      %p361 = scmp.eq.s32.totalorder %s33, 3
      %p362 = por %p360, %p361
      %p364 = scmp.ne.s32.totalorder %s349, %s363
      %p365 = scmp.eq.s32.totalorder %s33, 0
      %p366 = por %p364, %p365
      %s367 = ssub.s32 %s34, %s46
      %s368 = ssub.s32 %s35, %s42
      %s369 = sor.u32 %s367, %s368
      %p370 = scmp.eq.s32.totalorder %s369, 0
      %s372 = sadd.s32 %s371, 1
      %s373 = scalar_select %p370, %s371, %s372
      %p376 = pneg %p370
      %p377 = scmp.eq.s32.totalorder %s27, 3
      %p378 = por %p376, %p377
      %p379 = scmp.ne.s32.totalorder %s371, %s374
      %p380 = scmp.eq.s32.totalorder %s27, 0
      %p381 = por %p379, %p380
      %p382 = scmp.ne.s32.totalorder %s371, %s374
      %p383 = scmp.eq.s32.totalorder %s32, 3
      %p384 = por %p382, %p383
      %p385 = scmp.ne.s32.totalorder %s374, %s375
      %p386 = scmp.eq.s32.totalorder %s32, 0
      %p387 = por %p385, %p386
      %p388 = scmp.ne.s32.totalorder %s374, %s375
      %p389 = scmp.eq.s32.totalorder %s33, 3
      %p390 = por %p388, %p389
      %p392 = scmp.ne.s32.totalorder %s375, %s391
      %p393 = scmp.eq.s32.totalorder %s33, 0
      %p394 = por %p392, %p393
      %p395 = scmp.le.s32.totalorder 1, %s27
      %p396 = scmp.lt.s32.totalorder %s27, 5
      %p397 = pnand %p395, %p396
      %p398 = pneg %p397
      // Predicated region
      $region9: #{tpu_custom_call.1} parent=5 // pred_check
        _
      $region10: #{tpu_custom_call.1} parent=5 // pred_check_branch
        %400 = sbr.rel (%p397) target = $region12
      $region11: #{tpu_custom_call.1} parent=5 // pred_region
        %s401 = ssub.s32 %s27, 1
        // Predicated region
        $region13: #{tpu_custom_call.1} parent=11 // pred_check
          %p402 = pneg %p86
        $region14: #{tpu_custom_call.1} parent=11 // pred_check_branch
          %404 = sbr.rel (%p402) target = $region16
        $region15: #{tpu_custom_call.1} parent=11 // pred_region
          _
        $region16: #{tpu_custom_call.1} parent=11 // pred_fallthru
          _
        // Predicated region
        $region17: #{tpu_custom_call.1} parent=11 // pred_check
          %p405 = pneg %p107
        $region18: #{tpu_custom_call.1} parent=11 // pred_check_branch
          %407 = sbr.rel (%p405) target = $region20
        $region19: #{tpu_custom_call.1} parent=11 // pred_region
          _
        $region20: #{tpu_custom_call.1} parent=11 // pred_fallthru
          _
        // Predicated region
        $region21: #{tpu_custom_call.1} parent=11 // pred_check
          %p408 = pneg %p128
        $region22: #{tpu_custom_call.1} parent=11 // pred_check_branch
          %410 = sbr.rel (%p408) target = $region24
        $region23: #{tpu_custom_call.1} parent=11 // pred_region
          _
        $region24: #{tpu_custom_call.1} parent=11 // pred_fallthru
          _
        // Predicated region
        $region25: #{tpu_custom_call.1} parent=11 // pred_check
          %p411 = pneg %p149
        $region26: #{tpu_custom_call.1} parent=11 // pred_check_branch
          %413 = sbr.rel (%p411) target = $region28
        $region27: #{tpu_custom_call.1} parent=11 // pred_region
          %s415 = ssub.s32 16, 16
          %416 = vsyncadd [#allocation5], %s415
          %s418 = sshll.u32 [#allocation4], 4
          %s419 = int_to_ptr.vmem [resolvable:$true] %s418
          %421 = dma.hbm_to_vmem [thread:$0]  %s4, 16, %s419, [#allocation5]
        $region28: #{tpu_custom_call.1} parent=11 // pred_fallthru
          _
        // Predicated region
        $region29: #{tpu_custom_call.1} parent=11 // pred_check
          %p422 = pneg %p170
        $region30: #{tpu_custom_call.1} parent=11 // pred_check_branch
          %424 = sbr.rel (%p422) target = $region32
        $region31: #{tpu_custom_call.1} parent=11 // pred_region
          _
        $region32: #{tpu_custom_call.1} parent=11 // pred_fallthru
          _
        // Predicated region
        $region33: #{tpu_custom_call.1} parent=11 // pred_check
          %p425 = pneg %p191
        $region34: #{tpu_custom_call.1} parent=11 // pred_check_branch
          %427 = sbr.rel (%p425) target = $region36
        $region35: #{tpu_custom_call.1} parent=11 // pred_region
          %s429 = ssub.s32 16, 16
          %430 = vsyncadd [#allocation8], %s429
          %s432 = sshll.u32 [#allocation7], 4
          %s433 = int_to_ptr.vmem [resolvable:$true] %s432
          %435 = dma.hbm_to_vmem [thread:$0]  %s6, 16, %s433, [#allocation8]
        $region36: #{tpu_custom_call.1} parent=11 // pred_fallthru
          _
        // Predicated region
        $region37: #{tpu_custom_call.1} parent=11 // pred_check
          %p436 = pneg %p212
        $region38: #{tpu_custom_call.1} parent=11 // pred_check_branch
          %438 = sbr.rel (%p436) target = $region40
        $region39: #{tpu_custom_call.1} parent=11 // pred_region
          _
        $region40: #{tpu_custom_call.1} parent=11 // pred_fallthru
          _
        // Predicated region
        $region41: #{tpu_custom_call.1} parent=11 // pred_check
          %p439 = pneg %p233
        $region42: #{tpu_custom_call.1} parent=11 // pred_check_branch
          %441 = sbr.rel (%p439) target = $region44
        $region43: #{tpu_custom_call.1} parent=11 // pred_region
          %s443 = ssub.s32 16, 16
          %444 = vsyncadd [#allocation8], %s443
          %s446 = sshll.u32 [#allocation9], 4
          %s447 = int_to_ptr.vmem [resolvable:$true] %s446
          %449 = dma.hbm_to_vmem [thread:$0]  %s8, 16, %s447, [#allocation8]
        $region44: #{tpu_custom_call.1} parent=11 // pred_fallthru
          _
        // Predicated region
        $region45: #{tpu_custom_call.1} parent=11 // pred_check
          %p450 = pneg %p254
        $region46: #{tpu_custom_call.1} parent=11 // pred_check_branch
          %452 = sbr.rel (%p450) target = $region48
        $region47: #{tpu_custom_call.1} parent=11 // pred_region
          %s454 = ssub.s32 16, 16
          %455 = vsyncadd [#allocation11], %s454
          %s457 = sshll.u32 [#allocation10], 4
          %s458 = int_to_ptr.vmem [resolvable:$true] %s457
          %460 = dma.hbm_to_vmem [thread:$0]  %s9, 16, %s458, [#allocation11]
        $region48: #{tpu_custom_call.1} parent=11 // pred_fallthru
          _
        // Predicated region
        $region49: #{tpu_custom_call.1} parent=11 // pred_check
          %p461 = pneg %p275
        $region50: #{tpu_custom_call.1} parent=11 // pred_check_branch
          %463 = sbr.rel (%p461) target = $region52
        $region51: #{tpu_custom_call.1} parent=11 // pred_region
          _
        $region52: #{tpu_custom_call.1} parent=11 // pred_fallthru
          _
        // Predicated region
        $region53: #{tpu_custom_call.1} parent=11 // pred_check
          %p464 = pneg %p296
        $region54: #{tpu_custom_call.1} parent=11 // pred_check_branch
          %466 = sbr.rel (%p464) target = $region56
        $region55: #{tpu_custom_call.1} parent=11 // pred_region
          _
        $region56: #{tpu_custom_call.1} parent=11 // pred_fallthru
          _
        // Predicated region
        $region57: #{tpu_custom_call.1} parent=11 // pred_check
          %p467 = pneg %p317
        $region58: #{tpu_custom_call.1} parent=11 // pred_check_branch
          %469 = sbr.rel (%p467) target = $region60
        $region59: #{tpu_custom_call.1} parent=11 // pred_region
          _
        $region60: #{tpu_custom_call.1} parent=11 // pred_fallthru
          _
        // Predicated region
        $region61: #{tpu_custom_call.1} parent=11 // pred_check
          %p470 = pneg %p338
        $region62: #{tpu_custom_call.1} parent=11 // pred_check_branch
          %472 = sbr.rel (%p470) target = $region64
        $region63: #{tpu_custom_call.1} parent=11 // pred_region
          _
        $region64: #{tpu_custom_call.1} parent=11 // pred_fallthru
          _
        // Predicated region
        $region65: #{tpu_custom_call.1} parent=11 // pred_check
          %p473 = pneg %p359
        $region66: #{tpu_custom_call.1} parent=11 // pred_check_branch
          %475 = sbr.rel (%p473) target = $region68
        $region67: #{tpu_custom_call.1} parent=11 // pred_region
          _
        $region68: #{tpu_custom_call.1} parent=11 // pred_fallthru
          _
      $region12: #{tpu_custom_call.1} parent=5 // pred_fallthru
        _
      %p476 = scmp.lt.s32.totalorder %s27, 4
      // Predicated region
      $region69: #{tpu_custom_call.1} parent=5 // pred_check
        %p477 = pneg %p476
      $region70: #{tpu_custom_call.1} parent=5 // pred_check_branch
        %479 = sbr.rel (%p477) target = $region72
      $region71: #{tpu_custom_call.1} parent=5 // pred_region
        // Predicated region
        $region73: #{tpu_custom_call.1} parent=71 // pred_check
          %p480 = pneg %p59
        $region74: #{tpu_custom_call.1} parent=71 // pred_check_branch
          %482 = sbr.rel (%p480) target = $region76
        $region75: #{tpu_custom_call.1} parent=71 // pred_region
          %p483 = scmp.lt.s32.totalorder %s34, 1
          %s484 = scalar_select %p483, %s34, 1
          %s485 = smul.addr %s484, 2
          %s486 = smul.addr %s485, 8
          %s487 = scalar_lea.vmem %s0, %s486
        $region76: #{tpu_custom_call.1} parent=71 // pred_fallthru
          _
      $region72: #{tpu_custom_call.1} parent=5 // pred_fallthru
        _
      %p488 = scmp.le.s32.totalorder 1, %s27
      %p489 = scmp.lt.s32.totalorder %s27, 5
      %p490 = pnand %p488, %p489
      %p491 = pneg %p490
      // Predicated region
      $region77: #{tpu_custom_call.1} parent=5 // pred_check
        _
      $region78: #{tpu_custom_call.1} parent=5 // pred_check_branch
        %493 = sbr.rel (%p490) target = $region80
      $region79: #{tpu_custom_call.1} parent=5 // pred_region
        %s494 = ssub.s32 %s27, 1
        // Predicated region
        $region81: #{tpu_custom_call.1} parent=79 // pred_check
          %p495 = pneg %p149
        $region82: #{tpu_custom_call.1} parent=79 // pred_check_branch
          %497 = sbr.rel (%p495) target = $region84
        $region83: #{tpu_custom_call.1} parent=79 // pred_region
          %498 = dma.done [#allocation5], 16
        $region84: #{tpu_custom_call.1} parent=79 // pred_fallthru
          _
        // Predicated region
        $region85: #{tpu_custom_call.1} parent=79 // pred_check
          %p499 = pneg %p191
        $region86: #{tpu_custom_call.1} parent=79 // pred_check_branch
          %501 = sbr.rel (%p499) target = $region88
        $region87: #{tpu_custom_call.1} parent=79 // pred_region
          %502 = dma.done [#allocation8], 16
        $region88: #{tpu_custom_call.1} parent=79 // pred_fallthru
          _
        // Predicated region
        $region89: #{tpu_custom_call.1} parent=79 // pred_check
          %p503 = pneg %p233
        $region90: #{tpu_custom_call.1} parent=79 // pred_check_branch
          %505 = sbr.rel (%p503) target = $region92
        $region91: #{tpu_custom_call.1} parent=79 // pred_region
          %506 = dma.done [#allocation8], 16
        $region92: #{tpu_custom_call.1} parent=79 // pred_fallthru
          _
        // Predicated region
        $region93: #{tpu_custom_call.1} parent=79 // pred_check
          %p507 = pneg %p254
        $region94: #{tpu_custom_call.1} parent=79 // pred_check_branch
          %509 = sbr.rel (%p507) target = $region96
        $region95: #{tpu_custom_call.1} parent=79 // pred_region
          %510 = dma.done [#allocation11], 16
        $region96: #{tpu_custom_call.1} parent=79 // pred_fallthru
          _
        %p511 = scmp.lt.s32.totalorder %s36, 1
        %s512 = scalar_select %p511, %s36, 1
        %s513 = smul.addr %s512, 2
        %s514 = smul.addr %s513, 8
        %s515 = scalar_lea.vmem %s0, %s514
        %p516 = pneg %p65
        %p517 = pneg %p62
        %p518 = pneg %p86
        %p519 = pneg %p83
        %p520 = pneg %p107
        %p521 = pneg %p104
        %p522 = pneg %p128
        %p523 = pneg %p125
        %p524 = pneg %p149
        %p525 = pneg %p146
        %p526 = pneg %p170
        %p527 = pneg %p167
        %p528 = pneg %p191
        %p529 = pneg %p188
        %p530 = pneg %p212
        %p531 = pneg %p209
        %p532 = pneg %p233
        %p533 = pneg %p230
        %p534 = pneg %p254
        %p535 = pneg %p251
        %p536 = pneg %p275
        %p537 = pneg %p272
        %p538 = pneg %p296
        %p539 = pneg %p293
        %p540 = pneg %p317
        %p541 = pneg %p314
        %p542 = pneg %p338
        %p543 = pneg %p335
        %p544 = pneg %p359
        %p545 = pneg %p356
        %p546 = pneg %p387
        %p547 = pneg %p384
        %s548 = sand.u32 %s374, 1
        %s549 = scalar_lea.sflag [#allocation6], %s548
        %s550 = sand.u32 %s374, 1
        %s551 = smul.addr %s550, 8
        %s552 = scalar_lea.vmem [#allocation12], %s551
        %p553 = scmp.lt.s32.totalorder %s36, 1
        %s554 = scalar_select %p553, %s36, 1
        %s555 = smul.addr %s554, 2
        %s556 = smul.addr %s555, 8
        %s557 = scalar_lea.vmem %s0, %s556
        %p559 = scmp.eq.s32.totalorder %s37, 0
        // Predicated region
        $region97: #{tpu_custom_call.1} parent=79 // pred_check
          %p560 = pneg %p559
        $region98: #{tpu_custom_call.1} parent=79 // pred_check_branch
          %562 = sbr.rel (%p560) target = $region100
        $region99: #{tpu_custom_call.1} parent=79 // pred_region
          %v563 = vld [vmem:[%s557] sm:$0xff]
          %v564 = vld [vmem:[%s557 + $0x8] sm:$0xff]
          %v565 = vld [vmem:[%s1] sm:$0x1]
          %v566 = vld [vmem:[%s2] sm:$0x1]
          %vm567 = vcmask 261120
          %v568 = vsel %vm567, %v563, 0.0
          %569 = vadd.xlane.f32.xlu0 %v568
          %v570 = vpop.xlane.xlu0 %569
          %v571 = vsel %vm567, %v564, 0.0
          %572 = vadd.xlane.f32.xlu0 %v571
          %v573 = vpop.xlane.xlu0 %572
          %v574 = vrcp.pop 32.0
          %v575 = vmul.f32 %v570, %v574
          %v576 = vmul.f32 %v573, %v574
          %v577 = vsub.f32 %v563, %v575
          %v578 = vsub.f32 %v564, %v576
          %v579 = vmul.f32 %v577, %v577
          %v580 = vmul.f32 %v578, %v578
          %v581 = vsel %vm567, %v579, 0.0
          %582 = vadd.xlane.f32.xlu0 %v581
          %v583 = vpop.xlane.xlu0 %582
          %v584 = vsel %vm567, %v580, 0.0
          %585 = vadd.xlane.f32.xlu0 %v584
          %v586 = vpop.xlane.xlu0 %585
          %v587 = vmul.f32 %v583, %v574
          %v588 = vmul.f32 %v586, %v574
          %v589 = vadd.f32 %v587, 1e-05
          %v590 = vadd.f32 %v588, 1e-05
          %v591 = vrsqrt.pop %v589
          %v592 = vrsqrt.pop %v590
          %v593 = vmul.f32 %v577, %v591
          %v594 = vmul.f32 %v578, %v592
          %v596 = vlaneseq
          %v597 = vshrl.u32 %v596, 7
          %v598 = vsub.s32 0, %v597
          %v599 = vrot.slane %v565, %v598
          %v601 = vmul.f32 %v593, %v599
          %v602 = vmul.f32 %v594, %v599
          %v604 = vlaneseq
          %v605 = vshrl.u32 %v604, 7
          %v606 = vsub.s32 0, %v605
          %v607 = vrot.slane %v566, %v606
          %v609 = vadd.f32 %v601, %v607
          %v610 = vadd.f32 %v602, %v607
          %v611 = vpack.c.bf16 %v610, %v609
          %v612 = vld [vmem:[%s5] sm:$0xf]
          %v613 = vld [vmem:[%s5 + $0x4] sm:$0xf]
          %v614 = vld [vmem:[%s5 + $0x8] sm:$0xf]
          %v615 = vld [vmem:[%s5 + $0xc] sm:$0xf]
          %v616 = vld [vmem:[#allocation7] sm:$0x1]
          %v618 = vlaneseq
          %v619 = vshrl.u32 %v618, 7
          %v620 = vsub.s32 0, %v619
          %v621 = vrot.slane %v616, %v620
          %v627 = vunpack.c.l.b16 %v612
          %v628 = vunpack.c.l.b16 %v613
          %v629 = vunpack.c.l.b16 %v614
          %v630 = vunpack.c.l.b16 %v615
          %v631 = vpack.c.b16 %v628, %v627
          %v632 = vpack.c.b16 %v630, %v629
          %v636 = vsel %vm567, %v611, 0
          %638 = vmatprep.subr.bf16.mxu0 0
          %639 = vmatpush1.bf16.msra.mxu0 %v631
          %640 = vmatprep.subr.bf16.mxu0 0
          %641 = vmatpush1.bf16.msra.mxu0 %v632
          %642 = vmatprep.subr.bf16.mxu0 0
          %643 = vmatpush1.bf16.msra.mxu0 0
          %644 = vmatprep.subr.bf16.mxu0 0
          %645 = vmatpush1.bf16.msra.mxu0 0
          %646 = vmatprep.subr.bf16.mxu0 0
          %647 = vmatpush1.bf16.msra.mxu0 0
          %648 = vmatprep.subr.bf16.mxu0 0
          %649 = vmatpush1.bf16.msra.mxu0 0
          %650 = vmatprep.subr.bf16.mxu0 0
          %651 = vmatpush1.bf16.msra.mxu0 0
          %652 = vmatprep.subr.bf16.mxu0 0
          %653 = vmatpush1.bf16.msra.mxu0 0
          %654 = vmatprep.subr.bf16.mxu0 0
          %655 = vmatpush1.bf16.msra.mxu0 0
          %656 = vmatprep.subr.bf16.mxu0 0
          %657 = vmatpush1.bf16.msra.mxu0 0
          %658 = vmatprep.subr.bf16.mxu0 0
          %659 = vmatpush1.bf16.msra.mxu0 0
          %660 = vmatprep.subr.bf16.mxu0 0
          %661 = vmatpush1.bf16.msra.mxu0 0
          %662 = vmatprep.subr.bf16.mxu0 0
          %663 = vmatpush1.bf16.msra.mxu0 0
          %664 = vmatprep.subr.bf16.mxu0 0
          %665 = vmatpush1.bf16.msra.mxu0 0
          %666 = vmatprep.subr.bf16.mxu0 0
          %667 = vmatpush1.bf16.msra.mxu0 0
          %668 = vmatprep.subr.bf16.mxu0 0
          %669 = vmatpush1.bf16.msra.mxu0 0
          %670 = vmatprep.mubr.bf16.mxu0 0
          %671 = vmatmul.mubr.bf16.gmra.mrb[0].mxu0 %v636
          %v672 = vpop.f32.mrb[0].mxu0
          %v673 = vadd.f32 %v621, %v672
          %v674 = vpop.f32.mrb[0].mxu0
          %v675 = vpop.f32.mrb[0].mxu0
          %v676 = vadd.f32 %v621, %v675
          %v677 = vpop.f32.mrb[0].mxu0
          %678 = vdwg.mxu0
          %681 = vrot.lane.b32.xlu0 %v673, 120
          %v682 = vpop.permute.xlu0 %681
          %683 = vrot.lane.b32.xlu0 %v676, 120
          %v684 = vpop.permute.xlu0 %683
          %687 = vrot.lane.b32.xlu0 %v673, 112
          %v688 = vpop.permute.xlu0 %687
          %689 = vrot.lane.b32.xlu0 %v676, 112
          %v690 = vpop.permute.xlu0 %689
          %693 = vrot.lane.b32.xlu0 %v673, 104
          %v694 = vpop.permute.xlu0 %693
          %695 = vrot.lane.b32.xlu0 %v676, 104
          %v696 = vpop.permute.xlu0 %695
          %v699 = vcombine.low %v673, %v688
          %v700 = vcombine.high %v673, %v688
          %v702 = vunpack.c.l.s4 1983009808
          %v703 = vunpack.c.0.s8 %v702
          %v704 = vlaneseq
          %v705 = vshrl.u32 %v704, 7
          %v706 = vsub.s32 %v703, %v705
          %v707 = vrot.slane %v699, %v706
          %v709 = vunpack.c.l.s4 1983009808
          %v710 = vunpack.c.0.s8 %v709
          %v711 = vlaneseq
          %v712 = vshrl.u32 %v711, 7
          %v713 = vsub.s32 %v710, %v712
          %v714 = vrot.slane %v700, %v713
          %v715 = vcombine.low %v682, %v694
          %v716 = vcombine.high %v682, %v694
          %v718 = vunpack.c.l.s4 1983009808
          %v719 = vunpack.c.0.s8 %v718
          %v720 = vlaneseq
          %v721 = vshrl.u32 %v720, 7
          %v722 = vsub.s32 %v719, %v721
          %v723 = vrot.slane %v715, %v722
          %v725 = vunpack.c.l.s4 1983009808
          %v726 = vunpack.c.0.s8 %v725
          %v727 = vlaneseq
          %v728 = vshrl.u32 %v727, 7
          %v729 = vsub.s32 %v726, %v728
          %v730 = vrot.slane %v716, %v729
          %v731 = vcombine.low %v707, %v723
          %v732 = vcombine.high %v707, %v723
          %v734 = vunpack.c.l.s4 1934713408
          %v735 = vunpack.c.0.s8 %v734
          %v736 = vlaneseq
          %v737 = vshrl.u32 %v736, 7
          %v738 = vsub.s32 %v735, %v737
          %v739 = vrot.slane %v731, %v738
          %v741 = vunpack.c.l.s4 1934713408
          %v742 = vunpack.c.0.s8 %v741
          %v743 = vlaneseq
          %v744 = vshrl.u32 %v743, 7
          %v745 = vsub.s32 %v742, %v744
          %v746 = vrot.slane %v732, %v745
          %v747 = vcombine.low %v714, %v730
          %v748 = vcombine.high %v714, %v730
          %v750 = vunpack.c.l.s4 1934713408
          %v751 = vunpack.c.0.s8 %v750
          %v752 = vlaneseq
          %v753 = vshrl.u32 %v752, 7
          %v754 = vsub.s32 %v751, %v753
          %v755 = vrot.slane %v747, %v754
          %v757 = vunpack.c.l.s4 1934713408
          %v758 = vunpack.c.0.s8 %v757
          %v759 = vlaneseq
          %v760 = vshrl.u32 %v759, 7
          %v761 = vsub.s32 %v758, %v760
          %v762 = vrot.slane %v748, %v761
          %v763 = vcombine.high %v739, 0.0
          %v764 = vcombine.high %v746, 0.0
          %v765 = vcombine.high %v755, 0.0
          %v766 = vcombine.high %v762, 0.0
          %v767 = vcombine.low %v676, %v690
          %v768 = vcombine.high %v676, %v690
          %v770 = vunpack.c.l.s4 1983009808
          %v771 = vunpack.c.0.s8 %v770
          %v772 = vlaneseq
          %v773 = vshrl.u32 %v772, 7
          %v774 = vsub.s32 %v771, %v773
          %v775 = vrot.slane %v767, %v774
          %v777 = vunpack.c.l.s4 1983009808
          %v778 = vunpack.c.0.s8 %v777
          %v779 = vlaneseq
          %v780 = vshrl.u32 %v779, 7
          %v781 = vsub.s32 %v778, %v780
          %v782 = vrot.slane %v768, %v781
          %v783 = vcombine.low %v684, %v696
          %v784 = vcombine.high %v684, %v696
          %v786 = vunpack.c.l.s4 1983009808
          %v787 = vunpack.c.0.s8 %v786
          %v788 = vlaneseq
          %v789 = vshrl.u32 %v788, 7
          %v790 = vsub.s32 %v787, %v789
          %v791 = vrot.slane %v783, %v790
          %v793 = vunpack.c.l.s4 1983009808
          %v794 = vunpack.c.0.s8 %v793
          %v795 = vlaneseq
          %v796 = vshrl.u32 %v795, 7
          %v797 = vsub.s32 %v794, %v796
          %v798 = vrot.slane %v784, %v797
          %v799 = vcombine.low %v775, %v791
          %v800 = vcombine.high %v775, %v791
          %v802 = vunpack.c.l.s4 1934713408
          %v803 = vunpack.c.0.s8 %v802
          %v804 = vlaneseq
          %v805 = vshrl.u32 %v804, 7
          %v806 = vsub.s32 %v803, %v805
          %v807 = vrot.slane %v799, %v806
          %v809 = vunpack.c.l.s4 1934713408
          %v810 = vunpack.c.0.s8 %v809
          %v811 = vlaneseq
          %v812 = vshrl.u32 %v811, 7
          %v813 = vsub.s32 %v810, %v812
          %v814 = vrot.slane %v800, %v813
          %v815 = vcombine.low %v782, %v798
          %v816 = vcombine.high %v782, %v798
          %v818 = vunpack.c.l.s4 1934713408
          %v819 = vunpack.c.0.s8 %v818
          %v820 = vlaneseq
          %v821 = vshrl.u32 %v820, 7
          %v822 = vsub.s32 %v819, %v821
          %v823 = vrot.slane %v815, %v822
          %v825 = vunpack.c.l.s4 1934713408
          %v826 = vunpack.c.0.s8 %v825
          %v827 = vlaneseq
          %v828 = vshrl.u32 %v827, 7
          %v829 = vsub.s32 %v826, %v828
          %v830 = vrot.slane %v816, %v829
          %v831 = vcombine.high %v807, 0.0
          %v832 = vcombine.high %v814, 0.0
          %v833 = vcombine.high %v823, 0.0
          %v834 = vcombine.high %v830, 0.0
          %v835 = vcombine.low %v739, %v746
          %v837 = vunpack.c.l.s4 1983009808
          %v838 = vunpack.c.0.s8 %v837
          %v839 = vlaneseq
          %v840 = vshrl.u32 %v839, 7
          %v841 = vsub.s32 %v838, %v840
          %v842 = vrot.slane %v835, %v841
          %v843 = vcombine.low %v763, %v764
          %v845 = vunpack.c.l.s4 1983009808
          %v846 = vunpack.c.0.s8 %v845
          %v847 = vlaneseq
          %v848 = vshrl.u32 %v847, 7
          %v849 = vsub.s32 %v846, %v848
          %v850 = vrot.slane %v843, %v849
          %v851 = vcombine.low %v755, %v762
          %v853 = vunpack.c.l.s4 1983009808
          %v854 = vunpack.c.0.s8 %v853
          %v855 = vlaneseq
          %v856 = vshrl.u32 %v855, 7
          %v857 = vsub.s32 %v854, %v856
          %v858 = vrot.slane %v851, %v857
          %v859 = vcombine.low %v765, %v766
          %v861 = vunpack.c.l.s4 1983009808
          %v862 = vunpack.c.0.s8 %v861
          %v863 = vlaneseq
          %v864 = vshrl.u32 %v863, 7
          %v865 = vsub.s32 %v862, %v864
          %v866 = vrot.slane %v859, %v865
          %v867 = vcombine.low %v842, %v850
          %v868 = vcombine.high %v842, %v850
          %v870 = vunpack.c.l.s4 1934713408
          %v871 = vunpack.c.0.s8 %v870
          %v872 = vlaneseq
          %v873 = vshrl.u32 %v872, 7
          %v874 = vsub.s32 %v871, %v873
          %v875 = vrot.slane %v867, %v874
          %v877 = vunpack.c.l.s4 1934713408
          %v878 = vunpack.c.0.s8 %v877
          %v879 = vlaneseq
          %v880 = vshrl.u32 %v879, 7
          %v881 = vsub.s32 %v878, %v880
          %v882 = vrot.slane %v868, %v881
          %v883 = vcombine.low %v858, %v866
          %v884 = vcombine.high %v858, %v866
          %v886 = vunpack.c.l.s4 1934713408
          %v887 = vunpack.c.0.s8 %v886
          %v888 = vlaneseq
          %v889 = vshrl.u32 %v888, 7
          %v890 = vsub.s32 %v887, %v889
          %v891 = vrot.slane %v883, %v890
          %v893 = vunpack.c.l.s4 1934713408
          %v894 = vunpack.c.0.s8 %v893
          %v895 = vlaneseq
          %v896 = vshrl.u32 %v895, 7
          %v897 = vsub.s32 %v894, %v896
          %v898 = vrot.slane %v884, %v897
          %v899 = vcombine.low %v875, %v891
          %v900 = vcombine.high %v875, %v891
          %v901 = vcombine.low %v882, %v898
          %v902 = vcombine.high %v882, %v898
          %v903 = vcombine.low %v807, %v814
          %v905 = vunpack.c.l.s4 1983009808
          %v906 = vunpack.c.0.s8 %v905
          %v907 = vlaneseq
          %v908 = vshrl.u32 %v907, 7
          %v909 = vsub.s32 %v906, %v908
          %v910 = vrot.slane %v903, %v909
          %v911 = vcombine.low %v831, %v832
          %v913 = vunpack.c.l.s4 1983009808
          %v914 = vunpack.c.0.s8 %v913
          %v915 = vlaneseq
          %v916 = vshrl.u32 %v915, 7
          %v917 = vsub.s32 %v914, %v916
          %v918 = vrot.slane %v911, %v917
          %v919 = vcombine.low %v823, %v830
          %v921 = vunpack.c.l.s4 1983009808
          %v922 = vunpack.c.0.s8 %v921
          %v923 = vlaneseq
          %v924 = vshrl.u32 %v923, 7
          %v925 = vsub.s32 %v922, %v924
          %v926 = vrot.slane %v919, %v925
          %v927 = vcombine.low %v833, %v834
          %v929 = vunpack.c.l.s4 1983009808
          %v930 = vunpack.c.0.s8 %v929
          %v931 = vlaneseq
          %v932 = vshrl.u32 %v931, 7
          %v933 = vsub.s32 %v930, %v932
          %v934 = vrot.slane %v927, %v933
          %v935 = vcombine.low %v910, %v918
          %v936 = vcombine.high %v910, %v918
          %v938 = vunpack.c.l.s4 1934713408
          %v939 = vunpack.c.0.s8 %v938
          %v940 = vlaneseq
          %v941 = vshrl.u32 %v940, 7
          %v942 = vsub.s32 %v939, %v941
          %v943 = vrot.slane %v935, %v942
          %v945 = vunpack.c.l.s4 1934713408
          %v946 = vunpack.c.0.s8 %v945
          %v947 = vlaneseq
          %v948 = vshrl.u32 %v947, 7
          %v949 = vsub.s32 %v946, %v948
          %v950 = vrot.slane %v936, %v949
          %v951 = vcombine.low %v926, %v934
          %v952 = vcombine.high %v926, %v934
          %v954 = vunpack.c.l.s4 1934713408
          %v955 = vunpack.c.0.s8 %v954
          %v956 = vlaneseq
          %v957 = vshrl.u32 %v956, 7
          %v958 = vsub.s32 %v955, %v957
          %v959 = vrot.slane %v951, %v958
          %v961 = vunpack.c.l.s4 1934713408
          %v962 = vunpack.c.0.s8 %v961
          %v963 = vlaneseq
          %v964 = vshrl.u32 %v963, 7
          %v965 = vsub.s32 %v962, %v964
          %v966 = vrot.slane %v952, %v965
          %v967 = vcombine.low %v943, %v959
          %v968 = vcombine.high %v943, %v959
          %v969 = vcombine.low %v950, %v966
          %v970 = vcombine.high %v950, %v966
          %v971 = vpack.c.bf16 %v967, %v899
          %v972 = vpack.c.bf16 %v968, %v900
          %v973 = vpack.c.bf16 %v969, %v901
          %v974 = vpack.c.bf16 %v970, %v902
          %vm975 = vcmask 64512
          %976 = vst.msk [vmem:[#allocation2] sm:$0xff] %vm975, %v971
          %977 = vst.msk [vmem:[#allocation2 + $0x8] sm:$0xff] %vm975, %v972
          %978 = vst.msk [vmem:[#allocation2 + $0x10] sm:$0xff] %vm975, %v973
          %979 = vst.msk [vmem:[#allocation2 + $0x18] sm:$0xff] %vm975, %v974
          %980 = vrot.lane.b32.xlu0 %v673, 96
          %v981 = vpop.permute.xlu0 %980
          %982 = vrot.lane.b32.xlu0 %v676, 96
          %v983 = vpop.permute.xlu0 %982
          %984 = vrot.lane.b32.xlu0 %v682, 96
          %v985 = vpop.permute.xlu0 %984
          %986 = vrot.lane.b32.xlu0 %v684, 96
          %v987 = vpop.permute.xlu0 %986
          %988 = vrot.lane.b32.xlu0 %v688, 96
          %v989 = vpop.permute.xlu0 %988
          %990 = vrot.lane.b32.xlu0 %v690, 96
          %v991 = vpop.permute.xlu0 %990
          %992 = vrot.lane.b32.xlu0 %v694, 96
          %v993 = vpop.permute.xlu0 %992
          %994 = vrot.lane.b32.xlu0 %v696, 96
          %v995 = vpop.permute.xlu0 %994
          %v1004 = vcombine.low %v981, %v989
          %v1005 = vcombine.high %v981, %v989
          %v1007 = vunpack.c.l.s4 1983009808
          %v1008 = vunpack.c.0.s8 %v1007
          %v1009 = vlaneseq
          %v1010 = vshrl.u32 %v1009, 7
          %v1011 = vsub.s32 %v1008, %v1010
          %v1012 = vrot.slane %v1004, %v1011
          %v1014 = vunpack.c.l.s4 1983009808
          %v1015 = vunpack.c.0.s8 %v1014
          %v1016 = vlaneseq
          %v1017 = vshrl.u32 %v1016, 7
          %v1018 = vsub.s32 %v1015, %v1017
          %v1019 = vrot.slane %v1005, %v1018
          %v1020 = vcombine.low %v985, %v993
          %v1021 = vcombine.high %v985, %v993
          %v1023 = vunpack.c.l.s4 1983009808
          %v1024 = vunpack.c.0.s8 %v1023
          %v1025 = vlaneseq
          %v1026 = vshrl.u32 %v1025, 7
          %v1027 = vsub.s32 %v1024, %v1026
          %v1028 = vrot.slane %v1020, %v1027
          %v1030 = vunpack.c.l.s4 1983009808
          %v1031 = vunpack.c.0.s8 %v1030
          %v1032 = vlaneseq
          %v1033 = vshrl.u32 %v1032, 7
          %v1034 = vsub.s32 %v1031, %v1033
          %v1035 = vrot.slane %v1021, %v1034
          %v1036 = vcombine.low %v1012, %v1028
          %v1037 = vcombine.high %v1012, %v1028
          %v1039 = vunpack.c.l.s4 1934713408
          %v1040 = vunpack.c.0.s8 %v1039
          %v1041 = vlaneseq
          %v1042 = vshrl.u32 %v1041, 7
          %v1043 = vsub.s32 %v1040, %v1042
          %v1044 = vrot.slane %v1036, %v1043
          %v1046 = vunpack.c.l.s4 1934713408
          %v1047 = vunpack.c.0.s8 %v1046
          %v1048 = vlaneseq
          %v1049 = vshrl.u32 %v1048, 7
          %v1050 = vsub.s32 %v1047, %v1049
          %v1051 = vrot.slane %v1037, %v1050
          %v1052 = vcombine.low %v1019, %v1035
          %v1053 = vcombine.high %v1019, %v1035
          %v1055 = vunpack.c.l.s4 1934713408
          %v1056 = vunpack.c.0.s8 %v1055
          %v1057 = vlaneseq
          %v1058 = vshrl.u32 %v1057, 7
          %v1059 = vsub.s32 %v1056, %v1058
          %v1060 = vrot.slane %v1052, %v1059
          %v1062 = vunpack.c.l.s4 1934713408
          %v1063 = vunpack.c.0.s8 %v1062
          %v1064 = vlaneseq
          %v1065 = vshrl.u32 %v1064, 7
          %v1066 = vsub.s32 %v1063, %v1065
          %v1067 = vrot.slane %v1053, %v1066
          %v1068 = vcombine.high %v1044, 0.0
          %v1069 = vcombine.high %v1051, 0.0
          %v1070 = vcombine.high %v1060, 0.0
          %v1071 = vcombine.high %v1067, 0.0
          %v1072 = vcombine.low %v983, %v991
          %v1073 = vcombine.high %v983, %v991
          %v1075 = vunpack.c.l.s4 1983009808
          %v1076 = vunpack.c.0.s8 %v1075
          %v1077 = vlaneseq
          %v1078 = vshrl.u32 %v1077, 7
          %v1079 = vsub.s32 %v1076, %v1078
          %v1080 = vrot.slane %v1072, %v1079
          %v1082 = vunpack.c.l.s4 1983009808
          %v1083 = vunpack.c.0.s8 %v1082
          %v1084 = vlaneseq
          %v1085 = vshrl.u32 %v1084, 7
          %v1086 = vsub.s32 %v1083, %v1085
          %v1087 = vrot.slane %v1073, %v1086
          %v1088 = vcombine.low %v987, %v995
          %v1089 = vcombine.high %v987, %v995
          %v1091 = vunpack.c.l.s4 1983009808
          %v1092 = vunpack.c.0.s8 %v1091
          %v1093 = vlaneseq
          %v1094 = vshrl.u32 %v1093, 7
          %v1095 = vsub.s32 %v1092, %v1094
          %v1096 = vrot.slane %v1088, %v1095
          %v1098 = vunpack.c.l.s4 1983009808
          %v1099 = vunpack.c.0.s8 %v1098
          %v1100 = vlaneseq
          %v1101 = vshrl.u32 %v1100, 7
          %v1102 = vsub.s32 %v1099, %v1101
          %v1103 = vrot.slane %v1089, %v1102
          %v1104 = vcombine.low %v1080, %v1096
          %v1105 = vcombine.high %v1080, %v1096
          %v1107 = vunpack.c.l.s4 1934713408
          %v1108 = vunpack.c.0.s8 %v1107
          %v1109 = vlaneseq
          %v1110 = vshrl.u32 %v1109, 7
          %v1111 = vsub.s32 %v1108, %v1110
          %v1112 = vrot.slane %v1104, %v1111
          %v1114 = vunpack.c.l.s4 1934713408
          %v1115 = vunpack.c.0.s8 %v1114
          %v1116 = vlaneseq
          %v1117 = vshrl.u32 %v1116, 7
          %v1118 = vsub.s32 %v1115, %v1117
          %v1119 = vrot.slane %v1105, %v1118
          %v1120 = vcombine.low %v1087, %v1103
          %v1121 = vcombine.high %v1087, %v1103
          %v1123 = vunpack.c.l.s4 1934713408
          %v1124 = vunpack.c.0.s8 %v1123
          %v1125 = vlaneseq
          %v1126 = vshrl.u32 %v1125, 7
          %v1127 = vsub.s32 %v1124, %v1126
          %v1128 = vrot.slane %v1120, %v1127
          %v1130 = vunpack.c.l.s4 1934713408
          %v1131 = vunpack.c.0.s8 %v1130
          %v1132 = vlaneseq
          %v1133 = vshrl.u32 %v1132, 7
          %v1134 = vsub.s32 %v1131, %v1133
          %v1135 = vrot.slane %v1121, %v1134
          %v1136 = vcombine.high %v1112, 0.0
          %v1137 = vcombine.high %v1119, 0.0
          %v1138 = vcombine.high %v1128, 0.0
          %v1139 = vcombine.high %v1135, 0.0
          %v1140 = vcombine.low %v1044, %v1051
          %v1142 = vunpack.c.l.s4 1983009808
          %v1143 = vunpack.c.0.s8 %v1142
          %v1144 = vlaneseq
          %v1145 = vshrl.u32 %v1144, 7
          %v1146 = vsub.s32 %v1143, %v1145
          %v1147 = vrot.slane %v1140, %v1146
          %v1148 = vcombine.low %v1068, %v1069
          %v1150 = vunpack.c.l.s4 1983009808
          %v1151 = vunpack.c.0.s8 %v1150
          %v1152 = vlaneseq
          %v1153 = vshrl.u32 %v1152, 7
          %v1154 = vsub.s32 %v1151, %v1153
          %v1155 = vrot.slane %v1148, %v1154
          %v1156 = vcombine.low %v1060, %v1067
          %v1158 = vunpack.c.l.s4 1983009808
          %v1159 = vunpack.c.0.s8 %v1158
          %v1160 = vlaneseq
          %v1161 = vshrl.u32 %v1160, 7
          %v1162 = vsub.s32 %v1159, %v1161
          %v1163 = vrot.slane %v1156, %v1162
          %v1164 = vcombine.low %v1070, %v1071
          %v1166 = vunpack.c.l.s4 1983009808
          %v1167 = vunpack.c.0.s8 %v1166
          %v1168 = vlaneseq
          %v1169 = vshrl.u32 %v1168, 7
          %v1170 = vsub.s32 %v1167, %v1169
          %v1171 = vrot.slane %v1164, %v1170
          %v1172 = vcombine.low %v1147, %v1155
          %v1173 = vcombine.high %v1147, %v1155
          %v1175 = vunpack.c.l.s4 1934713408
          %v1176 = vunpack.c.0.s8 %v1175
          %v1177 = vlaneseq
          %v1178 = vshrl.u32 %v1177, 7
          %v1179 = vsub.s32 %v1176, %v1178
          %v1180 = vrot.slane %v1172, %v1179
          %v1182 = vunpack.c.l.s4 1934713408
          %v1183 = vunpack.c.0.s8 %v1182
          %v1184 = vlaneseq
          %v1185 = vshrl.u32 %v1184, 7
          %v1186 = vsub.s32 %v1183, %v1185
          %v1187 = vrot.slane %v1173, %v1186
          %v1188 = vcombine.low %v1163, %v1171
          %v1189 = vcombine.high %v1163, %v1171
          %v1191 = vunpack.c.l.s4 1934713408
          %v1192 = vunpack.c.0.s8 %v1191
          %v1193 = vlaneseq
          %v1194 = vshrl.u32 %v1193, 7
          %v1195 = vsub.s32 %v1192, %v1194
          %v1196 = vrot.slane %v1188, %v1195
          %v1198 = vunpack.c.l.s4 1934713408
          %v1199 = vunpack.c.0.s8 %v1198
          %v1200 = vlaneseq
          %v1201 = vshrl.u32 %v1200, 7
          %v1202 = vsub.s32 %v1199, %v1201
          %v1203 = vrot.slane %v1189, %v1202
          %v1204 = vcombine.low %v1180, %v1196
          %v1205 = vcombine.high %v1180, %v1196
          %v1206 = vcombine.low %v1187, %v1203
          %v1207 = vcombine.high %v1187, %v1203
          %v1208 = vcombine.low %v1112, %v1119
          %v1210 = vunpack.c.l.s4 1983009808
          %v1211 = vunpack.c.0.s8 %v1210
          %v1212 = vlaneseq
          %v1213 = vshrl.u32 %v1212, 7
          %v1214 = vsub.s32 %v1211, %v1213
          %v1215 = vrot.slane %v1208, %v1214
          %v1216 = vcombine.low %v1136, %v1137
          %v1218 = vunpack.c.l.s4 1983009808
          %v1219 = vunpack.c.0.s8 %v1218
          %v1220 = vlaneseq
          %v1221 = vshrl.u32 %v1220, 7
          %v1222 = vsub.s32 %v1219, %v1221
          %v1223 = vrot.slane %v1216, %v1222
          %v1224 = vcombine.low %v1128, %v1135
          %v1226 = vunpack.c.l.s4 1983009808
          %v1227 = vunpack.c.0.s8 %v1226
          %v1228 = vlaneseq
          %v1229 = vshrl.u32 %v1228, 7
          %v1230 = vsub.s32 %v1227, %v1229
          %v1231 = vrot.slane %v1224, %v1230
          %v1232 = vcombine.low %v1138, %v1139
          %v1234 = vunpack.c.l.s4 1983009808
          %v1235 = vunpack.c.0.s8 %v1234
          %v1236 = vlaneseq
          %v1237 = vshrl.u32 %v1236, 7
          %v1238 = vsub.s32 %v1235, %v1237
          %v1239 = vrot.slane %v1232, %v1238
          %v1240 = vcombine.low %v1215, %v1223
          %v1241 = vcombine.high %v1215, %v1223
          %v1243 = vunpack.c.l.s4 1934713408
          %v1244 = vunpack.c.0.s8 %v1243
          %v1245 = vlaneseq
          %v1246 = vshrl.u32 %v1245, 7
          %v1247 = vsub.s32 %v1244, %v1246
          %v1248 = vrot.slane %v1240, %v1247
          %v1250 = vunpack.c.l.s4 1934713408
          %v1251 = vunpack.c.0.s8 %v1250
          %v1252 = vlaneseq
          %v1253 = vshrl.u32 %v1252, 7
          %v1254 = vsub.s32 %v1251, %v1253
          %v1255 = vrot.slane %v1241, %v1254
          %v1256 = vcombine.low %v1231, %v1239
          %v1257 = vcombine.high %v1231, %v1239
          %v1259 = vunpack.c.l.s4 1934713408
          %v1260 = vunpack.c.0.s8 %v1259
          %v1261 = vlaneseq
          %v1262 = vshrl.u32 %v1261, 7
          %v1263 = vsub.s32 %v1260, %v1262
          %v1264 = vrot.slane %v1256, %v1263
          %v1266 = vunpack.c.l.s4 1934713408
          %v1267 = vunpack.c.0.s8 %v1266
          %v1268 = vlaneseq
          %v1269 = vshrl.u32 %v1268, 7
          %v1270 = vsub.s32 %v1267, %v1269
          %v1271 = vrot.slane %v1257, %v1270
          %v1272 = vcombine.low %v1248, %v1264
          %v1273 = vcombine.high %v1248, %v1264
          %v1274 = vcombine.low %v1255, %v1271
          %v1275 = vcombine.high %v1255, %v1271
          %v1276 = vpack.c.bf16 %v1272, %v1204
          %v1277 = vpack.c.bf16 %v1273, %v1205
          %v1278 = vpack.c.bf16 %v1274, %v1206
          %v1279 = vpack.c.bf16 %v1275, %v1207
          %1280 = vst.msk [vmem:[#allocation3] sm:$0xff] %vm975, %v1276
          %1281 = vst.msk [vmem:[#allocation3 + $0x8] sm:$0xff] %vm975, %v1277
          %1282 = vst.msk [vmem:[#allocation3 + $0x10] sm:$0xff] %vm975, %v1278
          %1283 = vst.msk [vmem:[#allocation3 + $0x18] sm:$0xff] %vm975, %v1279
        $region100: #{tpu_custom_call.1} parent=79 // pred_fallthru
          _
        %s1284 = smul.u32 %s37, 8
        %s1285 = scalar_lea.vmem %s557, %s1284
        %v1286 = vld [vmem:[%s1285] sm:$0xff]
        %v1287 = vld [vmem:[%s1] sm:$0x1]
        %v1288 = vld [vmem:[%s2] sm:$0x1]
        %vm1289 = vcmask 261120
        %v1290 = vsel %vm1289, %v1286, 0.0
        %1291 = vadd.xlane.f32.xlu0 %v1290
        %v1292 = vpop.xlane.xlu0 %1291
        %v1293 = vrcp.pop 32.0
        %v1294 = vmul.f32 %v1292, %v1293
        %v1295 = vsub.f32 %v1286, %v1294
        %v1296 = vmul.f32 %v1295, %v1295
        %v1297 = vsel %vm1289, %v1296, 0.0
        %1298 = vadd.xlane.f32.xlu0 %v1297
        %v1299 = vpop.xlane.xlu0 %1298
        %v1300 = vmul.f32 %v1299, %v1293
        %v1301 = vadd.f32 %v1300, 1e-05
        %v1302 = vrsqrt.pop %v1301
        %v1303 = vmul.f32 %v1295, %v1302
        %v1305 = vlaneseq
        %v1306 = vshrl.u32 %v1305, 7
        %v1307 = vsub.s32 0, %v1306
        %v1308 = vrot.slane %v1287, %v1307
        %v1310 = vmul.f32 %v1303, %v1308
        %v1312 = vlaneseq
        %v1313 = vshrl.u32 %v1312, 7
        %v1314 = vsub.s32 0, %v1313
        %v1315 = vrot.slane %v1288, %v1314
        %v1317 = vadd.f32 %v1310, %v1315
        %v1318 = vpack.c.bf16 %v1317, %v1317
        %v1319 = vld [vmem:[%s3] sm:$0xf]
        %v1320 = vld [vmem:[%s3 + $0x4] sm:$0xf]
        %v1321 = vld [vmem:[%s3 + $0x8] sm:$0xf]
        %v1322 = vld [vmem:[%s3 + $0xc] sm:$0xf]
        %v1323 = vld [vmem:[#allocation4] sm:$0x1]
        %v1325 = vlaneseq
        %v1326 = vshrl.u32 %v1325, 7
        %v1327 = vsub.s32 0, %v1326
        %v1328 = vrot.slane %v1323, %v1327
        %v1334 = vunpack.c.l.b16 %v1319
        %v1335 = vunpack.c.l.b16 %v1320
        %v1336 = vunpack.c.l.b16 %v1321
        %v1337 = vunpack.c.l.b16 %v1322
        %v1338 = vpack.c.b16 %v1335, %v1334
        %v1339 = vpack.c.b16 %v1337, %v1336
        %v1343 = vsel %vm1289, %v1318, 0
        %1345 = vmatprep.subr.bf16.mxu0 0
        %1346 = vmatpush1.bf16.msra.mxu0 %v1338
        %1347 = vmatprep.subr.bf16.mxu0 0
        %1348 = vmatpush1.bf16.msra.mxu0 %v1339
        %1349 = vmatprep.subr.bf16.mxu0 0
        %1350 = vmatpush1.bf16.msra.mxu0 0
        %1351 = vmatprep.subr.bf16.mxu0 0
        %1352 = vmatpush1.bf16.msra.mxu0 0
        %1353 = vmatprep.subr.bf16.mxu0 0
        %1354 = vmatpush1.bf16.msra.mxu0 0
        %1355 = vmatprep.subr.bf16.mxu0 0
        %1356 = vmatpush1.bf16.msra.mxu0 0
        %1357 = vmatprep.subr.bf16.mxu0 0
        %1358 = vmatpush1.bf16.msra.mxu0 0
        %1359 = vmatprep.subr.bf16.mxu0 0
        %1360 = vmatpush1.bf16.msra.mxu0 0
        %1361 = vmatprep.subr.bf16.mxu0 0
        %1362 = vmatpush1.bf16.msra.mxu0 0
        %1363 = vmatprep.subr.bf16.mxu0 0
        %1364 = vmatpush1.bf16.msra.mxu0 0
        %1365 = vmatprep.subr.bf16.mxu0 0
        %1366 = vmatpush1.bf16.msra.mxu0 0
        %1367 = vmatprep.subr.bf16.mxu0 0
        %1368 = vmatpush1.bf16.msra.mxu0 0
        %1369 = vmatprep.subr.bf16.mxu0 0
        %1370 = vmatpush1.bf16.msra.mxu0 0
        %1371 = vmatprep.subr.bf16.mxu0 0
        %1372 = vmatpush1.bf16.msra.mxu0 0
        %1373 = vmatprep.subr.bf16.mxu0 0
        %1374 = vmatpush1.bf16.msra.mxu0 0
        %1375 = vmatprep.subr.bf16.mxu0 0
        %1376 = vmatpush1.bf16.msra.mxu0 0
        %1377 = vmatprep.mubr.bf16.mxu0 0
        %1378 = vmatmul.mubr.bf16.gmra.mrb[0].mxu0 %v1343
        %v1379 = vpop.f32.mrb[0].mxu0
        %v1380 = vadd.f32 %v1328, %v1379
        %v1381 = vpop.f32.mrb[0].mxu0
        %v1382 = vpop.f32.mrb[0].mxu0
        %v1383 = vpop.f32.mrb[0].mxu0
        %1384 = vdwg.mxu0
        %1386 = vrot.lane.b32.xlu0 %v1380, 120
        %v1387 = vpop.permute.xlu0 %1386
        %1389 = vrot.lane.b32.xlu0 %v1380, 112
        %v1390 = vpop.permute.xlu0 %1389
        %1392 = vrot.lane.b32.xlu0 %v1380, 104
        %v1393 = vpop.permute.xlu0 %1392
        %v1395 = vcombine.low %v1380, %v1390
        %v1396 = vcombine.high %v1380, %v1390
        %v1398 = vunpack.c.l.s4 1983009808
        %v1399 = vunpack.c.0.s8 %v1398
        %v1400 = vlaneseq
        %v1401 = vshrl.u32 %v1400, 7
        %v1402 = vsub.s32 %v1399, %v1401
        %v1403 = vrot.slane %v1395, %v1402
        %v1405 = vunpack.c.l.s4 1983009808
        %v1406 = vunpack.c.0.s8 %v1405
        %v1407 = vlaneseq
        %v1408 = vshrl.u32 %v1407, 7
        %v1409 = vsub.s32 %v1406, %v1408
        %v1410 = vrot.slane %v1396, %v1409
        %v1411 = vcombine.low %v1387, %v1393
        %v1412 = vcombine.high %v1387, %v1393
        %v1414 = vunpack.c.l.s4 1983009808
        %v1415 = vunpack.c.0.s8 %v1414
        %v1416 = vlaneseq
        %v1417 = vshrl.u32 %v1416, 7
        %v1418 = vsub.s32 %v1415, %v1417
        %v1419 = vrot.slane %v1411, %v1418
        %v1421 = vunpack.c.l.s4 1983009808
        %v1422 = vunpack.c.0.s8 %v1421
        %v1423 = vlaneseq
        %v1424 = vshrl.u32 %v1423, 7
        %v1425 = vsub.s32 %v1422, %v1424
        %v1426 = vrot.slane %v1412, %v1425
        %v1427 = vcombine.low %v1403, %v1419
        %v1428 = vcombine.high %v1403, %v1419
        %v1430 = vunpack.c.l.s4 1934713408
        %v1431 = vunpack.c.0.s8 %v1430
        %v1432 = vlaneseq
        %v1433 = vshrl.u32 %v1432, 7
        %v1434 = vsub.s32 %v1431, %v1433
        %v1435 = vrot.slane %v1427, %v1434
        %v1437 = vunpack.c.l.s4 1934713408
        %v1438 = vunpack.c.0.s8 %v1437
        %v1439 = vlaneseq
        %v1440 = vshrl.u32 %v1439, 7
        %v1441 = vsub.s32 %v1438, %v1440
        %v1442 = vrot.slane %v1428, %v1441
        %v1443 = vcombine.low %v1410, %v1426
        %v1444 = vcombine.high %v1410, %v1426
        %v1446 = vunpack.c.l.s4 1934713408
        %v1447 = vunpack.c.0.s8 %v1446
        %v1448 = vlaneseq
        %v1449 = vshrl.u32 %v1448, 7
        %v1450 = vsub.s32 %v1447, %v1449
        %v1451 = vrot.slane %v1443, %v1450
        %v1453 = vunpack.c.l.s4 1934713408
        %v1454 = vunpack.c.0.s8 %v1453
        %v1455 = vlaneseq
        %v1456 = vshrl.u32 %v1455, 7
        %v1457 = vsub.s32 %v1454, %v1456
        %v1458 = vrot.slane %v1444, %v1457
        %v1459 = vcombine.high %v1435, 0.0
        %v1460 = vcombine.high %v1442, 0.0
        %v1461 = vcombine.high %v1451, 0.0
        %v1462 = vcombine.high %v1458, 0.0
        %v1463 = vcombine.low %v1435, %v1442
        %v1465 = vunpack.c.l.s4 1983009808
        %v1466 = vunpack.c.0.s8 %v1465
        %v1467 = vlaneseq
        %v1468 = vshrl.u32 %v1467, 7
        %v1469 = vsub.s32 %v1466, %v1468
        %v1470 = vrot.slane %v1463, %v1469
        %v1471 = vcombine.low %v1459, %v1460
        %v1473 = vunpack.c.l.s4 1983009808
        %v1474 = vunpack.c.0.s8 %v1473
        %v1475 = vlaneseq
        %v1476 = vshrl.u32 %v1475, 7
        %v1477 = vsub.s32 %v1474, %v1476
        %v1478 = vrot.slane %v1471, %v1477
        %v1479 = vcombine.low %v1451, %v1458
        %v1481 = vunpack.c.l.s4 1983009808
        %v1482 = vunpack.c.0.s8 %v1481
        %v1483 = vlaneseq
        %v1484 = vshrl.u32 %v1483, 7
        %v1485 = vsub.s32 %v1482, %v1484
        %v1486 = vrot.slane %v1479, %v1485
        %v1487 = vcombine.low %v1461, %v1462
        %v1489 = vunpack.c.l.s4 1983009808
        %v1490 = vunpack.c.0.s8 %v1489
        %v1491 = vlaneseq
        %v1492 = vshrl.u32 %v1491, 7
        %v1493 = vsub.s32 %v1490, %v1492
        %v1494 = vrot.slane %v1487, %v1493
        %v1495 = vcombine.low %v1470, %v1478
        %v1496 = vcombine.high %v1470, %v1478
        %v1498 = vunpack.c.l.s4 1934713408
        %v1499 = vunpack.c.0.s8 %v1498
        %v1500 = vlaneseq
        %v1501 = vshrl.u32 %v1500, 7
        %v1502 = vsub.s32 %v1499, %v1501
        %v1503 = vrot.slane %v1495, %v1502
        %v1505 = vunpack.c.l.s4 1934713408
        %v1506 = vunpack.c.0.s8 %v1505
        %v1507 = vlaneseq
        %v1508 = vshrl.u32 %v1507, 7
        %v1509 = vsub.s32 %v1506, %v1508
        %v1510 = vrot.slane %v1496, %v1509
        %v1511 = vcombine.low %v1486, %v1494
        %v1512 = vcombine.high %v1486, %v1494
        %v1514 = vunpack.c.l.s4 1934713408
        %v1515 = vunpack.c.0.s8 %v1514
        %v1516 = vlaneseq
        %v1517 = vshrl.u32 %v1516, 7
        %v1518 = vsub.s32 %v1515, %v1517
        %v1519 = vrot.slane %v1511, %v1518
        %v1521 = vunpack.c.l.s4 1934713408
        %v1522 = vunpack.c.0.s8 %v1521
        %v1523 = vlaneseq
        %v1524 = vshrl.u32 %v1523, 7
        %v1525 = vsub.s32 %v1522, %v1524
        %v1526 = vrot.slane %v1512, %v1525
        %v1527 = vcombine.low %v1503, %v1519
        %v1528 = vcombine.high %v1503, %v1519
        %v1529 = vcombine.low %v1510, %v1526
        %v1530 = vcombine.high %v1510, %v1526
        %v1531 = vpack.c.bf16 %v1527, %v1527
        %v1532 = vpack.c.bf16 %v1528, %v1528
        %v1533 = vpack.c.bf16 %v1529, %v1529
        %v1534 = vpack.c.bf16 %v1530, %v1530
        %v1535 = vld [vmem:[#allocation2] sm:$0xff]
        %v1536 = vld [vmem:[#allocation2 + $0x8] sm:$0xff]
        %v1537 = vld [vmem:[#allocation2 + $0x10] sm:$0xff]
        %v1538 = vld [vmem:[#allocation2 + $0x18] sm:$0xff]
        %vm1539 = vcmask 64512
        %v1541 = vsel %vm1539, %v1531, 0
        %v1544 = vsel %vm1539, %v1535, 0
        %1546 = vmatprep.subr.bf16.mxu0 0
        %1547 = vmatpush1.bf16.xpose.msra.mxu0 %v1544
        %1548 = vmatprep.subr.bf16.mxu0 0
        %1549 = vmatpush1.bf16.xpose.msra.mxu0 0
        %1550 = vmatprep.subr.bf16.mxu0 0
        %1551 = vmatpush1.bf16.xpose.msra.mxu0 0
        %1552 = vmatprep.subr.bf16.mxu0 0
        %1553 = vmatpush1.bf16.xpose.msra.mxu0 0
        %1554 = vmatprep.subr.bf16.mxu0 0
        %1555 = vmatpush1.bf16.xpose.msra.mxu0 0
        %1556 = vmatprep.subr.bf16.mxu0 0
        %1557 = vmatpush1.bf16.xpose.msra.mxu0 0
        %1558 = vmatprep.subr.bf16.mxu0 0
        %1559 = vmatpush1.bf16.xpose.msra.mxu0 0
        %1560 = vmatprep.subr.bf16.mxu0 0
        %1561 = vmatpush1.bf16.xpose.msra.mxu0 0
        %1562 = vmatprep.subr.bf16.mxu0 0
        %1563 = vmatpush1.bf16.xpose.msra.mxu0 0
        %1564 = vmatprep.subr.bf16.mxu0 0
        %1565 = vmatpush1.bf16.xpose.msra.mxu0 0
        %1566 = vmatprep.subr.bf16.mxu0 0
        %1567 = vmatpush1.bf16.xpose.msra.mxu0 0
        %1568 = vmatprep.subr.bf16.mxu0 0
        %1569 = vmatpush1.bf16.xpose.msra.mxu0 0
        %1570 = vmatprep.subr.bf16.mxu0 0
        %1571 = vmatpush1.bf16.xpose.msra.mxu0 0
        %1572 = vmatprep.subr.bf16.mxu0 0
        %1573 = vmatpush1.bf16.xpose.msra.mxu0 0
        %1574 = vmatprep.subr.bf16.mxu0 0
        %1575 = vmatpush1.bf16.xpose.msra.mxu0 0
        %1576 = vmatprep.subr.bf16.mxu0 0
        %1577 = vmatpush1.bf16.xpose.msra.mxu0 0
        %1578 = vmatprep.mubr.bf16.mxu0 0
        %1579 = vmatmul.mubr.bf16.gmra.mrb[0].mxu0 %v1541
        %v1580 = vpop.f32.mrb[0].mxu0
        %v1581 = vadd.f32 0.0, %v1580
        %v1582 = vpop.f32.mrb[0].mxu0
        %v1583 = vpop.f32.mrb[0].mxu0
        %v1584 = vpop.f32.mrb[0].mxu0
        %1585 = vdwg.mxu0
        %v1587 = vsel %vm1539, %v1532, 0
        %v1590 = vsel %vm1539, %v1536, 0
        %1592 = vmatprep.subr.bf16.mxu0 0
        %1593 = vmatpush1.bf16.xpose.msra.mxu0 %v1590
        %1594 = vmatprep.subr.bf16.mxu0 0
        %1595 = vmatpush1.bf16.xpose.msra.mxu0 0
        %1596 = vmatprep.subr.bf16.mxu0 0
        %1597 = vmatpush1.bf16.xpose.msra.mxu0 0
        %1598 = vmatprep.subr.bf16.mxu0 0
        %1599 = vmatpush1.bf16.xpose.msra.mxu0 0
        %1600 = vmatprep.subr.bf16.mxu0 0
        %1601 = vmatpush1.bf16.xpose.msra.mxu0 0
        %1602 = vmatprep.subr.bf16.mxu0 0
        %1603 = vmatpush1.bf16.xpose.msra.mxu0 0
        %1604 = vmatprep.subr.bf16.mxu0 0
        %1605 = vmatpush1.bf16.xpose.msra.mxu0 0
        %1606 = vmatprep.subr.bf16.mxu0 0
        %1607 = vmatpush1.bf16.xpose.msra.mxu0 0
        %1608 = vmatprep.subr.bf16.mxu0 0
        %1609 = vmatpush1.bf16.xpose.msra.mxu0 0
        %1610 = vmatprep.subr.bf16.mxu0 0
        %1611 = vmatpush1.bf16.xpose.msra.mxu0 0
        %1612 = vmatprep.subr.bf16.mxu0 0
        %1613 = vmatpush1.bf16.xpose.msra.mxu0 0
        %1614 = vmatprep.subr.bf16.mxu0 0
        %1615 = vmatpush1.bf16.xpose.msra.mxu0 0
        %1616 = vmatprep.subr.bf16.mxu0 0
        %1617 = vmatpush1.bf16.xpose.msra.mxu0 0
        %1618 = vmatprep.subr.bf16.mxu0 0
        %1619 = vmatpush1.bf16.xpose.msra.mxu0 0
        %1620 = vmatprep.subr.bf16.mxu0 0
        %1621 = vmatpush1.bf16.xpose.msra.mxu0 0
        %1622 = vmatprep.subr.bf16.mxu0 0
        %1623 = vmatpush1.bf16.xpose.msra.mxu0 0
        %1624 = vmatprep.mubr.bf16.mxu0 0
        %1625 = vmatmul.mubr.bf16.gmra.mrb[0].mxu0 %v1587
        %v1626 = vpop.f32.mrb[0].mxu0
        %v1627 = vadd.f32 0.0, %v1626
        %v1628 = vpop.f32.mrb[0].mxu0
        %v1629 = vpop.f32.mrb[0].mxu0
        %v1630 = vpop.f32.mrb[0].mxu0
        %1631 = vdwg.mxu0
        %v1633 = vsel %vm1539, %v1533, 0
        %v1636 = vsel %vm1539, %v1537, 0
        %1638 = vmatprep.subr.bf16.mxu0 0
        %1639 = vmatpush1.bf16.xpose.msra.mxu0 %v1636
        %1640 = vmatprep.subr.bf16.mxu0 0
        %1641 = vmatpush1.bf16.xpose.msra.mxu0 0
        %1642 = vmatprep.subr.bf16.mxu0 0
        %1643 = vmatpush1.bf16.xpose.msra.mxu0 0
        %1644 = vmatprep.subr.bf16.mxu0 0
        %1645 = vmatpush1.bf16.xpose.msra.mxu0 0
        %1646 = vmatprep.subr.bf16.mxu0 0
        %1647 = vmatpush1.bf16.xpose.msra.mxu0 0
        %1648 = vmatprep.subr.bf16.mxu0 0
        %1649 = vmatpush1.bf16.xpose.msra.mxu0 0
        %1650 = vmatprep.subr.bf16.mxu0 0
        %1651 = vmatpush1.bf16.xpose.msra.mxu0 0
        %1652 = vmatprep.subr.bf16.mxu0 0
        %1653 = vmatpush1.bf16.xpose.msra.mxu0 0
        %1654 = vmatprep.subr.bf16.mxu0 0
        %1655 = vmatpush1.bf16.xpose.msra.mxu0 0
        %1656 = vmatprep.subr.bf16.mxu0 0
        %1657 = vmatpush1.bf16.xpose.msra.mxu0 0
        %1658 = vmatprep.subr.bf16.mxu0 0
        %1659 = vmatpush1.bf16.xpose.msra.mxu0 0
        %1660 = vmatprep.subr.bf16.mxu0 0
        %1661 = vmatpush1.bf16.xpose.msra.mxu0 0
        %1662 = vmatprep.subr.bf16.mxu0 0
        %1663 = vmatpush1.bf16.xpose.msra.mxu0 0
        %1664 = vmatprep.subr.bf16.mxu0 0
        %1665 = vmatpush1.bf16.xpose.msra.mxu0 0
        %1666 = vmatprep.subr.bf16.mxu0 0
        %1667 = vmatpush1.bf16.xpose.msra.mxu0 0
        %1668 = vmatprep.subr.bf16.mxu0 0
        %1669 = vmatpush1.bf16.xpose.msra.mxu0 0
        %1670 = vmatprep.mubr.bf16.mxu0 0
        %1671 = vmatmul.mubr.bf16.gmra.mrb[0].mxu0 %v1633
        %v1672 = vpop.f32.mrb[0].mxu0
        %v1673 = vadd.f32 0.0, %v1672
        %v1674 = vpop.f32.mrb[0].mxu0
        %v1675 = vpop.f32.mrb[0].mxu0
        %v1676 = vpop.f32.mrb[0].mxu0
        %1677 = vdwg.mxu0
        %v1679 = vsel %vm1539, %v1534, 0
        %v1682 = vsel %vm1539, %v1538, 0
        %1684 = vmatprep.subr.bf16.mxu0 0
        %1685 = vmatpush1.bf16.xpose.msra.mxu0 %v1682
        %1686 = vmatprep.subr.bf16.mxu0 0
        %1687 = vmatpush1.bf16.xpose.msra.mxu0 0
        %1688 = vmatprep.subr.bf16.mxu0 0
        %1689 = vmatpush1.bf16.xpose.msra.mxu0 0
        %1690 = vmatprep.subr.bf16.mxu0 0
        %1691 = vmatpush1.bf16.xpose.msra.mxu0 0
        %1692 = vmatprep.subr.bf16.mxu0 0
        %1693 = vmatpush1.bf16.xpose.msra.mxu0 0
        %1694 = vmatprep.subr.bf16.mxu0 0
        %1695 = vmatpush1.bf16.xpose.msra.mxu0 0
        %1696 = vmatprep.subr.bf16.mxu0 0
        %1697 = vmatpush1.bf16.xpose.msra.mxu0 0
        %1698 = vmatprep.subr.bf16.mxu0 0
        %1699 = vmatpush1.bf16.xpose.msra.mxu0 0
        %1700 = vmatprep.subr.bf16.mxu0 0
        %1701 = vmatpush1.bf16.xpose.msra.mxu0 0
        %1702 = vmatprep.subr.bf16.mxu0 0
        %1703 = vmatpush1.bf16.xpose.msra.mxu0 0
        %1704 = vmatprep.subr.bf16.mxu0 0
        %1705 = vmatpush1.bf16.xpose.msra.mxu0 0
        %1706 = vmatprep.subr.bf16.mxu0 0
        %1707 = vmatpush1.bf16.xpose.msra.mxu0 0
        %1708 = vmatprep.subr.bf16.mxu0 0
        %1709 = vmatpush1.bf16.xpose.msra.mxu0 0
        %1710 = vmatprep.subr.bf16.mxu0 0
        %1711 = vmatpush1.bf16.xpose.msra.mxu0 0
        %1712 = vmatprep.subr.bf16.mxu0 0
        %1713 = vmatpush1.bf16.xpose.msra.mxu0 0
        %1714 = vmatprep.subr.bf16.mxu0 0
        %1715 = vmatpush1.bf16.xpose.msra.mxu0 0
        %1716 = vmatprep.mubr.bf16.mxu0 0
        %1717 = vmatmul.mubr.bf16.gmra.mrb[0].mxu0 %v1679
        %v1718 = vpop.f32.mrb[0].mxu0
        %v1719 = vadd.f32 0.0, %v1718
        %v1720 = vpop.f32.mrb[0].mxu0
        %v1721 = vpop.f32.mrb[0].mxu0
        %v1722 = vpop.f32.mrb[0].mxu0
        %1723 = vdwg.mxu0
        %v1724 = vmul.f32 %v1581, 0.35355338
        %v1725 = vmul.f32 %v1627, 0.35355338
        %v1726 = vmul.f32 %v1673, 0.35355338
        %v1727 = vmul.f32 %v1719, 0.35355338
        %vm1728 = vcmask 130048
        %v1729 = vsel %vm1728, %v1724, -inf
        %1730 = vmax.xlane.f32.xlu0 %v1729
        %v1731 = vpop.xlane.xlu0 %1730
        %v1732 = vsel %vm1728, %v1725, -inf
        %1733 = vmax.xlane.f32.xlu0 %v1732
        %v1734 = vpop.xlane.xlu0 %1733
        %v1735 = vsel %vm1728, %v1726, -inf
        %1736 = vmax.xlane.f32.xlu0 %v1735
        %v1737 = vpop.xlane.xlu0 %1736
        %v1738 = vsel %vm1728, %v1727, -inf
        %1739 = vmax.xlane.f32.xlu0 %v1738
        %v1740 = vpop.xlane.xlu0 %1739
        %v1741 = vsub.f32 %v1724, %v1731
        %v1742 = vsub.f32 %v1725, %v1734
        %v1743 = vsub.f32 %v1726, %v1737
        %v1744 = vsub.f32 %v1727, %v1740
        %v1745 = vpack.c.bf16 %v1741, %v1741
        %v1746 = vpack.c.bf16 %v1742, %v1742
        %v1747 = vpack.c.bf16 %v1743, %v1743
        %v1748 = vpack.c.bf16 %v1744, %v1744
        %v1750 = vmul.bf16 %v1745, 1069105081
        %v1751 = vpow.bf16.pop %v1750
        %v1753 = vmul.bf16 %v1746, 1069105081
        %v1754 = vpow.bf16.pop %v1753
        %v1756 = vmul.bf16 %v1747, 1069105081
        %v1757 = vpow.bf16.pop %v1756
        %v1759 = vmul.bf16 %v1748, 1069105081
        %v1760 = vpow.bf16.pop %v1759
        %v1761 = vunpack.c.l.bf16 %v1751
        %v1762 = vunpack.c.l.bf16 %v1754
        %v1763 = vunpack.c.l.bf16 %v1757
        %v1764 = vunpack.c.l.bf16 %v1760
        %v1765 = vsel %vm1728, %v1761, 0.0
        %1766 = vadd.xlane.f32.xlu0 %v1765
        %v1767 = vpop.xlane.xlu0 %1766
        %v1768 = vsel %vm1728, %v1762, 0.0
        %1769 = vadd.xlane.f32.xlu0 %v1768
        %v1770 = vpop.xlane.xlu0 %1769
        %v1771 = vsel %vm1728, %v1763, 0.0
        %1772 = vadd.xlane.f32.xlu0 %v1771
        %v1773 = vpop.xlane.xlu0 %1772
        %v1774 = vsel %vm1728, %v1764, 0.0
        %1775 = vadd.xlane.f32.xlu0 %v1774
        %v1776 = vpop.xlane.xlu0 %1775
        %v1777 = vld [vmem:[#allocation3] sm:$0xff]
        %v1778 = vld [vmem:[#allocation3 + $0x8] sm:$0xff]
        %v1779 = vld [vmem:[#allocation3 + $0x10] sm:$0xff]
        %v1780 = vld [vmem:[#allocation3 + $0x18] sm:$0xff]
        %v1782 = vsel %vm1728, %v1751, 0
        %1784 = vmatprep.subr.bf16.mxu0 0
        %1785 = vmatpush1.bf16.msra.mxu0 %v1777
        %1786 = vmatprep.subr.bf16.mxu0 0
        %1787 = vmatpush1.bf16.msra.mxu0 0
        %1788 = vmatprep.subr.bf16.mxu0 0
        %1789 = vmatpush1.bf16.msra.mxu0 0
        %1790 = vmatprep.subr.bf16.mxu0 0
        %1791 = vmatpush1.bf16.msra.mxu0 0
        %1792 = vmatprep.subr.bf16.mxu0 0
        %1793 = vmatpush1.bf16.msra.mxu0 0
        %1794 = vmatprep.subr.bf16.mxu0 0
        %1795 = vmatpush1.bf16.msra.mxu0 0
        %1796 = vmatprep.subr.bf16.mxu0 0
        %1797 = vmatpush1.bf16.msra.mxu0 0
        %1798 = vmatprep.subr.bf16.mxu0 0
        %1799 = vmatpush1.bf16.msra.mxu0 0
        %1800 = vmatprep.subr.bf16.mxu0 0
        %1801 = vmatpush1.bf16.msra.mxu0 0
        %1802 = vmatprep.subr.bf16.mxu0 0
        %1803 = vmatpush1.bf16.msra.mxu0 0
        %1804 = vmatprep.subr.bf16.mxu0 0
        %1805 = vmatpush1.bf16.msra.mxu0 0
        %1806 = vmatprep.subr.bf16.mxu0 0
        %1807 = vmatpush1.bf16.msra.mxu0 0
        %1808 = vmatprep.subr.bf16.mxu0 0
        %1809 = vmatpush1.bf16.msra.mxu0 0
        %1810 = vmatprep.subr.bf16.mxu0 0
        %1811 = vmatpush1.bf16.msra.mxu0 0
        %1812 = vmatprep.subr.bf16.mxu0 0
        %1813 = vmatpush1.bf16.msra.mxu0 0
        %1814 = vmatprep.subr.bf16.mxu0 0
        %1815 = vmatpush1.bf16.msra.mxu0 0
        %1816 = vmatprep.mubr.bf16.mxu0 0
        %1817 = vmatmul.mubr.bf16.gmra.mrb[0].mxu0 %v1782
        %v1818 = vpop.f32.mrb[0].mxu0
        %v1819 = vadd.f32 0.0, %v1818
        %v1820 = vpop.f32.mrb[0].mxu0
        %v1821 = vpop.f32.mrb[0].mxu0
        %v1822 = vpop.f32.mrb[0].mxu0
        %1823 = vdwg.mxu0
        %v1825 = vsel %vm1728, %v1754, 0
        %1827 = vmatprep.subr.bf16.mxu0 0
        %1828 = vmatpush1.bf16.msra.mxu0 %v1778
        %1829 = vmatprep.subr.bf16.mxu0 0
        %1830 = vmatpush1.bf16.msra.mxu0 0
        %1831 = vmatprep.subr.bf16.mxu0 0
        %1832 = vmatpush1.bf16.msra.mxu0 0
        %1833 = vmatprep.subr.bf16.mxu0 0
        %1834 = vmatpush1.bf16.msra.mxu0 0
        %1835 = vmatprep.subr.bf16.mxu0 0
        %1836 = vmatpush1.bf16.msra.mxu0 0
        %1837 = vmatprep.subr.bf16.mxu0 0
        %1838 = vmatpush1.bf16.msra.mxu0 0
        %1839 = vmatprep.subr.bf16.mxu0 0
        %1840 = vmatpush1.bf16.msra.mxu0 0
        %1841 = vmatprep.subr.bf16.mxu0 0
        %1842 = vmatpush1.bf16.msra.mxu0 0
        %1843 = vmatprep.subr.bf16.mxu0 0
        %1844 = vmatpush1.bf16.msra.mxu0 0
        %1845 = vmatprep.subr.bf16.mxu0 0
        %1846 = vmatpush1.bf16.msra.mxu0 0
        %1847 = vmatprep.subr.bf16.mxu0 0
        %1848 = vmatpush1.bf16.msra.mxu0 0
        %1849 = vmatprep.subr.bf16.mxu0 0
        %1850 = vmatpush1.bf16.msra.mxu0 0
        %1851 = vmatprep.subr.bf16.mxu0 0
        %1852 = vmatpush1.bf16.msra.mxu0 0
        %1853 = vmatprep.subr.bf16.mxu0 0
        %1854 = vmatpush1.bf16.msra.mxu0 0
        %1855 = vmatprep.subr.bf16.mxu0 0
        %1856 = vmatpush1.bf16.msra.mxu0 0
        %1857 = vmatprep.subr.bf16.mxu0 0
        %1858 = vmatpush1.bf16.msra.mxu0 0
        %1859 = vmatprep.mubr.bf16.mxu0 0
        %1860 = vmatmul.mubr.bf16.gmra.mrb[0].mxu0 %v1825
        %v1861 = vpop.f32.mrb[0].mxu0
        %v1862 = vadd.f32 0.0, %v1861
        %v1863 = vpop.f32.mrb[0].mxu0
        %v1864 = vpop.f32.mrb[0].mxu0
        %v1865 = vpop.f32.mrb[0].mxu0
        %1866 = vdwg.mxu0
        %v1868 = vsel %vm1728, %v1757, 0
        %1870 = vmatprep.subr.bf16.mxu0 0
        %1871 = vmatpush1.bf16.msra.mxu0 %v1779
        %1872 = vmatprep.subr.bf16.mxu0 0
        %1873 = vmatpush1.bf16.msra.mxu0 0
        %1874 = vmatprep.subr.bf16.mxu0 0
        %1875 = vmatpush1.bf16.msra.mxu0 0
        %1876 = vmatprep.subr.bf16.mxu0 0
        %1877 = vmatpush1.bf16.msra.mxu0 0
        %1878 = vmatprep.subr.bf16.mxu0 0
        %1879 = vmatpush1.bf16.msra.mxu0 0
        %1880 = vmatprep.subr.bf16.mxu0 0
        %1881 = vmatpush1.bf16.msra.mxu0 0
        %1882 = vmatprep.subr.bf16.mxu0 0
        %1883 = vmatpush1.bf16.msra.mxu0 0
        %1884 = vmatprep.subr.bf16.mxu0 0
        %1885 = vmatpush1.bf16.msra.mxu0 0
        %1886 = vmatprep.subr.bf16.mxu0 0
        %1887 = vmatpush1.bf16.msra.mxu0 0
        %1888 = vmatprep.subr.bf16.mxu0 0
        %1889 = vmatpush1.bf16.msra.mxu0 0
        %1890 = vmatprep.subr.bf16.mxu0 0
        %1891 = vmatpush1.bf16.msra.mxu0 0
        %1892 = vmatprep.subr.bf16.mxu0 0
        %1893 = vmatpush1.bf16.msra.mxu0 0
        %1894 = vmatprep.subr.bf16.mxu0 0
        %1895 = vmatpush1.bf16.msra.mxu0 0
        %1896 = vmatprep.subr.bf16.mxu0 0
        %1897 = vmatpush1.bf16.msra.mxu0 0
        %1898 = vmatprep.subr.bf16.mxu0 0
        %1899 = vmatpush1.bf16.msra.mxu0 0
        %1900 = vmatprep.subr.bf16.mxu0 0
        %1901 = vmatpush1.bf16.msra.mxu0 0
        %1902 = vmatprep.mubr.bf16.mxu0 0
        %1903 = vmatmul.mubr.bf16.gmra.mrb[0].mxu0 %v1868
        %v1904 = vpop.f32.mrb[0].mxu0
        %v1905 = vadd.f32 0.0, %v1904
        %v1906 = vpop.f32.mrb[0].mxu0
        %v1907 = vpop.f32.mrb[0].mxu0
        %v1908 = vpop.f32.mrb[0].mxu0
        %1909 = vdwg.mxu0
        %v1911 = vsel %vm1728, %v1760, 0
        %1913 = vmatprep.subr.bf16.mxu0 0
        %1914 = vmatpush1.bf16.msra.mxu0 %v1780
        %1915 = vmatprep.subr.bf16.mxu0 0
        %1916 = vmatpush1.bf16.msra.mxu0 0
        %1917 = vmatprep.subr.bf16.mxu0 0
        %1918 = vmatpush1.bf16.msra.mxu0 0
        %1919 = vmatprep.subr.bf16.mxu0 0
        %1920 = vmatpush1.bf16.msra.mxu0 0
        %1921 = vmatprep.subr.bf16.mxu0 0
        %1922 = vmatpush1.bf16.msra.mxu0 0
        %1923 = vmatprep.subr.bf16.mxu0 0
        %1924 = vmatpush1.bf16.msra.mxu0 0
        %1925 = vmatprep.subr.bf16.mxu0 0
        %1926 = vmatpush1.bf16.msra.mxu0 0
        %1927 = vmatprep.subr.bf16.mxu0 0
        %1928 = vmatpush1.bf16.msra.mxu0 0
        %1929 = vmatprep.subr.bf16.mxu0 0
        %1930 = vmatpush1.bf16.msra.mxu0 0
        %1931 = vmatprep.subr.bf16.mxu0 0
        %1932 = vmatpush1.bf16.msra.mxu0 0
        %1933 = vmatprep.subr.bf16.mxu0 0
        %1934 = vmatpush1.bf16.msra.mxu0 0
        %1935 = vmatprep.subr.bf16.mxu0 0
        %1936 = vmatpush1.bf16.msra.mxu0 0
        %1937 = vmatprep.subr.bf16.mxu0 0
        %1938 = vmatpush1.bf16.msra.mxu0 0
        %1939 = vmatprep.subr.bf16.mxu0 0
        %1940 = vmatpush1.bf16.msra.mxu0 0
        %1941 = vmatprep.subr.bf16.mxu0 0
        %1942 = vmatpush1.bf16.msra.mxu0 0
        %1943 = vmatprep.subr.bf16.mxu0 0
        %1944 = vmatpush1.bf16.msra.mxu0 0
        %1945 = vmatprep.mubr.bf16.mxu0 0
        %1946 = vmatmul.mubr.bf16.gmra.mrb[0].mxu0 %v1911
        %v1947 = vpop.f32.mrb[0].mxu0
        %v1948 = vadd.f32 0.0, %v1947
        %v1949 = vpop.f32.mrb[0].mxu0
        %v1950 = vpop.f32.mrb[0].mxu0
        %v1951 = vpop.f32.mrb[0].mxu0
        %1952 = vdwg.mxu0
        %v1953 = vrcp.pop %v1767
        %v1954 = vrcp.pop %v1770
        %v1955 = vrcp.pop %v1773
        %v1956 = vrcp.pop %v1776
        %v1957 = vmul.f32 %v1819, %v1953
        %v1958 = vmul.f32 %v1862, %v1954
        %v1959 = vmul.f32 %v1905, %v1955
        %v1960 = vmul.f32 %v1948, %v1956
        %v1961 = vpack.c.bf16 %v1957, %v1957
        %v1963 = vunpack.c.l.s4 1983009808
        %v1964 = vunpack.c.0.s8 %v1963
        %v1965 = vlaneseq
        %v1966 = vshrl.u32 %v1965, 7
        %v1967 = vsub.s32 %v1964, %v1966
        %v1968 = vrot.slane %v1961, %v1967
        %v1969 = vpack.c.bf16 %v1959, %v1959
        %v1971 = vunpack.c.l.s4 1983009808
        %v1972 = vunpack.c.0.s8 %v1971
        %v1973 = vlaneseq
        %v1974 = vshrl.u32 %v1973, 7
        %v1975 = vsub.s32 %v1972, %v1974
        %v1976 = vrot.slane %v1969, %v1975
        %v1977 = vcombine.low %v1968, %v1976
        %v1978 = vcombine.high %v1968, %v1976
        %v1980 = vunpack.c.l.s4 1934713408
        %v1981 = vunpack.c.0.s8 %v1980
        %v1982 = vlaneseq
        %v1983 = vshrl.u32 %v1982, 7
        %v1984 = vsub.s32 %v1981, %v1983
        %v1985 = vrot.slane %v1977, %v1984
        %v1987 = vunpack.c.l.s4 1934713408
        %v1988 = vunpack.c.0.s8 %v1987
        %v1989 = vlaneseq
        %v1990 = vshrl.u32 %v1989, 7
        %v1991 = vsub.s32 %v1988, %v1990
        %v1992 = vrot.slane %v1978, %v1991
        %v1993 = vcombine.high %v1985, 0
        %v1994 = vcombine.high %v1992, 0
        %v1995 = vpack.c.bf16 %v1958, %v1958
        %v1997 = vunpack.c.l.s4 1983009808
        %v1998 = vunpack.c.0.s8 %v1997
        %v1999 = vlaneseq
        %v2000 = vshrl.u32 %v1999, 7
        %v2001 = vsub.s32 %v1998, %v2000
        %v2002 = vrot.slane %v1995, %v2001
        %v2003 = vpack.c.bf16 %v1960, %v1960
        %v2005 = vunpack.c.l.s4 1983009808
        %v2006 = vunpack.c.0.s8 %v2005
        %v2007 = vlaneseq
        %v2008 = vshrl.u32 %v2007, 7
        %v2009 = vsub.s32 %v2006, %v2008
        %v2010 = vrot.slane %v2003, %v2009
        %v2011 = vcombine.low %v2002, %v2010
        %v2012 = vcombine.high %v2002, %v2010
        %v2014 = vunpack.c.l.s4 1934713408
        %v2015 = vunpack.c.0.s8 %v2014
        %v2016 = vlaneseq
        %v2017 = vshrl.u32 %v2016, 7
        %v2018 = vsub.s32 %v2015, %v2017
        %v2019 = vrot.slane %v2011, %v2018
        %v2021 = vunpack.c.l.s4 1934713408
        %v2022 = vunpack.c.0.s8 %v2021
        %v2023 = vlaneseq
        %v2024 = vshrl.u32 %v2023, 7
        %v2025 = vsub.s32 %v2022, %v2024
        %v2026 = vrot.slane %v2012, %v2025
        %v2027 = vcombine.high %v2019, 0
        %v2028 = vcombine.high %v2026, 0
        %v2031 = vpack.i.b16 %v2019, %v1985
        %v2033 = vshrl.u32 %v1985, 16
        %v2034 = vshrl.u32 %v2019, 16
        %v2035 = vpack.i.b16 %v2034, %v2033
        %v2039 = vpack.i.b16 %v2027, %v1993
        %v2041 = vshrl.u32 %v1993, 16
        %v2042 = vshrl.u32 %v2027, 16
        %v2043 = vpack.i.b16 %v2042, %v2041
        %v2047 = vpack.i.b16 %v2026, %v1992
        %v2049 = vshrl.u32 %v1992, 16
        %v2050 = vshrl.u32 %v2026, 16
        %v2051 = vpack.i.b16 %v2050, %v2049
        %v2055 = vpack.i.b16 %v2028, %v1994
        %v2057 = vshrl.u32 %v1994, 16
        %v2058 = vshrl.u32 %v2028, 16
        %v2059 = vpack.i.b16 %v2058, %v2057
        %v2061 = vcombine.low %v2031, %v2047
        %v2063 = vunpack.c.l.s4 1983009808
        %v2064 = vunpack.c.0.s8 %v2063
        %v2065 = vlaneseq
        %v2066 = vshrl.u32 %v2065, 7
        %v2067 = vsub.s32 %v2064, %v2066
        %v2068 = vrot.slane %v2061, %v2067
        %v2069 = vcombine.low %v2039, %v2055
        %v2071 = vunpack.c.l.s4 1983009808
        %v2072 = vunpack.c.0.s8 %v2071
        %v2073 = vlaneseq
        %v2074 = vshrl.u32 %v2073, 7
        %v2075 = vsub.s32 %v2072, %v2074
        %v2076 = vrot.slane %v2069, %v2075
        %v2077 = vcombine.low %v2068, %v2076
        %v2079 = vunpack.c.l.s4 1934713408
        %v2080 = vunpack.c.0.s8 %v2079
        %v2081 = vlaneseq
        %v2082 = vshrl.u32 %v2081, 7
        %v2083 = vsub.s32 %v2080, %v2082
        %v2084 = vrot.slane %v2077, %v2083
        %v2085 = vcombine.high %v2084, 0
        %v2086 = vcombine.low %v2035, %v2051
        %v2088 = vunpack.c.l.s4 1983009808
        %v2089 = vunpack.c.0.s8 %v2088
        %v2090 = vlaneseq
        %v2091 = vshrl.u32 %v2090, 7
        %v2092 = vsub.s32 %v2089, %v2091
        %v2093 = vrot.slane %v2086, %v2092
        %v2094 = vcombine.low %v2043, %v2059
        %v2096 = vunpack.c.l.s4 1983009808
        %v2097 = vunpack.c.0.s8 %v2096
        %v2098 = vlaneseq
        %v2099 = vshrl.u32 %v2098, 7
        %v2100 = vsub.s32 %v2097, %v2099
        %v2101 = vrot.slane %v2094, %v2100
        %v2102 = vcombine.low %v2093, %v2101
        %v2104 = vunpack.c.l.s4 1934713408
        %v2105 = vunpack.c.0.s8 %v2104
        %v2106 = vlaneseq
        %v2107 = vshrl.u32 %v2106, 7
        %v2108 = vsub.s32 %v2105, %v2107
        %v2109 = vrot.slane %v2102, %v2108
        %v2110 = vcombine.high %v2109, 0
        %v2113 = vpack.i.b16 %v2109, %v2084
        %v2114 = vshrl.u32 %v2084, 16
        %v2115 = vshrl.u32 %v2109, 16
        %v2116 = vpack.i.b16 %v2115, %v2114
        %v2119 = vpack.i.b16 %v2110, %v2085
        %v2120 = vshrl.u32 %v2085, 16
        %v2121 = vshrl.u32 %v2110, 16
        %v2122 = vpack.i.b16 %v2121, %v2120
        %2123 = vrot.lane.b32.xlu0 %v2116, 8
        %v2124 = vpop.permute.xlu0 %2123
        %2125 = vrot.lane.b32.xlu0 %v2119, 16
        %v2126 = vpop.permute.xlu0 %2125
        %2127 = vrot.lane.b32.xlu0 %v2122, 24
        %v2128 = vpop.permute.xlu0 %2127
        %v2131 = vsel %vm1539, %v2113, %v2124
        %v2133 = vsel %vm1728, %v2131, %v2126
        %vm2134 = vcmask 195584
        %v2136 = vsel %vm2134, %v2133, %v2128
        %v2137 = vld [vmem:[%s7] sm:$0xf]
        %v2138 = vld [vmem:[%s7 + $0x4] sm:$0xf]
        %v2139 = vld [vmem:[%s7 + $0x8] sm:$0xf]
        %v2140 = vld [vmem:[%s7 + $0xc] sm:$0xf]
        %v2141 = vld [vmem:[#allocation9] sm:$0x1]
        %v2143 = vlaneseq
        %v2144 = vshrl.u32 %v2143, 7
        %v2145 = vsub.s32 0, %v2144
        %v2146 = vrot.slane %v2141, %v2145
        %v2152 = vunpack.c.l.b16 %v2137
        %v2153 = vunpack.c.l.b16 %v2138
        %v2154 = vunpack.c.l.b16 %v2139
        %v2155 = vunpack.c.l.b16 %v2140
        %v2156 = vpack.c.b16 %v2153, %v2152
        %v2157 = vpack.c.b16 %v2155, %v2154
        %v2160 = vsel %vm1289, %v2136, 0
        %2162 = vmatprep.subr.bf16.mxu0 0
        %2163 = vmatpush1.bf16.msra.mxu0 %v2156
        %2164 = vmatprep.subr.bf16.mxu0 0
        %2165 = vmatpush1.bf16.msra.mxu0 %v2157
        %2166 = vmatprep.subr.bf16.mxu0 0
        %2167 = vmatpush1.bf16.msra.mxu0 0
        %2168 = vmatprep.subr.bf16.mxu0 0
        %2169 = vmatpush1.bf16.msra.mxu0 0
        %2170 = vmatprep.subr.bf16.mxu0 0
        %2171 = vmatpush1.bf16.msra.mxu0 0
        %2172 = vmatprep.subr.bf16.mxu0 0
        %2173 = vmatpush1.bf16.msra.mxu0 0
        %2174 = vmatprep.subr.bf16.mxu0 0
        %2175 = vmatpush1.bf16.msra.mxu0 0
        %2176 = vmatprep.subr.bf16.mxu0 0
        %2177 = vmatpush1.bf16.msra.mxu0 0
        %2178 = vmatprep.subr.bf16.mxu0 0
        %2179 = vmatpush1.bf16.msra.mxu0 0
        %2180 = vmatprep.subr.bf16.mxu0 0
        %2181 = vmatpush1.bf16.msra.mxu0 0
        %2182 = vmatprep.subr.bf16.mxu0 0
        %2183 = vmatpush1.bf16.msra.mxu0 0
        %2184 = vmatprep.subr.bf16.mxu0 0
        %2185 = vmatpush1.bf16.msra.mxu0 0
        %2186 = vmatprep.subr.bf16.mxu0 0
        %2187 = vmatpush1.bf16.msra.mxu0 0
        %2188 = vmatprep.subr.bf16.mxu0 0
        %2189 = vmatpush1.bf16.msra.mxu0 0
        %2190 = vmatprep.subr.bf16.mxu0 0
        %2191 = vmatpush1.bf16.msra.mxu0 0
        %2192 = vmatprep.subr.bf16.mxu0 0
        %2193 = vmatpush1.bf16.msra.mxu0 0
        %2194 = vmatprep.mubr.bf16.mxu0 0
        %2195 = vmatmul.mubr.bf16.gmra.mrb[0].mxu0 %v2160
        %v2196 = vpop.f32.mrb[0].mxu0
        %v2197 = vadd.f32 %v2146, %v2196
        %v2198 = vpop.f32.mrb[0].mxu0
        %v2199 = vpop.f32.mrb[0].mxu0
        %v2200 = vpop.f32.mrb[0].mxu0
        %2201 = vdwg.mxu0
        %v2202 = vadd.f32 %v2197, %v1286
        %v2203 = vld [vmem:[#allocation10] sm:$0x1]
        %v2204 = vld [vmem:[%s10] sm:$0x1]
        %v2205 = vsel %vm1289, %v2202, 0.0
        %2206 = vadd.xlane.f32.xlu0 %v2205
        %v2207 = vpop.xlane.xlu0 %2206
        %v2208 = vmul.f32 %v2207, %v1293
        %v2209 = vsub.f32 %v2202, %v2208
        %v2210 = vmul.f32 %v2209, %v2209
        %v2211 = vsel %vm1289, %v2210, 0.0
        %2212 = vadd.xlane.f32.xlu0 %v2211
        %v2213 = vpop.xlane.xlu0 %2212
        %v2214 = vmul.f32 %v2213, %v1293
        %v2215 = vadd.f32 %v2214, 1e-05
        %v2216 = vrsqrt.pop %v2215
        %v2217 = vmul.f32 %v2209, %v2216
        %v2219 = vlaneseq
        %v2220 = vshrl.u32 %v2219, 7
        %v2221 = vsub.s32 0, %v2220
        %v2222 = vrot.slane %v2203, %v2221
        %v2224 = vmul.f32 %v2217, %v2222
        %v2226 = vlaneseq
        %v2227 = vshrl.u32 %v2226, 7
        %v2228 = vsub.s32 0, %v2227
        %v2229 = vrot.slane %v2204, %v2228
        %v2231 = vadd.f32 %v2224, %v2229
        %v2232 = vpack.c.bf16 %v2231, %v2231
        %v2233 = vld [vmem:[%s11] sm:$0xf]
        %v2234 = vld [vmem:[%s11 + $0x4] sm:$0xf]
        %v2235 = vld [vmem:[%s11 + $0x8] sm:$0xf]
        %v2236 = vld [vmem:[%s11 + $0xc] sm:$0xf]
        %v2237 = vld [vmem:[%s12] sm:$0x1]
        %v2239 = vlaneseq
        %v2240 = vshrl.u32 %v2239, 7
        %v2241 = vsub.s32 0, %v2240
        %v2242 = vrot.slane %v2237, %v2241
        %v2248 = vunpack.c.l.b16 %v2233
        %v2249 = vunpack.c.l.b16 %v2234
        %v2250 = vunpack.c.l.b16 %v2235
        %v2251 = vunpack.c.l.b16 %v2236
        %v2252 = vpack.c.b16 %v2249, %v2248
        %v2253 = vpack.c.b16 %v2251, %v2250
        %v2257 = vsel %vm1289, %v2232, 0
        %2259 = vmatprep.subr.bf16.mxu0 0
        %2260 = vmatpush1.bf16.msra.mxu0 %v2252
        %2261 = vmatprep.subr.bf16.mxu0 0
        %2262 = vmatpush1.bf16.msra.mxu0 %v2253
        %2263 = vmatprep.subr.bf16.mxu0 0
        %2264 = vmatpush1.bf16.msra.mxu0 0
        %2265 = vmatprep.subr.bf16.mxu0 0
        %2266 = vmatpush1.bf16.msra.mxu0 0
        %2267 = vmatprep.subr.bf16.mxu0 0
        %2268 = vmatpush1.bf16.msra.mxu0 0
        %2269 = vmatprep.subr.bf16.mxu0 0
        %2270 = vmatpush1.bf16.msra.mxu0 0
        %2271 = vmatprep.subr.bf16.mxu0 0
        %2272 = vmatpush1.bf16.msra.mxu0 0
        %2273 = vmatprep.subr.bf16.mxu0 0
        %2274 = vmatpush1.bf16.msra.mxu0 0
        %2275 = vmatprep.subr.bf16.mxu0 0
        %2276 = vmatpush1.bf16.msra.mxu0 0
        %2277 = vmatprep.subr.bf16.mxu0 0
        %2278 = vmatpush1.bf16.msra.mxu0 0
        %2279 = vmatprep.subr.bf16.mxu0 0
        %2280 = vmatpush1.bf16.msra.mxu0 0
        %2281 = vmatprep.subr.bf16.mxu0 0
        %2282 = vmatpush1.bf16.msra.mxu0 0
        %2283 = vmatprep.subr.bf16.mxu0 0
        %2284 = vmatpush1.bf16.msra.mxu0 0
        %2285 = vmatprep.subr.bf16.mxu0 0
        %2286 = vmatpush1.bf16.msra.mxu0 0
        %2287 = vmatprep.subr.bf16.mxu0 0
        %2288 = vmatpush1.bf16.msra.mxu0 0
        %2289 = vmatprep.subr.bf16.mxu0 0
        %2290 = vmatpush1.bf16.msra.mxu0 0
        %2291 = vmatprep.mubr.bf16.mxu0 0
        %2292 = vmatmul.mubr.bf16.gmra.mrb[0].mxu0 %v2257
        %v2293 = vpop.f32.mrb[0].mxu0
        %v2294 = vadd.f32 %v2242, %v2293
        %v2295 = vpop.f32.mrb[0].mxu0
        %v2296 = vpop.f32.mrb[0].mxu0
        %v2297 = vpop.f32.mrb[0].mxu0
        %2298 = vdwg.mxu0
        %v2299 = vmul.f32 %v2294, %v2294
        %v2300 = vmul.f32 %v2294, %v2299
        %v2301 = vmul.f32 %v2300, 0.044715
        %v2302 = vadd.f32 %v2294, %v2301
        %v2303 = vmul.f32 %v2302, 0.7978846
        %v2304 = vtanh.pop %v2303
        %v2305 = vadd.f32 %v2304, 1.0
        %v2306 = vmul.f32 %v2305, 0.5
        %v2307 = vmul.f32 %v2294, %v2306
        %v2308 = vpack.c.bf16 %v2307, %v2307
        %v2309 = vld [vmem:[%s13] sm:$0xf]
        %v2310 = vld [vmem:[%s13 + $0x4] sm:$0xf]
        %v2311 = vld [vmem:[%s13 + $0x8] sm:$0xf]
        %v2312 = vld [vmem:[%s13 + $0xc] sm:$0xf]
        %v2313 = vld [vmem:[%s13 + $0x10] sm:$0xf]
        %v2314 = vld [vmem:[%s13 + $0x14] sm:$0xf]
        %v2315 = vld [vmem:[%s13 + $0x18] sm:$0xf]
        %v2316 = vld [vmem:[%s13 + $0x1c] sm:$0xf]
        %v2317 = vld [vmem:[%s13 + $0x20] sm:$0xf]
        %v2318 = vld [vmem:[%s13 + $0x24] sm:$0xf]
        %v2319 = vld [vmem:[%s13 + $0x28] sm:$0xf]
        %v2320 = vld [vmem:[%s13 + $0x2c] sm:$0xf]
        %v2321 = vld [vmem:[%s13 + $0x30] sm:$0xf]
        %v2322 = vld [vmem:[%s13 + $0x34] sm:$0xf]
        %v2323 = vld [vmem:[%s13 + $0x38] sm:$0xf]
        %v2324 = vld [vmem:[%s13 + $0x3c] sm:$0xf]
        %v2325 = vld [vmem:[%s14] sm:$0x1]
        %v2327 = vlaneseq
        %v2328 = vshrl.u32 %v2327, 7
        %v2329 = vsub.s32 0, %v2328
        %v2330 = vrot.slane %v2325, %v2329
        %v2348 = vunpack.c.l.b16 %v2309
        %v2349 = vunpack.c.l.b16 %v2310
        %v2350 = vunpack.c.l.b16 %v2311
        %v2351 = vunpack.c.l.b16 %v2312
        %v2352 = vunpack.c.l.b16 %v2313
        %v2353 = vunpack.c.l.b16 %v2314
        %v2354 = vunpack.c.l.b16 %v2315
        %v2355 = vunpack.c.l.b16 %v2316
        %v2356 = vunpack.c.l.b16 %v2317
        %v2357 = vunpack.c.l.b16 %v2318
        %v2358 = vunpack.c.l.b16 %v2319
        %v2359 = vunpack.c.l.b16 %v2320
        %v2360 = vunpack.c.l.b16 %v2321
        %v2361 = vunpack.c.l.b16 %v2322
        %v2362 = vunpack.c.l.b16 %v2323
        %v2363 = vunpack.c.l.b16 %v2324
        %v2364 = vpack.c.b16 %v2349, %v2348
        %v2365 = vpack.c.b16 %v2351, %v2350
        %v2366 = vpack.c.b16 %v2353, %v2352
        %v2367 = vpack.c.b16 %v2355, %v2354
        %v2368 = vpack.c.b16 %v2357, %v2356
        %v2369 = vpack.c.b16 %v2359, %v2358
        %v2370 = vpack.c.b16 %v2361, %v2360
        %v2371 = vpack.c.b16 %v2363, %v2362
        %2380 = vmatprep.subr.bf16.mxu0 0
        %2381 = vmatpush1.bf16.msra.mxu0 %v2364
        %2382 = vmatprep.subr.bf16.mxu0 0
        %2383 = vmatpush1.bf16.msra.mxu0 %v2365
        %2384 = vmatprep.subr.bf16.mxu0 0
        %2385 = vmatpush1.bf16.msra.mxu0 %v2366
        %2386 = vmatprep.subr.bf16.mxu0 0
        %2387 = vmatpush1.bf16.msra.mxu0 %v2367
        %2388 = vmatprep.subr.bf16.mxu0 0
        %2389 = vmatpush1.bf16.msra.mxu0 %v2368
        %2390 = vmatprep.subr.bf16.mxu0 0
        %2391 = vmatpush1.bf16.msra.mxu0 %v2369
        %2392 = vmatprep.subr.bf16.mxu0 0
        %2393 = vmatpush1.bf16.msra.mxu0 %v2370
        %2394 = vmatprep.subr.bf16.mxu0 0
        %2395 = vmatpush1.bf16.msra.mxu0 %v2371
        %2396 = vmatprep.subr.bf16.mxu0 0
        %2397 = vmatpush1.bf16.msra.mxu0 0
        %2398 = vmatprep.subr.bf16.mxu0 0
        %2399 = vmatpush1.bf16.msra.mxu0 0
        %2400 = vmatprep.subr.bf16.mxu0 0
        %2401 = vmatpush1.bf16.msra.mxu0 0
        %2402 = vmatprep.subr.bf16.mxu0 0
        %2403 = vmatpush1.bf16.msra.mxu0 0
        %2404 = vmatprep.subr.bf16.mxu0 0
        %2405 = vmatpush1.bf16.msra.mxu0 0
        %2406 = vmatprep.subr.bf16.mxu0 0
        %2407 = vmatpush1.bf16.msra.mxu0 0
        %2408 = vmatprep.subr.bf16.mxu0 0
        %2409 = vmatpush1.bf16.msra.mxu0 0
        %2410 = vmatprep.subr.bf16.mxu0 0
        %2411 = vmatpush1.bf16.msra.mxu0 0
        %2412 = vmatprep.mubr.bf16.mxu0 0
        %2413 = vmatmul.mubr.bf16.gmra.mrb[0].mxu0 %v2308
        %v2414 = vpop.f32.mrb[0].mxu0
        %v2415 = vadd.f32 %v2330, %v2414
        %v2416 = vpop.f32.mrb[0].mxu0
        %v2417 = vpop.f32.mrb[0].mxu0
        %v2418 = vpop.f32.mrb[0].mxu0
        %2419 = vdwg.mxu0
        %v2420 = vadd.f32 %v2415, %v2202
        %2421 = vst.msk [vmem:[%s552] sm:$0xff] %vm1289, %v2420
        %s2422 = sand.u32 %s374, 1
        %s2423 = scalar_lea.sflag [#allocation6], %s2422
        %s2424 = sand.u32 %s374, 1
        %s2425 = smul.addr %s2424, 8
        %s2426 = scalar_lea.vmem [#allocation12], %s2425
        // Predicated region
        $region101: #{tpu_custom_call.1} parent=79 // pred_check
          %p2427 = pneg %p384
        $region102: #{tpu_custom_call.1} parent=79 // pred_check_branch
          %2429 = sbr.rel (%p2427) target = $region104
        $region103: #{tpu_custom_call.1} parent=79 // pred_region
          %s2431 = ssub.s32 128, 128
          %2432 = vsyncadd %s2423, %s2431
          %s2433 = smul.addr %s36, 2
          %s2434 = sadd.s32 %s37, %s2433
          %s2435 = smul.addr %s2434, 128
          %s2436 = scalar_lea.hbm %s15, %s2435
          %s2438 = sshll.u32 %s2426, 4
          %s2439 = int_to_ptr.vmem [resolvable:$true] %s2438
          %2441 = dma.vmem_to_hbm [thread:$0]  %s2439, 128, %s2436, %s2423
        $region104: #{tpu_custom_call.1} parent=79 // pred_fallthru
          _
      $region80: #{tpu_custom_call.1} parent=5 // pred_fallthru
        _
      %p2442 = scmp.le.s32.totalorder 2, %s27
      // Predicated region
      $region105: #{tpu_custom_call.1} parent=5 // pred_check
        %p2443 = pneg %p2442
      $region106: #{tpu_custom_call.1} parent=5 // pred_check_branch
        %2445 = sbr.rel (%p2443) target = $region108
      $region107: #{tpu_custom_call.1} parent=5 // pred_region
        %s2446 = ssub.s32 %s27, 2
        // Predicated region
        $region109: #{tpu_custom_call.1} parent=107 // pred_check
          %p2447 = pneg %p390
        $region110: #{tpu_custom_call.1} parent=107 // pred_check_branch
          %2449 = sbr.rel (%p2447) target = $region112
        $region111: #{tpu_custom_call.1} parent=107 // pred_region
          %s2450 = sand.u32 %s375, 1
          %s2451 = scalar_lea.sflag [#allocation6], %s2450
          %s2452 = sand.u32 %s375, 1
          %s2453 = smul.addr %s2452, 8
          %s2454 = scalar_lea.vmem [#allocation12], %s2453
          %2455 = dma.done %s2451, 128
        $region112: #{tpu_custom_call.1} parent=107 // pred_fallthru
          _
      $region108: #{tpu_custom_call.1} parent=5 // pred_fallthru
        _
    $region6: #{tpu_custom_call.1} parent=1 // loop_footer
      %s31 = sadd.s32 1, %s27
    $region7: #{tpu_custom_call.1} parent=1 // loop_footer_branch
      %26 = sbr.rel target = $region3
    $region8: #{tpu_custom_call.1} parent=1 // loop_exit
      _
    %2456 = vsyncpa [#allocation5], 1
    %s2457 = scalar_lea.sflag [#allocation5], 1
    %2458 = vsyncpa %s2457, 1
    %2459 = vsyncpa [#allocation8], 1
    %2460 = vsyncpa [#allocation11], 1
    %2461 = vsyncpa [#allocation6], 1
    %s2462 = scalar_lea.sflag [#allocation6], 1
    %2463 = vsyncpa %s2462, 1

</llo_original>
